<compile_context>
chip_gen: v6e
topology: v6e:2x2x1
jax: 0.10.0
libtpu: 0.0.40
codegen_flags: <defaults>
</compile_context>

<pallas_src>
import jax
import jax.numpy as jnp
import numpy as np
from jax.experimental import pallas as pl
from jax.experimental.pallas import tpu as pltpu


# ---------------------------------------------------------------------------
# Synthetic stand-in for e3nn Kernel(Rs_in, Rs_out)  (deterministic params).
# ---------------------------------------------------------------------------
def make_kernel_params(key, dim_in, dim_out):
    k0, k1, k2 = jax.random.split(key, 3)
    w0 = 0.1 * jax.random.normal(k0, (dim_out, dim_in), jnp.float32)
    w1 = 0.1 * jax.random.normal(k1, (dim_out, dim_in, 3), jnp.float32)
    wn = 0.1 * jax.random.normal(k2, (dim_out, dim_in), jnp.float32)
    return (w0, w1, wn)


def eval_kernel(params, rel):
    """Reference layout: rel [Z,A,B,3] -> [Z,A,B,dim_out,dim_in]."""
    w0, w1, wn = params
    norm = jnp.linalg.norm(rel, axis=-1)
    lin = jnp.einsum('zabx,ijx->zabij', rel, w1)
    return lin + w0 + norm[..., None, None] * wn


# ---------------------------------------------------------------------------
# Tiny expanded weight tables (constant, resident in VMEM across grid steps).
# Row index = q*J + j with q in {x, y, z, norm, const}.
# ---------------------------------------------------------------------------
def _stage1_weight_cols(params, n, n_norm):
    """kernel1 weights in stage-1 lane layout: cols[j, k*N + d] = w[j, k]/n_norm."""
    w0, w1, wn = params                                     # (J,K),(J,K,3),(J,K)
    scale = 1.0 / n_norm

    def rep(w_jk):                                          # (J,K) -> (J, K*n)
        return jnp.repeat(w_jk * scale, n, axis=1)

    cols = [rep(w1[:, :, 0]), rep(w1[:, :, 1]), rep(w1[:, :, 2]),
            rep(wn), rep(w0)]
    return jnp.concatenate(cols, axis=0).astype(jnp.float32)    # (5J, K*n)


def _stage2_weight_cols(params, n):
    """kernel2 weights in stage-2 lane layout: cols[j, i*N + a] = w[i, j]."""
    w0, w1, wn = params                                     # (I,J),(I,J,3),(I,J)

    def rep(w_ij):                                          # (I,J) -> (J, I*n)
        return jnp.repeat(w_ij.T, n, axis=1)

    cols = [rep(w1[:, :, 0]), rep(w1[:, :, 1]), rep(w1[:, :, 2]),
            rep(wn), rep(w0)]
    return jnp.concatenate(cols, axis=0).astype(jnp.float32)    # (5J, I*n)


def _vmem_limit_bytes():
    cap = None
    try:
        cap = pltpu.get_tpu_info().vmem_capacity_bytes
    except Exception:
        cap = None
    if not cap:
        cap = 64 * 1024 * 1024
    return int(min(0.75 * cap, 100 * 1024 * 1024))


# ---------------------------------------------------------------------------
# Pallas kernel: one grid step per (batch z, b-tile).
#   stage 0 (bt==0): build K2[j*N+c, i*N+a] on the VPU (reused across b-tiles)
#   stage 1: per j, build K1_j[b, k*N+d] on the VPU, matmul against
#            F^T[k*N+d, c] -> T2 slab t2[b, j*N+c]   (bf16 scratch)
#   stage 2: one deep MXU matmul  out[b, i*N+a] = T2 @ K2   (lane-dense store)
# ---------------------------------------------------------------------------
def _pair_conv_kernel(relbd_ref, relca_ref, ft_ref, w1c_ref, w2c_ref,
                      o_ref, t2_ref, k2_ref):
    # relbd_ref: (1, 4, TB, N) f32   channels {x,y,z,norm}, value = geo[d]-geo[b]
    # relca_ref: (1, 4, N,  N) f32   channels {x,y,z,norm}, value = geo[c]-geo[a]
    # ft_ref   : (1, K*N, N)   bf16  F^T[k*N+d, c]
    # w1c_ref  : (5J, K*N)     f32   expanded kernel1 weights (incl. 1/n_norm)
    # w2c_ref  : (5J, I*N)     f32   expanded kernel2 weights
    # o_ref    : (1, TB, I*N)  bf16  out[b, i*N + a]
    # t2_ref   : (TB, J*N)     bf16  scratch
    # k2_ref   : (J*N, I*N)    bf16  scratch (persists across b-tiles)
    n = relbd_ref.shape[3]                 # number of points (d / c / a dims)
    k_dim = ft_ref.shape[1] // n           # dim(Rs_in)
    i_dim = w2c_ref.shape[1] // n          # dim(Rs_out) of kernel2
    j_dim = w1c_ref.shape[0] // 5          # dim(Rs_out) of kernel1

    # ---- stage 0: K2 build (independent of the b-tile -> build once per z) --
    @pl.when(pl.program_id(1) == 0)
    def _build_k2():
        # rel/norm slabs tiled I times along lanes: col index = i*N + a.
        rel_c = [jnp.concatenate([relca_ref[0, q]] * i_dim, axis=-1)
                 for q in range(4)]                            # 4 x (N, I*N)
        for j in range(j_dim):
            k2_j = (rel_c[0] * w1_row(w2c_ref, 0, j_dim, j)
                    + rel_c[1] * w1_row(w2c_ref, 1, j_dim, j)
                    + rel_c[2] * w1_row(w2c_ref, 2, j_dim, j)
                    + rel_c[3] * w1_row(w2c_ref, 3, j_dim, j)
                    + w1_row(w2c_ref, 4, j_dim, j))            # (N, I*N) f32
            k2_ref[j * n:(j + 1) * n, :] = k2_j.astype(jnp.bfloat16)

    # ---- stage 1: T2 slabs --------------------------------------------------
    # rel/norm slabs tiled K times along lanes: col index = k*N + d.
    rel_b = [jnp.concatenate([relbd_ref[0, q]] * k_dim, axis=-1)
             for q in range(4)]                                # 4 x (TB, K*N)
    ft = ft_ref[0]                                             # (K*N, N) bf16
    for j in range(j_dim):
        k1_j = (rel_b[0] * w1_row(w1c_ref, 0, j_dim, j)
                + rel_b[1] * w1_row(w1c_ref, 1, j_dim, j)
                + rel_b[2] * w1_row(w1c_ref, 2, j_dim, j)
                + rel_b[3] * w1_row(w1c_ref, 3, j_dim, j)
                + w1_row(w1c_ref, 4, j_dim, j))                # (TB, K*N) f32
        t2_ref[:, j * n:(j + 1) * n] = jax.lax.dot_general(
            k1_j.astype(jnp.bfloat16), ft,
            dimension_numbers=(((1,), (0,)), ((), ())),
            preferred_element_type=jnp.float32).astype(jnp.bfloat16)

    # ---- stage 2: one deep MXU contraction over (j, c) ----------------------
    o_ref[0] = jax.lax.dot_general(
        t2_ref[...], k2_ref[...],
        dimension_numbers=(((1,), (0,)), ((), ())),
        preferred_element_type=jnp.float32).astype(o_ref.dtype)


def w1_row(wref, q, j_dim, j):
    """Static (1, width) row slice q*J + j of an expanded weight table."""
    r = q * j_dim + j
    return wref[r:r + 1, :]


@jax.jit
def pair_convolution2(params1, params2, features, geometry, n_norm=1.0):
    """features [Z, c, d, K], geometry [Z, a, 3] -> out [Z, a, b, dim_out]."""
    Z, N, Nd, K = features.shape
    assert features.shape[:2] == geometry.shape[:2], \
        'features size and geometry size should match'
    assert Nd == N
    J = params1[0].shape[0]          # dim(Rs_out) of kernel1
    I = params2[0].shape[0]          # dim(Rs_out) of kernel2
    assert params1[0].shape[1] == K and params2[0].shape[1] == J and I == J

    # rel[z, p, q] = geo[z, q] - geo[z, p]; 4 channels: x, y, z, ||.||.
    rel = geometry[:, None, :, :] - geometry[:, :, None, :]            # (Z,N,N,3)
    norm = jnp.linalg.norm(rel, axis=-1)                               # (Z,N,N)
    rel4_bd = jnp.stack([rel[..., 0], rel[..., 1], rel[..., 2], norm],
                        axis=1)                                        # [z,q,b,d]
    rel4_ca = jnp.swapaxes(rel4_bd, 2, 3)                              # [z,q,c,a]

    # F^T[z, k*N+d, c] = features[z, c, d, k]  (matmul-ready, bf16 on HBM).
    ftT = features.transpose(0, 3, 2, 1).reshape(Z, K * N, N).astype(jnp.bfloat16)

    # Tiny expanded weight tables (K(r) evaluation is fused into the kernel).
    w1cols = _stage1_weight_cols(params1, N, n_norm)                   # (5J, K*N)
    w2cols = _stage2_weight_cols(params2, N)                           # (5J, I*N)

    tb = 128 if N % 128 == 0 else N

    flops = 2 * Z * (J * N * N * (K * N) + N * (J * N) * (I * N))
    bytes_accessed = ((rel4_bd.size + rel4_ca.size + w1cols.size + w2cols.size) * 4
                      + ftT.size * 2 + Z * N * I * N * 2)

    out_mat = pl.pallas_call(
        _pair_conv_kernel,
        out_shape=jax.ShapeDtypeStruct((Z, N, I * N), jnp.bfloat16),
        grid_spec=pltpu.PrefetchScalarGridSpec(
            num_scalar_prefetch=0,
            grid=(Z, N // tb),
            in_specs=[
                pl.BlockSpec((1, 4, tb, N), lambda z, bt: (z, 0, bt, 0)),
                pl.BlockSpec((1, 4, N, N), lambda z, bt: (z, 0, 0, 0)),
                pl.BlockSpec((1, K * N, N), lambda z, bt: (z, 0, 0)),
                pl.BlockSpec((5 * J, K * N), lambda z, bt: (0, 0)),
                pl.BlockSpec((5 * J, I * N), lambda z, bt: (0, 0)),
            ],
            out_specs=pl.BlockSpec((1, tb, I * N), lambda z, bt: (z, bt, 0)),
            scratch_shapes=[
                pltpu.VMEM((tb, J * N), jnp.bfloat16),     # T2
                pltpu.VMEM((J * N, I * N), jnp.bfloat16),  # K2 (reused over bt)
            ]),
        compiler_params=pltpu.CompilerParams(
            dimension_semantics=("parallel", "arbitrary"),
            vmem_limit_bytes=_vmem_limit_bytes()),
        cost_estimate=pl.CostEstimate(flops=flops, transcendentals=0,
                                      bytes_accessed=bytes_accessed),
    )(rel4_bd, rel4_ca, ftT, w1cols, w2cols)

    # out_mat[z, b, i*N + a] -> out[z, a, b, i]  (tiny XLA reshuffle + f32 cast)
    return out_mat.reshape(Z, N, I, N).transpose(0, 3, 1, 2).astype(jnp.float32)


if __name__ == "__main__":
    key = jax.random.PRNGKey(0)
    Z, N, DIM_IN, DIM_OUT = 2, 8, 8, 16
    N_NORM = 2.0

    kf, kg, kp1, kp2 = jax.random.split(key, 4)
    features = jax.random.normal(kf, (Z, N, N, DIM_IN), jnp.float32)
    geometry = jax.random.normal(kg, (Z, N, 3), jnp.float32)
    params1 = make_kernel_params(kp1, DIM_IN, DIM_OUT)    # kernel1: Rs_in  -> Rs_out
    params2 = make_kernel_params(kp2, DIM_OUT, DIM_OUT)   # kernel2: Rs_out -> Rs_out

    out = pair_convolution2(params1, params2, features, geometry, n_norm=N_NORM)
    out = jax.block_until_ready(out)
    assert out.shape == (Z, N, N, DIM_OUT)

    # Pure-JAX f32 reference of the PyTorch forward.
    rel = geometry[:, None, :, :] - geometry[:, :, None, :]
    k1_ref = eval_kernel(params1, rel) / N_NORM
    k2_ref = eval_kernel(params2, rel)
    ref = jnp.einsum('zacij,zbdjk,zcdk->zabi', k2_ref, k1_ref, features,
                     precision=jax.lax.Precision.HIGHEST)

    out_np, ref_np = np.asarray(out), np.asarray(ref)
    # K1/K2/T2/output travel as bf16 (f32 MXU accumulation), so compare against
    # the f32 reference with an output-scale-aware tolerance.
    scale = float(np.max(np.abs(ref_np)))
    np.testing.assert_allclose(out_np, ref_np, rtol=3e-2, atol=3e-2 * scale)
    print("KERNEL_OK")
</pallas_src>

<mosaic_0001>
module attributes {stable_mosaic.version = 11 : i64} {
  func.func @_pair_conv_kernel(%arg0: i32, %arg1: i32, %arg2: memref<1x4x8x8xf32, #tpu.memory_space<vmem>>, %arg3: memref<1x4x8x8xf32, #tpu.memory_space<vmem>>, %arg4: memref<1x64x8xbf16, #tpu.memory_space<vmem>>, %arg5: memref<80x64xf32, #tpu.memory_space<vmem>>, %arg6: memref<80x128xf32, #tpu.memory_space<vmem>>, %arg7: memref<1x8x128xbf16, #tpu.memory_space<vmem>>, %arg8: memref<8x128xbf16, #tpu.memory_space<vmem>>, %arg9: memref<128x128xbf16, #tpu.memory_space<vmem>>) attributes {dimension_semantics = [#tpu.dimension_semantics<parallel>, #tpu.dimension_semantics<arbitrary>], iteration_bounds = array<i64: 2, 1>, scalar_prefetch = 0 : i64, scratch_operands = 2 : i64, tpu.core_type = #tpu.core_type<tc>, window_params = [{transform_indices = @transform_0, window_bounds = array<i64: 1, 4, 8, 8>}, {transform_indices = @transform_1, window_bounds = array<i64: 1, 4, 8, 8>}, {transform_indices = @transform_2, window_bounds = array<i64: 1, 64, 8>}, {pipeline_mode = #tpu.pipeline_mode<synchronous>, transform_indices = @transform_3, window_bounds = array<i64: 80, 64>}, {pipeline_mode = #tpu.pipeline_mode<synchronous>, transform_indices = @transform_4, window_bounds = array<i64: 80, 128>}, {transform_indices = @transform_5, window_bounds = array<i64: 1, 8, 128>}]} {
    %c0_i32 = arith.constant 0 : i32
    %0 = arith.cmpi eq, %arg1, %c0_i32 : i32
    %1 = arith.extui %0 : i1 to i32
    %c0_i32_0 = arith.constant 0 : i32
    %2 = arith.cmpi ne, %1, %c0_i32_0 : i32
    scf.if %2 {
      %c0_149 = arith.constant 0 : index
      %c0_150 = arith.constant 0 : index
      %c0_151 = arith.constant 0 : index
      %c0_152 = arith.constant 0 : index
      %376 = vector.load %arg3[%c0_149, %c0_150, %c0_151, %c0_152] : memref<1x4x8x8xf32, #tpu.memory_space<vmem>>, vector<1x1x8x8xf32>
      %377 = vector.shape_cast %376 : vector<1x1x8x8xf32> to vector<8x8xf32>
      %378 = tpu.concatenate %377, %377, %377, %377, %377, %377, %377, %377, %377, %377, %377, %377, %377, %377, %377, %377 in 1 : vector<8x8xf32>, vector<8x8xf32>, vector<8x8xf32>, vector<8x8xf32>, vector<8x8xf32>, vector<8x8xf32>, vector<8x8xf32>, vector<8x8xf32>, vector<8x8xf32>, vector<8x8xf32>, vector<8x8xf32>, vector<8x8xf32>, vector<8x8xf32>, vector<8x8xf32>, vector<8x8xf32>, vector<8x8xf32> -> vector<8x128xf32>
      %c0_153 = arith.constant 0 : index
      %c1_154 = arith.constant 1 : index
      %c0_155 = arith.constant 0 : index
      %c0_156 = arith.constant 0 : index
      %379 = vector.load %arg3[%c0_153, %c1_154, %c0_155, %c0_156] : memref<1x4x8x8xf32, #tpu.memory_space<vmem>>, vector<1x1x8x8xf32>
      %380 = vector.shape_cast %379 : vector<1x1x8x8xf32> to vector<8x8xf32>
      %381 = tpu.concatenate %380, %380, %380, %380, %380, %380, %380, %380, %380, %380, %380, %380, %380, %380, %380, %380 in 1 : vector<8x8xf32>, vector<8x8xf32>, vector<8x8xf32>, vector<8x8xf32>, vector<8x8xf32>, vector<8x8xf32>, vector<8x8xf32>, vector<8x8xf32>, vector<8x8xf32>, vector<8x8xf32>, vector<8x8xf32>, vector<8x8xf32>, vector<8x8xf32>, vector<8x8xf32>, vector<8x8xf32>, vector<8x8xf32> -> vector<8x128xf32>
      %c0_157 = arith.constant 0 : index
      %c2_158 = arith.constant 2 : index
      %c0_159 = arith.constant 0 : index
      %c0_160 = arith.constant 0 : index
      %382 = vector.load %arg3[%c0_157, %c2_158, %c0_159, %c0_160] : memref<1x4x8x8xf32, #tpu.memory_space<vmem>>, vector<1x1x8x8xf32>
      %383 = vector.shape_cast %382 : vector<1x1x8x8xf32> to vector<8x8xf32>
      %384 = tpu.concatenate %383, %383, %383, %383, %383, %383, %383, %383, %383, %383, %383, %383, %383, %383, %383, %383 in 1 : vector<8x8xf32>, vector<8x8xf32>, vector<8x8xf32>, vector<8x8xf32>, vector<8x8xf32>, vector<8x8xf32>, vector<8x8xf32>, vector<8x8xf32>, vector<8x8xf32>, vector<8x8xf32>, vector<8x8xf32>, vector<8x8xf32>, vector<8x8xf32>, vector<8x8xf32>, vector<8x8xf32>, vector<8x8xf32> -> vector<8x128xf32>
      %c0_161 = arith.constant 0 : index
      %c3_162 = arith.constant 3 : index
      %c0_163 = arith.constant 0 : index
      %c0_164 = arith.constant 0 : index
      %385 = vector.load %arg3[%c0_161, %c3_162, %c0_163, %c0_164] : memref<1x4x8x8xf32, #tpu.memory_space<vmem>>, vector<1x1x8x8xf32>
      %386 = vector.shape_cast %385 : vector<1x1x8x8xf32> to vector<8x8xf32>
      %387 = tpu.concatenate %386, %386, %386, %386, %386, %386, %386, %386, %386, %386, %386, %386, %386, %386, %386, %386 in 1 : vector<8x8xf32>, vector<8x8xf32>, vector<8x8xf32>, vector<8x8xf32>, vector<8x8xf32>, vector<8x8xf32>, vector<8x8xf32>, vector<8x8xf32>, vector<8x8xf32>, vector<8x8xf32>, vector<8x8xf32>, vector<8x8xf32>, vector<8x8xf32>, vector<8x8xf32>, vector<8x8xf32>, vector<8x8xf32> -> vector<8x128xf32>
      %c0_165 = arith.constant 0 : index
      %c0_166 = arith.constant 0 : index
      %388 = vector.load %arg6[%c0_165, %c0_166] : memref<80x128xf32, #tpu.memory_space<vmem>>, vector<1x128xf32>
      %389 = vector.broadcast %388 : vector<1x128xf32> to vector<8x128xf32>
      %390 = arith.mulf %378, %389 : vector<8x128xf32>
      %c16_167 = arith.constant 16 : index
      %c0_168 = arith.constant 0 : index
      %391 = vector.load %arg6[%c16_167, %c0_168] : memref<80x128xf32, #tpu.memory_space<vmem>>, vector<1x128xf32>
      %392 = vector.broadcast %391 : vector<1x128xf32> to vector<8x128xf32>
      %393 = arith.mulf %381, %392 : vector<8x128xf32>
      %394 = arith.addf %390, %393 : vector<8x128xf32>
      %c32_169 = arith.constant 32 : index
      %c0_170 = arith.constant 0 : index
      %395 = vector.load %arg6[%c32_169, %c0_170] : memref<80x128xf32, #tpu.memory_space<vmem>>, vector<1x128xf32>
      %396 = vector.broadcast %395 : vector<1x128xf32> to vector<8x128xf32>
      %397 = arith.mulf %384, %396 : vector<8x128xf32>
      %398 = arith.addf %394, %397 : vector<8x128xf32>
      %c48_171 = arith.constant 48 : index
      %c0_172 = arith.constant 0 : index
      %399 = vector.load %arg6[%c48_171, %c0_172] : memref<80x128xf32, #tpu.memory_space<vmem>>, vector<1x128xf32>
      %400 = vector.broadcast %399 : vector<1x128xf32> to vector<8x128xf32>
      %401 = arith.mulf %387, %400 : vector<8x128xf32>
      %402 = arith.addf %398, %401 : vector<8x128xf32>
      %c64_173 = arith.constant 64 : index
      %c0_174 = arith.constant 0 : index
      %403 = vector.load %arg6[%c64_173, %c0_174] : memref<80x128xf32, #tpu.memory_space<vmem>>, vector<1x128xf32>
      %404 = vector.broadcast %403 : vector<1x128xf32> to vector<8x128xf32>
      %405 = arith.addf %402, %404 : vector<8x128xf32>
      %406 = arith.truncf %405 : vector<8x128xf32> to vector<8x128xbf16>
      %c0_175 = arith.constant 0 : index
      %c0_176 = arith.constant 0 : index
      %407 = vector.load %arg9[%c0_175, %c0_176] : memref<128x128xbf16, #tpu.memory_space<vmem>>, vector<8x128xbf16>
      tpu.vector_store %arg9[%c0_175, %c0_176], %406 {strides = array<i32>} : memref<128x128xbf16, #tpu.memory_space<vmem>>, vector<8x128xbf16>,
      %c1_177 = arith.constant 1 : index
      %c0_178 = arith.constant 0 : index
      %408 = vector.load %arg6[%c1_177, %c0_178] : memref<80x128xf32, #tpu.memory_space<vmem>>, vector<1x128xf32>
      %409 = vector.broadcast %408 : vector<1x128xf32> to vector<8x128xf32>
      %410 = arith.mulf %378, %409 : vector<8x128xf32>
      %c17_179 = arith.constant 17 : index
      %c0_180 = arith.constant 0 : index
      %411 = vector.load %arg6[%c17_179, %c0_180] : memref<80x128xf32, #tpu.memory_space<vmem>>, vector<1x128xf32>
      %412 = vector.broadcast %411 : vector<1x128xf32> to vector<8x128xf32>
      %413 = arith.mulf %381, %412 : vector<8x128xf32>
      %414 = arith.addf %410, %413 : vector<8x128xf32>
      %c33_181 = arith.constant 33 : index
      %c0_182 = arith.constant 0 : index
      %415 = vector.load %arg6[%c33_181, %c0_182] : memref<80x128xf32, #tpu.memory_space<vmem>>, vector<1x128xf32>
      %416 = vector.broadcast %415 : vector<1x128xf32> to vector<8x128xf32>
      %417 = arith.mulf %384, %416 : vector<8x128xf32>
      %418 = arith.addf %414, %417 : vector<8x128xf32>
      %c49_183 = arith.constant 49 : index
      %c0_184 = arith.constant 0 : index
      %419 = vector.load %arg6[%c49_183, %c0_184] : memref<80x128xf32, #tpu.memory_space<vmem>>, vector<1x128xf32>
      %420 = vector.broadcast %419 : vector<1x128xf32> to vector<8x128xf32>
      %421 = arith.mulf %387, %420 : vector<8x128xf32>
      %422 = arith.addf %418, %421 : vector<8x128xf32>
      %c65_185 = arith.constant 65 : index
      %c0_186 = arith.constant 0 : index
      %423 = vector.load %arg6[%c65_185, %c0_186] : memref<80x128xf32, #tpu.memory_space<vmem>>, vector<1x128xf32>
      %424 = vector.broadcast %423 : vector<1x128xf32> to vector<8x128xf32>
      %425 = arith.addf %422, %424 : vector<8x128xf32>
      %426 = arith.truncf %425 : vector<8x128xf32> to vector<8x128xbf16>
      %c8_187 = arith.constant 8 : index
      %c0_188 = arith.constant 0 : index
      %427 = vector.load %arg9[%c8_187, %c0_188] : memref<128x128xbf16, #tpu.memory_space<vmem>>, vector<8x128xbf16>
      tpu.vector_store %arg9[%c8_187, %c0_188], %426 {strides = array<i32>} : memref<128x128xbf16, #tpu.memory_space<vmem>>, vector<8x128xbf16>,
      %c2_189 = arith.constant 2 : index
      %c0_190 = arith.constant 0 : index
      %428 = vector.load %arg6[%c2_189, %c0_190] : memref<80x128xf32, #tpu.memory_space<vmem>>, vector<1x128xf32>
      %429 = vector.broadcast %428 : vector<1x128xf32> to vector<8x128xf32>
      %430 = arith.mulf %378, %429 : vector<8x128xf32>
      %c18_191 = arith.constant 18 : index
      %c0_192 = arith.constant 0 : index
      %431 = vector.load %arg6[%c18_191, %c0_192] : memref<80x128xf32, #tpu.memory_space<vmem>>, vector<1x128xf32>
      %432 = vector.broadcast %431 : vector<1x128xf32> to vector<8x128xf32>
      %433 = arith.mulf %381, %432 : vector<8x128xf32>
      %434 = arith.addf %430, %433 : vector<8x128xf32>
      %c34_193 = arith.constant 34 : index
      %c0_194 = arith.constant 0 : index
      %435 = vector.load %arg6[%c34_193, %c0_194] : memref<80x128xf32, #tpu.memory_space<vmem>>, vector<1x128xf32>
      %436 = vector.broadcast %435 : vector<1x128xf32> to vector<8x128xf32>
      %437 = arith.mulf %384, %436 : vector<8x128xf32>
      %438 = arith.addf %434, %437 : vector<8x128xf32>
      %c50_195 = arith.constant 50 : index
      %c0_196 = arith.constant 0 : index
      %439 = vector.load %arg6[%c50_195, %c0_196] : memref<80x128xf32, #tpu.memory_space<vmem>>, vector<1x128xf32>
      %440 = vector.broadcast %439 : vector<1x128xf32> to vector<8x128xf32>
      %441 = arith.mulf %387, %440 : vector<8x128xf32>
      %442 = arith.addf %438, %441 : vector<8x128xf32>
      %c66_197 = arith.constant 66 : index
      %c0_198 = arith.constant 0 : index
      %443 = vector.load %arg6[%c66_197, %c0_198] : memref<80x128xf32, #tpu.memory_space<vmem>>, vector<1x128xf32>
      %444 = vector.broadcast %443 : vector<1x128xf32> to vector<8x128xf32>
      %445 = arith.addf %442, %444 : vector<8x128xf32>
      %446 = arith.truncf %445 : vector<8x128xf32> to vector<8x128xbf16>
      %c16_199 = arith.constant 16 : index
      %c0_200 = arith.constant 0 : index
      %447 = vector.load %arg9[%c16_199, %c0_200] : memref<128x128xbf16, #tpu.memory_space<vmem>>, vector<8x128xbf16>
      tpu.vector_store %arg9[%c16_199, %c0_200], %446 {strides = array<i32>} : memref<128x128xbf16, #tpu.memory_space<vmem>>, vector<8x128xbf16>,
      %c3_201 = arith.constant 3 : index
      %c0_202 = arith.constant 0 : index
      %448 = vector.load %arg6[%c3_201, %c0_202] : memref<80x128xf32, #tpu.memory_space<vmem>>, vector<1x128xf32>
      %449 = vector.broadcast %448 : vector<1x128xf32> to vector<8x128xf32>
      %450 = arith.mulf %378, %449 : vector<8x128xf32>
      %c19_203 = arith.constant 19 : index
      %c0_204 = arith.constant 0 : index
      %451 = vector.load %arg6[%c19_203, %c0_204] : memref<80x128xf32, #tpu.memory_space<vmem>>, vector<1x128xf32>
      %452 = vector.broadcast %451 : vector<1x128xf32> to vector<8x128xf32>
      %453 = arith.mulf %381, %452 : vector<8x128xf32>
      %454 = arith.addf %450, %453 : vector<8x128xf32>
      %c35_205 = arith.constant 35 : index
      %c0_206 = arith.constant 0 : index
      %455 = vector.load %arg6[%c35_205, %c0_206] : memref<80x128xf32, #tpu.memory_space<vmem>>, vector<1x128xf32>
      %456 = vector.broadcast %455 : vector<1x128xf32> to vector<8x128xf32>
      %457 = arith.mulf %384, %456 : vector<8x128xf32>
      %458 = arith.addf %454, %457 : vector<8x128xf32>
      %c51_207 = arith.constant 51 : index
      %c0_208 = arith.constant 0 : index
      %459 = vector.load %arg6[%c51_207, %c0_208] : memref<80x128xf32, #tpu.memory_space<vmem>>, vector<1x128xf32>
      %460 = vector.broadcast %459 : vector<1x128xf32> to vector<8x128xf32>
      %461 = arith.mulf %387, %460 : vector<8x128xf32>
      %462 = arith.addf %458, %461 : vector<8x128xf32>
      %c67_209 = arith.constant 67 : index
      %c0_210 = arith.constant 0 : index
      %463 = vector.load %arg6[%c67_209, %c0_210] : memref<80x128xf32, #tpu.memory_space<vmem>>, vector<1x128xf32>
      %464 = vector.broadcast %463 : vector<1x128xf32> to vector<8x128xf32>
      %465 = arith.addf %462, %464 : vector<8x128xf32>
      %466 = arith.truncf %465 : vector<8x128xf32> to vector<8x128xbf16>
      %c24_211 = arith.constant 24 : index
      %c0_212 = arith.constant 0 : index
      %467 = vector.load %arg9[%c24_211, %c0_212] : memref<128x128xbf16, #tpu.memory_space<vmem>>, vector<8x128xbf16>
      tpu.vector_store %arg9[%c24_211, %c0_212], %466 {strides = array<i32>} : memref<128x128xbf16, #tpu.memory_space<vmem>>, vector<8x128xbf16>,
      %c4_213 = arith.constant 4 : index
      %c0_214 = arith.constant 0 : index
      %468 = vector.load %arg6[%c4_213, %c0_214] : memref<80x128xf32, #tpu.memory_space<vmem>>, vector<1x128xf32>
      %469 = vector.broadcast %468 : vector<1x128xf32> to vector<8x128xf32>
      %470 = arith.mulf %378, %469 : vector<8x128xf32>
      %c20_215 = arith.constant 20 : index
      %c0_216 = arith.constant 0 : index
      %471 = vector.load %arg6[%c20_215, %c0_216] : memref<80x128xf32, #tpu.memory_space<vmem>>, vector<1x128xf32>
      %472 = vector.broadcast %471 : vector<1x128xf32> to vector<8x128xf32>
      %473 = arith.mulf %381, %472 : vector<8x128xf32>
      %474 = arith.addf %470, %473 : vector<8x128xf32>
      %c36_217 = arith.constant 36 : index
      %c0_218 = arith.constant 0 : index
      %475 = vector.load %arg6[%c36_217, %c0_218] : memref<80x128xf32, #tpu.memory_space<vmem>>, vector<1x128xf32>
      %476 = vector.broadcast %475 : vector<1x128xf32> to vector<8x128xf32>
      %477 = arith.mulf %384, %476 : vector<8x128xf32>
      %478 = arith.addf %474, %477 : vector<8x128xf32>
      %c52_219 = arith.constant 52 : index
      %c0_220 = arith.constant 0 : index
      %479 = vector.load %arg6[%c52_219, %c0_220] : memref<80x128xf32, #tpu.memory_space<vmem>>, vector<1x128xf32>
      %480 = vector.broadcast %479 : vector<1x128xf32> to vector<8x128xf32>
      %481 = arith.mulf %387, %480 : vector<8x128xf32>
      %482 = arith.addf %478, %481 : vector<8x128xf32>
      %c68_221 = arith.constant 68 : index
      %c0_222 = arith.constant 0 : index
      %483 = vector.load %arg6[%c68_221, %c0_222] : memref<80x128xf32, #tpu.memory_space<vmem>>, vector<1x128xf32>
      %484 = vector.broadcast %483 : vector<1x128xf32> to vector<8x128xf32>
      %485 = arith.addf %482, %484 : vector<8x128xf32>
      %486 = arith.truncf %485 : vector<8x128xf32> to vector<8x128xbf16>
      %c32_223 = arith.constant 32 : index
      %c0_224 = arith.constant 0 : index
      %487 = vector.load %arg9[%c32_223, %c0_224] : memref<128x128xbf16, #tpu.memory_space<vmem>>, vector<8x128xbf16>
      tpu.vector_store %arg9[%c32_223, %c0_224], %486 {strides = array<i32>} : memref<128x128xbf16, #tpu.memory_space<vmem>>, vector<8x128xbf16>,
      %c5_225 = arith.constant 5 : index
      %c0_226 = arith.constant 0 : index
      %488 = vector.load %arg6[%c5_225, %c0_226] : memref<80x128xf32, #tpu.memory_space<vmem>>, vector<1x128xf32>
      %489 = vector.broadcast %488 : vector<1x128xf32> to vector<8x128xf32>
      %490 = arith.mulf %378, %489 : vector<8x128xf32>
      %c21_227 = arith.constant 21 : index
      %c0_228 = arith.constant 0 : index
      %491 = vector.load %arg6[%c21_227, %c0_228] : memref<80x128xf32, #tpu.memory_space<vmem>>, vector<1x128xf32>
      %492 = vector.broadcast %491 : vector<1x128xf32> to vector<8x128xf32>
      %493 = arith.mulf %381, %492 : vector<8x128xf32>
      %494 = arith.addf %490, %493 : vector<8x128xf32>
      %c37_229 = arith.constant 37 : index
      %c0_230 = arith.constant 0 : index
      %495 = vector.load %arg6[%c37_229, %c0_230] : memref<80x128xf32, #tpu.memory_space<vmem>>, vector<1x128xf32>
      %496 = vector.broadcast %495 : vector<1x128xf32> to vector<8x128xf32>
      %497 = arith.mulf %384, %496 : vector<8x128xf32>
      %498 = arith.addf %494, %497 : vector<8x128xf32>
      %c53_231 = arith.constant 53 : index
      %c0_232 = arith.constant 0 : index
      %499 = vector.load %arg6[%c53_231, %c0_232] : memref<80x128xf32, #tpu.memory_space<vmem>>, vector<1x128xf32>
      %500 = vector.broadcast %499 : vector<1x128xf32> to vector<8x128xf32>
      %501 = arith.mulf %387, %500 : vector<8x128xf32>
      %502 = arith.addf %498, %501 : vector<8x128xf32>
      %c69_233 = arith.constant 69 : index
      %c0_234 = arith.constant 0 : index
      %503 = vector.load %arg6[%c69_233, %c0_234] : memref<80x128xf32, #tpu.memory_space<vmem>>, vector<1x128xf32>
      %504 = vector.broadcast %503 : vector<1x128xf32> to vector<8x128xf32>
      %505 = arith.addf %502, %504 : vector<8x128xf32>
      %506 = arith.truncf %505 : vector<8x128xf32> to vector<8x128xbf16>
      %c40_235 = arith.constant 40 : index
      %c0_236 = arith.constant 0 : index
      %507 = vector.load %arg9[%c40_235, %c0_236] : memref<128x128xbf16, #tpu.memory_space<vmem>>, vector<8x128xbf16>
      tpu.vector_store %arg9[%c40_235, %c0_236], %506 {strides = array<i32>} : memref<128x128xbf16, #tpu.memory_space<vmem>>, vector<8x128xbf16>,
      %c6_237 = arith.constant 6 : index
      %c0_238 = arith.constant 0 : index
      %508 = vector.load %arg6[%c6_237, %c0_238] : memref<80x128xf32, #tpu.memory_space<vmem>>, vector<1x128xf32>
      %509 = vector.broadcast %508 : vector<1x128xf32> to vector<8x128xf32>
      %510 = arith.mulf %378, %509 : vector<8x128xf32>
      %c22_239 = arith.constant 22 : index
      %c0_240 = arith.constant 0 : index
      %511 = vector.load %arg6[%c22_239, %c0_240] : memref<80x128xf32, #tpu.memory_space<vmem>>, vector<1x128xf32>
      %512 = vector.broadcast %511 : vector<1x128xf32> to vector<8x128xf32>
      %513 = arith.mulf %381, %512 : vector<8x128xf32>
      %514 = arith.addf %510, %513 : vector<8x128xf32>
      %c38_241 = arith.constant 38 : index
      %c0_242 = arith.constant 0 : index
      %515 = vector.load %arg6[%c38_241, %c0_242] : memref<80x128xf32, #tpu.memory_space<vmem>>, vector<1x128xf32>
      %516 = vector.broadcast %515 : vector<1x128xf32> to vector<8x128xf32>
      %517 = arith.mulf %384, %516 : vector<8x128xf32>
      %518 = arith.addf %514, %517 : vector<8x128xf32>
      %c54_243 = arith.constant 54 : index
      %c0_244 = arith.constant 0 : index
      %519 = vector.load %arg6[%c54_243, %c0_244] : memref<80x128xf32, #tpu.memory_space<vmem>>, vector<1x128xf32>
      %520 = vector.broadcast %519 : vector<1x128xf32> to vector<8x128xf32>
      %521 = arith.mulf %387, %520 : vector<8x128xf32>
      %522 = arith.addf %518, %521 : vector<8x128xf32>
      %c70_245 = arith.constant 70 : index
      %c0_246 = arith.constant 0 : index
      %523 = vector.load %arg6[%c70_245, %c0_246] : memref<80x128xf32, #tpu.memory_space<vmem>>, vector<1x128xf32>
      %524 = vector.broadcast %523 : vector<1x128xf32> to vector<8x128xf32>
      %525 = arith.addf %522, %524 : vector<8x128xf32>
      %526 = arith.truncf %525 : vector<8x128xf32> to vector<8x128xbf16>
      %c48_247 = arith.constant 48 : index
      %c0_248 = arith.constant 0 : index
      %527 = vector.load %arg9[%c48_247, %c0_248] : memref<128x128xbf16, #tpu.memory_space<vmem>>, vector<8x128xbf16>
      tpu.vector_store %arg9[%c48_247, %c0_248], %526 {strides = array<i32>} : memref<128x128xbf16, #tpu.memory_space<vmem>>, vector<8x128xbf16>,
      %c7_249 = arith.constant 7 : index
      %c0_250 = arith.constant 0 : index
      %528 = vector.load %arg6[%c7_249, %c0_250] : memref<80x128xf32, #tpu.memory_space<vmem>>, vector<1x128xf32>
      %529 = vector.broadcast %528 : vector<1x128xf32> to vector<8x128xf32>
      %530 = arith.mulf %378, %529 : vector<8x128xf32>
      %c23_251 = arith.constant 23 : index
      %c0_252 = arith.constant 0 : index
      %531 = vector.load %arg6[%c23_251, %c0_252] : memref<80x128xf32, #tpu.memory_space<vmem>>, vector<1x128xf32>
      %532 = vector.broadcast %531 : vector<1x128xf32> to vector<8x128xf32>
      %533 = arith.mulf %381, %532 : vector<8x128xf32>
      %534 = arith.addf %530, %533 : vector<8x128xf32>
      %c39_253 = arith.constant 39 : index
      %c0_254 = arith.constant 0 : index
      %535 = vector.load %arg6[%c39_253, %c0_254] : memref<80x128xf32, #tpu.memory_space<vmem>>, vector<1x128xf32>
      %536 = vector.broadcast %535 : vector<1x128xf32> to vector<8x128xf32>
      %537 = arith.mulf %384, %536 : vector<8x128xf32>
      %538 = arith.addf %534, %537 : vector<8x128xf32>
      %c55_255 = arith.constant 55 : index
      %c0_256 = arith.constant 0 : index
      %539 = vector.load %arg6[%c55_255, %c0_256] : memref<80x128xf32, #tpu.memory_space<vmem>>, vector<1x128xf32>
      %540 = vector.broadcast %539 : vector<1x128xf32> to vector<8x128xf32>
      %541 = arith.mulf %387, %540 : vector<8x128xf32>
      %542 = arith.addf %538, %541 : vector<8x128xf32>
      %c71_257 = arith.constant 71 : index
      %c0_258 = arith.constant 0 : index
      %543 = vector.load %arg6[%c71_257, %c0_258] : memref<80x128xf32, #tpu.memory_space<vmem>>, vector<1x128xf32>
      %544 = vector.broadcast %543 : vector<1x128xf32> to vector<8x128xf32>
      %545 = arith.addf %542, %544 : vector<8x128xf32>
      %546 = arith.truncf %545 : vector<8x128xf32> to vector<8x128xbf16>
      %c56_259 = arith.constant 56 : index
      %c0_260 = arith.constant 0 : index
      %547 = vector.load %arg9[%c56_259, %c0_260] : memref<128x128xbf16, #tpu.memory_space<vmem>>, vector<8x128xbf16>
      tpu.vector_store %arg9[%c56_259, %c0_260], %546 {strides = array<i32>} : memref<128x128xbf16, #tpu.memory_space<vmem>>, vector<8x128xbf16>,
      %c8_261 = arith.constant 8 : index
      %c0_262 = arith.constant 0 : index
      %548 = vector.load %arg6[%c8_261, %c0_262] : memref<80x128xf32, #tpu.memory_space<vmem>>, vector<1x128xf32>
      %549 = vector.broadcast %548 : vector<1x128xf32> to vector<8x128xf32>
      %550 = arith.mulf %378, %549 : vector<8x128xf32>
      %c24_263 = arith.constant 24 : index
      %c0_264 = arith.constant 0 : index
      %551 = vector.load %arg6[%c24_263, %c0_264] : memref<80x128xf32, #tpu.memory_space<vmem>>, vector<1x128xf32>
      %552 = vector.broadcast %551 : vector<1x128xf32> to vector<8x128xf32>
      %553 = arith.mulf %381, %552 : vector<8x128xf32>
      %554 = arith.addf %550, %553 : vector<8x128xf32>
      %c40_265 = arith.constant 40 : index
      %c0_266 = arith.constant 0 : index
      %555 = vector.load %arg6[%c40_265, %c0_266] : memref<80x128xf32, #tpu.memory_space<vmem>>, vector<1x128xf32>
      %556 = vector.broadcast %555 : vector<1x128xf32> to vector<8x128xf32>
      %557 = arith.mulf %384, %556 : vector<8x128xf32>
      %558 = arith.addf %554, %557 : vector<8x128xf32>
      %c56_267 = arith.constant 56 : index
      %c0_268 = arith.constant 0 : index
      %559 = vector.load %arg6[%c56_267, %c0_268] : memref<80x128xf32, #tpu.memory_space<vmem>>, vector<1x128xf32>
      %560 = vector.broadcast %559 : vector<1x128xf32> to vector<8x128xf32>
      %561 = arith.mulf %387, %560 : vector<8x128xf32>
      %562 = arith.addf %558, %561 : vector<8x128xf32>
      %c72_269 = arith.constant 72 : index
      %c0_270 = arith.constant 0 : index
      %563 = vector.load %arg6[%c72_269, %c0_270] : memref<80x128xf32, #tpu.memory_space<vmem>>, vector<1x128xf32>
      %564 = vector.broadcast %563 : vector<1x128xf32> to vector<8x128xf32>
      %565 = arith.addf %562, %564 : vector<8x128xf32>
      %566 = arith.truncf %565 : vector<8x128xf32> to vector<8x128xbf16>
      %c64_271 = arith.constant 64 : index
      %c0_272 = arith.constant 0 : index
      %567 = vector.load %arg9[%c64_271, %c0_272] : memref<128x128xbf16, #tpu.memory_space<vmem>>, vector<8x128xbf16>
      tpu.vector_store %arg9[%c64_271, %c0_272], %566 {strides = array<i32>} : memref<128x128xbf16, #tpu.memory_space<vmem>>, vector<8x128xbf16>,
      %c9_273 = arith.constant 9 : index
      %c0_274 = arith.constant 0 : index
      %568 = vector.load %arg6[%c9_273, %c0_274] : memref<80x128xf32, #tpu.memory_space<vmem>>, vector<1x128xf32>
      %569 = vector.broadcast %568 : vector<1x128xf32> to vector<8x128xf32>
      %570 = arith.mulf %378, %569 : vector<8x128xf32>
      %c25_275 = arith.constant 25 : index
      %c0_276 = arith.constant 0 : index
      %571 = vector.load %arg6[%c25_275, %c0_276] : memref<80x128xf32, #tpu.memory_space<vmem>>, vector<1x128xf32>
      %572 = vector.broadcast %571 : vector<1x128xf32> to vector<8x128xf32>
      %573 = arith.mulf %381, %572 : vector<8x128xf32>
      %574 = arith.addf %570, %573 : vector<8x128xf32>
      %c41_277 = arith.constant 41 : index
      %c0_278 = arith.constant 0 : index
      %575 = vector.load %arg6[%c41_277, %c0_278] : memref<80x128xf32, #tpu.memory_space<vmem>>, vector<1x128xf32>
      %576 = vector.broadcast %575 : vector<1x128xf32> to vector<8x128xf32>
      %577 = arith.mulf %384, %576 : vector<8x128xf32>
      %578 = arith.addf %574, %577 : vector<8x128xf32>
      %c57_279 = arith.constant 57 : index
      %c0_280 = arith.constant 0 : index
      %579 = vector.load %arg6[%c57_279, %c0_280] : memref<80x128xf32, #tpu.memory_space<vmem>>, vector<1x128xf32>
      %580 = vector.broadcast %579 : vector<1x128xf32> to vector<8x128xf32>
      %581 = arith.mulf %387, %580 : vector<8x128xf32>
      %582 = arith.addf %578, %581 : vector<8x128xf32>
      %c73_281 = arith.constant 73 : index
      %c0_282 = arith.constant 0 : index
      %583 = vector.load %arg6[%c73_281, %c0_282] : memref<80x128xf32, #tpu.memory_space<vmem>>, vector<1x128xf32>
      %584 = vector.broadcast %583 : vector<1x128xf32> to vector<8x128xf32>
      %585 = arith.addf %582, %584 : vector<8x128xf32>
      %586 = arith.truncf %585 : vector<8x128xf32> to vector<8x128xbf16>
      %c72_283 = arith.constant 72 : index
      %c0_284 = arith.constant 0 : index
      %587 = vector.load %arg9[%c72_283, %c0_284] : memref<128x128xbf16, #tpu.memory_space<vmem>>, vector<8x128xbf16>
      tpu.vector_store %arg9[%c72_283, %c0_284], %586 {strides = array<i32>} : memref<128x128xbf16, #tpu.memory_space<vmem>>, vector<8x128xbf16>,
      %c10_285 = arith.constant 10 : index
      %c0_286 = arith.constant 0 : index
      %588 = vector.load %arg6[%c10_285, %c0_286] : memref<80x128xf32, #tpu.memory_space<vmem>>, vector<1x128xf32>
      %589 = vector.broadcast %588 : vector<1x128xf32> to vector<8x128xf32>
      %590 = arith.mulf %378, %589 : vector<8x128xf32>
      %c26_287 = arith.constant 26 : index
      %c0_288 = arith.constant 0 : index
      %591 = vector.load %arg6[%c26_287, %c0_288] : memref<80x128xf32, #tpu.memory_space<vmem>>, vector<1x128xf32>
      %592 = vector.broadcast %591 : vector<1x128xf32> to vector<8x128xf32>
      %593 = arith.mulf %381, %592 : vector<8x128xf32>
      %594 = arith.addf %590, %593 : vector<8x128xf32>
      %c42_289 = arith.constant 42 : index
      %c0_290 = arith.constant 0 : index
      %595 = vector.load %arg6[%c42_289, %c0_290] : memref<80x128xf32, #tpu.memory_space<vmem>>, vector<1x128xf32>
      %596 = vector.broadcast %595 : vector<1x128xf32> to vector<8x128xf32>
      %597 = arith.mulf %384, %596 : vector<8x128xf32>
      %598 = arith.addf %594, %597 : vector<8x128xf32>
      %c58_291 = arith.constant 58 : index
      %c0_292 = arith.constant 0 : index
      %599 = vector.load %arg6[%c58_291, %c0_292] : memref<80x128xf32, #tpu.memory_space<vmem>>, vector<1x128xf32>
      %600 = vector.broadcast %599 : vector<1x128xf32> to vector<8x128xf32>
      %601 = arith.mulf %387, %600 : vector<8x128xf32>
      %602 = arith.addf %598, %601 : vector<8x128xf32>
      %c74_293 = arith.constant 74 : index
      %c0_294 = arith.constant 0 : index
      %603 = vector.load %arg6[%c74_293, %c0_294] : memref<80x128xf32, #tpu.memory_space<vmem>>, vector<1x128xf32>
      %604 = vector.broadcast %603 : vector<1x128xf32> to vector<8x128xf32>
      %605 = arith.addf %602, %604 : vector<8x128xf32>
      %606 = arith.truncf %605 : vector<8x128xf32> to vector<8x128xbf16>
      %c80_295 = arith.constant 80 : index
      %c0_296 = arith.constant 0 : index
      %607 = vector.load %arg9[%c80_295, %c0_296] : memref<128x128xbf16, #tpu.memory_space<vmem>>, vector<8x128xbf16>
      tpu.vector_store %arg9[%c80_295, %c0_296], %606 {strides = array<i32>} : memref<128x128xbf16, #tpu.memory_space<vmem>>, vector<8x128xbf16>,
      %c11_297 = arith.constant 11 : index
      %c0_298 = arith.constant 0 : index
      %608 = vector.load %arg6[%c11_297, %c0_298] : memref<80x128xf32, #tpu.memory_space<vmem>>, vector<1x128xf32>
      %609 = vector.broadcast %608 : vector<1x128xf32> to vector<8x128xf32>
      %610 = arith.mulf %378, %609 : vector<8x128xf32>
      %c27_299 = arith.constant 27 : index
      %c0_300 = arith.constant 0 : index
      %611 = vector.load %arg6[%c27_299, %c0_300] : memref<80x128xf32, #tpu.memory_space<vmem>>, vector<1x128xf32>
      %612 = vector.broadcast %611 : vector<1x128xf32> to vector<8x128xf32>
      %613 = arith.mulf %381, %612 : vector<8x128xf32>
      %614 = arith.addf %610, %613 : vector<8x128xf32>
      %c43_301 = arith.constant 43 : index
      %c0_302 = arith.constant 0 : index
      %615 = vector.load %arg6[%c43_301, %c0_302] : memref<80x128xf32, #tpu.memory_space<vmem>>, vector<1x128xf32>
      %616 = vector.broadcast %615 : vector<1x128xf32> to vector<8x128xf32>
      %617 = arith.mulf %384, %616 : vector<8x128xf32>
      %618 = arith.addf %614, %617 : vector<8x128xf32>
      %c59_303 = arith.constant 59 : index
      %c0_304 = arith.constant 0 : index
      %619 = vector.load %arg6[%c59_303, %c0_304] : memref<80x128xf32, #tpu.memory_space<vmem>>, vector<1x128xf32>
      %620 = vector.broadcast %619 : vector<1x128xf32> to vector<8x128xf32>
      %621 = arith.mulf %387, %620 : vector<8x128xf32>
      %622 = arith.addf %618, %621 : vector<8x128xf32>
      %c75_305 = arith.constant 75 : index
      %c0_306 = arith.constant 0 : index
      %623 = vector.load %arg6[%c75_305, %c0_306] : memref<80x128xf32, #tpu.memory_space<vmem>>, vector<1x128xf32>
      %624 = vector.broadcast %623 : vector<1x128xf32> to vector<8x128xf32>
      %625 = arith.addf %622, %624 : vector<8x128xf32>
      %626 = arith.truncf %625 : vector<8x128xf32> to vector<8x128xbf16>
      %c88_307 = arith.constant 88 : index
      %c0_308 = arith.constant 0 : index
      %627 = vector.load %arg9[%c88_307, %c0_308] : memref<128x128xbf16, #tpu.memory_space<vmem>>, vector<8x128xbf16>
      tpu.vector_store %arg9[%c88_307, %c0_308], %626 {strides = array<i32>} : memref<128x128xbf16, #tpu.memory_space<vmem>>, vector<8x128xbf16>,
      %c12_309 = arith.constant 12 : index
      %c0_310 = arith.constant 0 : index
      %628 = vector.load %arg6[%c12_309, %c0_310] : memref<80x128xf32, #tpu.memory_space<vmem>>, vector<1x128xf32>
      %629 = vector.broadcast %628 : vector<1x128xf32> to vector<8x128xf32>
      %630 = arith.mulf %378, %629 : vector<8x128xf32>
      %c28_311 = arith.constant 28 : index
      %c0_312 = arith.constant 0 : index
      %631 = vector.load %arg6[%c28_311, %c0_312] : memref<80x128xf32, #tpu.memory_space<vmem>>, vector<1x128xf32>
      %632 = vector.broadcast %631 : vector<1x128xf32> to vector<8x128xf32>
      %633 = arith.mulf %381, %632 : vector<8x128xf32>
      %634 = arith.addf %630, %633 : vector<8x128xf32>
      %c44_313 = arith.constant 44 : index
      %c0_314 = arith.constant 0 : index
      %635 = vector.load %arg6[%c44_313, %c0_314] : memref<80x128xf32, #tpu.memory_space<vmem>>, vector<1x128xf32>
      %636 = vector.broadcast %635 : vector<1x128xf32> to vector<8x128xf32>
      %637 = arith.mulf %384, %636 : vector<8x128xf32>
      %638 = arith.addf %634, %637 : vector<8x128xf32>
      %c60_315 = arith.constant 60 : index
      %c0_316 = arith.constant 0 : index
      %639 = vector.load %arg6[%c60_315, %c0_316] : memref<80x128xf32, #tpu.memory_space<vmem>>, vector<1x128xf32>
      %640 = vector.broadcast %639 : vector<1x128xf32> to vector<8x128xf32>
      %641 = arith.mulf %387, %640 : vector<8x128xf32>
      %642 = arith.addf %638, %641 : vector<8x128xf32>
      %c76_317 = arith.constant 76 : index
      %c0_318 = arith.constant 0 : index
      %643 = vector.load %arg6[%c76_317, %c0_318] : memref<80x128xf32, #tpu.memory_space<vmem>>, vector<1x128xf32>
      %644 = vector.broadcast %643 : vector<1x128xf32> to vector<8x128xf32>
      %645 = arith.addf %642, %644 : vector<8x128xf32>
      %646 = arith.truncf %645 : vector<8x128xf32> to vector<8x128xbf16>
      %c96_319 = arith.constant 96 : index
      %c0_320 = arith.constant 0 : index
      %647 = vector.load %arg9[%c96_319, %c0_320] : memref<128x128xbf16, #tpu.memory_space<vmem>>, vector<8x128xbf16>
      tpu.vector_store %arg9[%c96_319, %c0_320], %646 {strides = array<i32>} : memref<128x128xbf16, #tpu.memory_space<vmem>>, vector<8x128xbf16>,
      %c13_321 = arith.constant 13 : index
      %c0_322 = arith.constant 0 : index
      %648 = vector.load %arg6[%c13_321, %c0_322] : memref<80x128xf32, #tpu.memory_space<vmem>>, vector<1x128xf32>
      %649 = vector.broadcast %648 : vector<1x128xf32> to vector<8x128xf32>
      %650 = arith.mulf %378, %649 : vector<8x128xf32>
      %c29_323 = arith.constant 29 : index
      %c0_324 = arith.constant 0 : index
      %651 = vector.load %arg6[%c29_323, %c0_324] : memref<80x128xf32, #tpu.memory_space<vmem>>, vector<1x128xf32>
      %652 = vector.broadcast %651 : vector<1x128xf32> to vector<8x128xf32>
      %653 = arith.mulf %381, %652 : vector<8x128xf32>
      %654 = arith.addf %650, %653 : vector<8x128xf32>
      %c45_325 = arith.constant 45 : index
      %c0_326 = arith.constant 0 : index
      %655 = vector.load %arg6[%c45_325, %c0_326] : memref<80x128xf32, #tpu.memory_space<vmem>>, vector<1x128xf32>
      %656 = vector.broadcast %655 : vector<1x128xf32> to vector<8x128xf32>
      %657 = arith.mulf %384, %656 : vector<8x128xf32>
      %658 = arith.addf %654, %657 : vector<8x128xf32>
      %c61_327 = arith.constant 61 : index
      %c0_328 = arith.constant 0 : index
      %659 = vector.load %arg6[%c61_327, %c0_328] : memref<80x128xf32, #tpu.memory_space<vmem>>, vector<1x128xf32>
      %660 = vector.broadcast %659 : vector<1x128xf32> to vector<8x128xf32>
      %661 = arith.mulf %387, %660 : vector<8x128xf32>
      %662 = arith.addf %658, %661 : vector<8x128xf32>
      %c77_329 = arith.constant 77 : index
      %c0_330 = arith.constant 0 : index
      %663 = vector.load %arg6[%c77_329, %c0_330] : memref<80x128xf32, #tpu.memory_space<vmem>>, vector<1x128xf32>
      %664 = vector.broadcast %663 : vector<1x128xf32> to vector<8x128xf32>
      %665 = arith.addf %662, %664 : vector<8x128xf32>
      %666 = arith.truncf %665 : vector<8x128xf32> to vector<8x128xbf16>
      %c104_331 = arith.constant 104 : index
      %c0_332 = arith.constant 0 : index
      %667 = vector.load %arg9[%c104_331, %c0_332] : memref<128x128xbf16, #tpu.memory_space<vmem>>, vector<8x128xbf16>
      tpu.vector_store %arg9[%c104_331, %c0_332], %666 {strides = array<i32>} : memref<128x128xbf16, #tpu.memory_space<vmem>>, vector<8x128xbf16>,
      %c14_333 = arith.constant 14 : index
      %c0_334 = arith.constant 0 : index
      %668 = vector.load %arg6[%c14_333, %c0_334] : memref<80x128xf32, #tpu.memory_space<vmem>>, vector<1x128xf32>
      %669 = vector.broadcast %668 : vector<1x128xf32> to vector<8x128xf32>
      %670 = arith.mulf %378, %669 : vector<8x128xf32>
      %c30_335 = arith.constant 30 : index
      %c0_336 = arith.constant 0 : index
      %671 = vector.load %arg6[%c30_335, %c0_336] : memref<80x128xf32, #tpu.memory_space<vmem>>, vector<1x128xf32>
      %672 = vector.broadcast %671 : vector<1x128xf32> to vector<8x128xf32>
      %673 = arith.mulf %381, %672 : vector<8x128xf32>
      %674 = arith.addf %670, %673 : vector<8x128xf32>
      %c46_337 = arith.constant 46 : index
      %c0_338 = arith.constant 0 : index
      %675 = vector.load %arg6[%c46_337, %c0_338] : memref<80x128xf32, #tpu.memory_space<vmem>>, vector<1x128xf32>
      %676 = vector.broadcast %675 : vector<1x128xf32> to vector<8x128xf32>
      %677 = arith.mulf %384, %676 : vector<8x128xf32>
      %678 = arith.addf %674, %677 : vector<8x128xf32>
      %c62_339 = arith.constant 62 : index
      %c0_340 = arith.constant 0 : index
      %679 = vector.load %arg6[%c62_339, %c0_340] : memref<80x128xf32, #tpu.memory_space<vmem>>, vector<1x128xf32>
      %680 = vector.broadcast %679 : vector<1x128xf32> to vector<8x128xf32>
      %681 = arith.mulf %387, %680 : vector<8x128xf32>
      %682 = arith.addf %678, %681 : vector<8x128xf32>
      %c78_341 = arith.constant 78 : index
      %c0_342 = arith.constant 0 : index
      %683 = vector.load %arg6[%c78_341, %c0_342] : memref<80x128xf32, #tpu.memory_space<vmem>>, vector<1x128xf32>
      %684 = vector.broadcast %683 : vector<1x128xf32> to vector<8x128xf32>
      %685 = arith.addf %682, %684 : vector<8x128xf32>
      %686 = arith.truncf %685 : vector<8x128xf32> to vector<8x128xbf16>
      %c112_343 = arith.constant 112 : index
      %c0_344 = arith.constant 0 : index
      %687 = vector.load %arg9[%c112_343, %c0_344] : memref<128x128xbf16, #tpu.memory_space<vmem>>, vector<8x128xbf16>
      tpu.vector_store %arg9[%c112_343, %c0_344], %686 {strides = array<i32>} : memref<128x128xbf16, #tpu.memory_space<vmem>>, vector<8x128xbf16>,
      %c15_345 = arith.constant 15 : index
      %c0_346 = arith.constant 0 : index
      %688 = vector.load %arg6[%c15_345, %c0_346] : memref<80x128xf32, #tpu.memory_space<vmem>>, vector<1x128xf32>
      %689 = vector.broadcast %688 : vector<1x128xf32> to vector<8x128xf32>
      %690 = arith.mulf %378, %689 : vector<8x128xf32>
      %c31_347 = arith.constant 31 : index
      %c0_348 = arith.constant 0 : index
      %691 = vector.load %arg6[%c31_347, %c0_348] : memref<80x128xf32, #tpu.memory_space<vmem>>, vector<1x128xf32>
      %692 = vector.broadcast %691 : vector<1x128xf32> to vector<8x128xf32>
      %693 = arith.mulf %381, %692 : vector<8x128xf32>
      %694 = arith.addf %690, %693 : vector<8x128xf32>
      %c47_349 = arith.constant 47 : index
      %c0_350 = arith.constant 0 : index
      %695 = vector.load %arg6[%c47_349, %c0_350] : memref<80x128xf32, #tpu.memory_space<vmem>>, vector<1x128xf32>
      %696 = vector.broadcast %695 : vector<1x128xf32> to vector<8x128xf32>
      %697 = arith.mulf %384, %696 : vector<8x128xf32>
      %698 = arith.addf %694, %697 : vector<8x128xf32>
      %c63_351 = arith.constant 63 : index
      %c0_352 = arith.constant 0 : index
      %699 = vector.load %arg6[%c63_351, %c0_352] : memref<80x128xf32, #tpu.memory_space<vmem>>, vector<1x128xf32>
      %700 = vector.broadcast %699 : vector<1x128xf32> to vector<8x128xf32>
      %701 = arith.mulf %387, %700 : vector<8x128xf32>
      %702 = arith.addf %698, %701 : vector<8x128xf32>
      %c79_353 = arith.constant 79 : index
      %c0_354 = arith.constant 0 : index
      %703 = vector.load %arg6[%c79_353, %c0_354] : memref<80x128xf32, #tpu.memory_space<vmem>>, vector<1x128xf32>
      %704 = vector.broadcast %703 : vector<1x128xf32> to vector<8x128xf32>
      %705 = arith.addf %702, %704 : vector<8x128xf32>
      %706 = arith.truncf %705 : vector<8x128xf32> to vector<8x128xbf16>
      %c120_355 = arith.constant 120 : index
      %c0_356 = arith.constant 0 : index
      %707 = vector.load %arg9[%c120_355, %c0_356] : memref<128x128xbf16, #tpu.memory_space<vmem>>, vector<8x128xbf16>
      tpu.vector_store %arg9[%c120_355, %c0_356], %706 {strides = array<i32>} : memref<128x128xbf16, #tpu.memory_space<vmem>>, vector<8x128xbf16>,
    } else {
    }
    %c0 = arith.constant 0 : index
    %c0_1 = arith.constant 0 : index
    %c0_2 = arith.constant 0 : index
    %c0_3 = arith.constant 0 : index
    %3 = vector.load %arg2[%c0, %c0_1, %c0_2, %c0_3] : memref<1x4x8x8xf32, #tpu.memory_space<vmem>>, vector<1x1x8x8xf32>
    %4 = vector.shape_cast %3 : vector<1x1x8x8xf32> to vector<8x8xf32>
    %5 = tpu.concatenate %4, %4, %4, %4, %4, %4, %4, %4 in 1 : vector<8x8xf32>, vector<8x8xf32>, vector<8x8xf32>, vector<8x8xf32>, vector<8x8xf32>, vector<8x8xf32>, vector<8x8xf32>, vector<8x8xf32> -> vector<8x64xf32>
    %c0_4 = arith.constant 0 : index
    %c1 = arith.constant 1 : index
    %c0_5 = arith.constant 0 : index
    %c0_6 = arith.constant 0 : index
    %6 = vector.load %arg2[%c0_4, %c1, %c0_5, %c0_6] : memref<1x4x8x8xf32, #tpu.memory_space<vmem>>, vector<1x1x8x8xf32>
    %7 = vector.shape_cast %6 : vector<1x1x8x8xf32> to vector<8x8xf32>
    %8 = tpu.concatenate %7, %7, %7, %7, %7, %7, %7, %7 in 1 : vector<8x8xf32>, vector<8x8xf32>, vector<8x8xf32>, vector<8x8xf32>, vector<8x8xf32>, vector<8x8xf32>, vector<8x8xf32>, vector<8x8xf32> -> vector<8x64xf32>
    %c0_7 = arith.constant 0 : index
    %c2 = arith.constant 2 : index
    %c0_8 = arith.constant 0 : index
    %c0_9 = arith.constant 0 : index
    %9 = vector.load %arg2[%c0_7, %c2, %c0_8, %c0_9] : memref<1x4x8x8xf32, #tpu.memory_space<vmem>>, vector<1x1x8x8xf32>
    %10 = vector.shape_cast %9 : vector<1x1x8x8xf32> to vector<8x8xf32>
    %11 = tpu.concatenate %10, %10, %10, %10, %10, %10, %10, %10 in 1 : vector<8x8xf32>, vector<8x8xf32>, vector<8x8xf32>, vector<8x8xf32>, vector<8x8xf32>, vector<8x8xf32>, vector<8x8xf32>, vector<8x8xf32> -> vector<8x64xf32>
    %c0_10 = arith.constant 0 : index
    %c3 = arith.constant 3 : index
    %c0_11 = arith.constant 0 : index
    %c0_12 = arith.constant 0 : index
    %12 = vector.load %arg2[%c0_10, %c3, %c0_11, %c0_12] : memref<1x4x8x8xf32, #tpu.memory_space<vmem>>, vector<1x1x8x8xf32>
    %13 = vector.shape_cast %12 : vector<1x1x8x8xf32> to vector<8x8xf32>
    %14 = tpu.concatenate %13, %13, %13, %13, %13, %13, %13, %13 in 1 : vector<8x8xf32>, vector<8x8xf32>, vector<8x8xf32>, vector<8x8xf32>, vector<8x8xf32>, vector<8x8xf32>, vector<8x8xf32>, vector<8x8xf32> -> vector<8x64xf32>
    %c0_13 = arith.constant 0 : index
    %c0_14 = arith.constant 0 : index
    %c0_15 = arith.constant 0 : index
    %15 = vector.load %arg4[%c0_13, %c0_14, %c0_15] : memref<1x64x8xbf16, #tpu.memory_space<vmem>>, vector<1x64x8xbf16>
    %16 = vector.shape_cast %15 : vector<1x64x8xbf16> to vector<64x8xbf16>
    %c0_16 = arith.constant 0 : index
    %c0_17 = arith.constant 0 : index
    %17 = vector.load %arg5[%c0_16, %c0_17] : memref<80x64xf32, #tpu.memory_space<vmem>>, vector<1x64xf32>
    %18 = vector.broadcast %17 : vector<1x64xf32> to vector<8x64xf32>
    %19 = arith.mulf %5, %18 : vector<8x64xf32>
    %c16 = arith.constant 16 : index
    %c0_18 = arith.constant 0 : index
    %20 = vector.load %arg5[%c16, %c0_18] : memref<80x64xf32, #tpu.memory_space<vmem>>, vector<1x64xf32>
    %21 = vector.broadcast %20 : vector<1x64xf32> to vector<8x64xf32>
    %22 = arith.mulf %8, %21 : vector<8x64xf32>
    %23 = arith.addf %19, %22 : vector<8x64xf32>
    %c32 = arith.constant 32 : index
    %c0_19 = arith.constant 0 : index
    %24 = vector.load %arg5[%c32, %c0_19] : memref<80x64xf32, #tpu.memory_space<vmem>>, vector<1x64xf32>
    %25 = vector.broadcast %24 : vector<1x64xf32> to vector<8x64xf32>
    %26 = arith.mulf %11, %25 : vector<8x64xf32>
    %27 = arith.addf %23, %26 : vector<8x64xf32>
    %c48 = arith.constant 48 : index
    %c0_20 = arith.constant 0 : index
    %28 = vector.load %arg5[%c48, %c0_20] : memref<80x64xf32, #tpu.memory_space<vmem>>, vector<1x64xf32>
    %29 = vector.broadcast %28 : vector<1x64xf32> to vector<8x64xf32>
    %30 = arith.mulf %14, %29 : vector<8x64xf32>
    %31 = arith.addf %27, %30 : vector<8x64xf32>
    %c64 = arith.constant 64 : index
    %c0_21 = arith.constant 0 : index
    %32 = vector.load %arg5[%c64, %c0_21] : memref<80x64xf32, #tpu.memory_space<vmem>>, vector<1x64xf32>
    %33 = vector.broadcast %32 : vector<1x64xf32> to vector<8x64xf32>
    %34 = arith.addf %31, %33 : vector<8x64xf32>
    %35 = arith.truncf %34 : vector<8x64xf32> to vector<8x64xbf16>
    %cst = arith.constant dense<0.000000e+00> : vector<8x8xf32>
    %36 = tpu.matmul %35, %16, %cst {dimension_numbers = #tpu.dot_dimension_numbers<[1], [0], [0], [1], [0, 0, 1, 1], [], []>} : vector<8x64xbf16>, vector<64x8xbf16>, vector<8x8xf32> -> vector<8x8xf32>
    %37 = arith.truncf %36 : vector<8x8xf32> to vector<8x8xbf16>
    %c0_22 = arith.constant 0 : index
    %c0_23 = arith.constant 0 : index
    %38 = vector.load %arg8[%c0_22, %c0_23] : memref<8x128xbf16, #tpu.memory_space<vmem>>, vector<8x8xbf16>
    tpu.vector_store %arg8[%c0_22, %c0_23], %37 {strides = array<i32>} : memref<8x128xbf16, #tpu.memory_space<vmem>>, vector<8x8xbf16>,
    %c1_24 = arith.constant 1 : index
    %c0_25 = arith.constant 0 : index
    %39 = vector.load %arg5[%c1_24, %c0_25] : memref<80x64xf32, #tpu.memory_space<vmem>>, vector<1x64xf32>
    %40 = vector.broadcast %39 : vector<1x64xf32> to vector<8x64xf32>
    %41 = arith.mulf %5, %40 : vector<8x64xf32>
    %c17 = arith.constant 17 : index
    %c0_26 = arith.constant 0 : index
    %42 = vector.load %arg5[%c17, %c0_26] : memref<80x64xf32, #tpu.memory_space<vmem>>, vector<1x64xf32>
    %43 = vector.broadcast %42 : vector<1x64xf32> to vector<8x64xf32>
    %44 = arith.mulf %8, %43 : vector<8x64xf32>
    %45 = arith.addf %41, %44 : vector<8x64xf32>
    %c33 = arith.constant 33 : index
    %c0_27 = arith.constant 0 : index
    %46 = vector.load %arg5[%c33, %c0_27] : memref<80x64xf32, #tpu.memory_space<vmem>>, vector<1x64xf32>
    %47 = vector.broadcast %46 : vector<1x64xf32> to vector<8x64xf32>
    %48 = arith.mulf %11, %47 : vector<8x64xf32>
    %49 = arith.addf %45, %48 : vector<8x64xf32>
    %c49 = arith.constant 49 : index
    %c0_28 = arith.constant 0 : index
    %50 = vector.load %arg5[%c49, %c0_28] : memref<80x64xf32, #tpu.memory_space<vmem>>, vector<1x64xf32>
    %51 = vector.broadcast %50 : vector<1x64xf32> to vector<8x64xf32>
    %52 = arith.mulf %14, %51 : vector<8x64xf32>
    %53 = arith.addf %49, %52 : vector<8x64xf32>
    %c65 = arith.constant 65 : index
    %c0_29 = arith.constant 0 : index
    %54 = vector.load %arg5[%c65, %c0_29] : memref<80x64xf32, #tpu.memory_space<vmem>>, vector<1x64xf32>
    %55 = vector.broadcast %54 : vector<1x64xf32> to vector<8x64xf32>
    %56 = arith.addf %53, %55 : vector<8x64xf32>
    %57 = arith.truncf %56 : vector<8x64xf32> to vector<8x64xbf16>
    %cst_30 = arith.constant dense<0.000000e+00> : vector<8x8xf32>
    %58 = tpu.matmul %57, %16, %cst_30 {dimension_numbers = #tpu.dot_dimension_numbers<[1], [0], [0], [1], [0, 0, 1, 1], [], []>} : vector<8x64xbf16>, vector<64x8xbf16>, vector<8x8xf32> -> vector<8x8xf32>
    %59 = arith.truncf %58 : vector<8x8xf32> to vector<8x8xbf16>
    %c0_31 = arith.constant 0 : index
    %c8 = arith.constant 8 : index
    %60 = vector.load %arg8[%c0_31, %c8] : memref<8x128xbf16, #tpu.memory_space<vmem>>, vector<8x8xbf16>
    tpu.vector_store %arg8[%c0_31, %c8], %59 {strides = array<i32>} : memref<8x128xbf16, #tpu.memory_space<vmem>>, vector<8x8xbf16>,
    %c2_32 = arith.constant 2 : index
    %c0_33 = arith.constant 0 : index
    %61 = vector.load %arg5[%c2_32, %c0_33] : memref<80x64xf32, #tpu.memory_space<vmem>>, vector<1x64xf32>
    %62 = vector.broadcast %61 : vector<1x64xf32> to vector<8x64xf32>
    %63 = arith.mulf %5, %62 : vector<8x64xf32>
    %c18 = arith.constant 18 : index
    %c0_34 = arith.constant 0 : index
    %64 = vector.load %arg5[%c18, %c0_34] : memref<80x64xf32, #tpu.memory_space<vmem>>, vector<1x64xf32>
    %65 = vector.broadcast %64 : vector<1x64xf32> to vector<8x64xf32>
    %66 = arith.mulf %8, %65 : vector<8x64xf32>
    %67 = arith.addf %63, %66 : vector<8x64xf32>
    %c34 = arith.constant 34 : index
    %c0_35 = arith.constant 0 : index
    %68 = vector.load %arg5[%c34, %c0_35] : memref<80x64xf32, #tpu.memory_space<vmem>>, vector<1x64xf32>
    %69 = vector.broadcast %68 : vector<1x64xf32> to vector<8x64xf32>
    %70 = arith.mulf %11, %69 : vector<8x64xf32>
    %71 = arith.addf %67, %70 : vector<8x64xf32>
    %c50 = arith.constant 50 : index
    %c0_36 = arith.constant 0 : index
    %72 = vector.load %arg5[%c50, %c0_36] : memref<80x64xf32, #tpu.memory_space<vmem>>, vector<1x64xf32>
    %73 = vector.broadcast %72 : vector<1x64xf32> to vector<8x64xf32>
    %74 = arith.mulf %14, %73 : vector<8x64xf32>
    %75 = arith.addf %71, %74 : vector<8x64xf32>
    %c66 = arith.constant 66 : index
    %c0_37 = arith.constant 0 : index
    %76 = vector.load %arg5[%c66, %c0_37] : memref<80x64xf32, #tpu.memory_space<vmem>>, vector<1x64xf32>
    %77 = vector.broadcast %76 : vector<1x64xf32> to vector<8x64xf32>
    %78 = arith.addf %75, %77 : vector<8x64xf32>
    %79 = arith.truncf %78 : vector<8x64xf32> to vector<8x64xbf16>
    %cst_38 = arith.constant dense<0.000000e+00> : vector<8x8xf32>
    %80 = tpu.matmul %79, %16, %cst_38 {dimension_numbers = #tpu.dot_dimension_numbers<[1], [0], [0], [1], [0, 0, 1, 1], [], []>} : vector<8x64xbf16>, vector<64x8xbf16>, vector<8x8xf32> -> vector<8x8xf32>
    %81 = arith.truncf %80 : vector<8x8xf32> to vector<8x8xbf16>
    %c0_39 = arith.constant 0 : index
    %c16_40 = arith.constant 16 : index
    %82 = vector.load %arg8[%c0_39, %c16_40] : memref<8x128xbf16, #tpu.memory_space<vmem>>, vector<8x8xbf16>
    tpu.vector_store %arg8[%c0_39, %c16_40], %81 {strides = array<i32>} : memref<8x128xbf16, #tpu.memory_space<vmem>>, vector<8x8xbf16>,
    %c3_41 = arith.constant 3 : index
    %c0_42 = arith.constant 0 : index
    %83 = vector.load %arg5[%c3_41, %c0_42] : memref<80x64xf32, #tpu.memory_space<vmem>>, vector<1x64xf32>
    %84 = vector.broadcast %83 : vector<1x64xf32> to vector<8x64xf32>
    %85 = arith.mulf %5, %84 : vector<8x64xf32>
    %c19 = arith.constant 19 : index
    %c0_43 = arith.constant 0 : index
    %86 = vector.load %arg5[%c19, %c0_43] : memref<80x64xf32, #tpu.memory_space<vmem>>, vector<1x64xf32>
    %87 = vector.broadcast %86 : vector<1x64xf32> to vector<8x64xf32>
    %88 = arith.mulf %8, %87 : vector<8x64xf32>
    %89 = arith.addf %85, %88 : vector<8x64xf32>
    %c35 = arith.constant 35 : index
    %c0_44 = arith.constant 0 : index
    %90 = vector.load %arg5[%c35, %c0_44] : memref<80x64xf32, #tpu.memory_space<vmem>>, vector<1x64xf32>
    %91 = vector.broadcast %90 : vector<1x64xf32> to vector<8x64xf32>
    %92 = arith.mulf %11, %91 : vector<8x64xf32>
    %93 = arith.addf %89, %92 : vector<8x64xf32>
    %c51 = arith.constant 51 : index
    %c0_45 = arith.constant 0 : index
    %94 = vector.load %arg5[%c51, %c0_45] : memref<80x64xf32, #tpu.memory_space<vmem>>, vector<1x64xf32>
    %95 = vector.broadcast %94 : vector<1x64xf32> to vector<8x64xf32>
    %96 = arith.mulf %14, %95 : vector<8x64xf32>
    %97 = arith.addf %93, %96 : vector<8x64xf32>
    %c67 = arith.constant 67 : index
    %c0_46 = arith.constant 0 : index
    %98 = vector.load %arg5[%c67, %c0_46] : memref<80x64xf32, #tpu.memory_space<vmem>>, vector<1x64xf32>
    %99 = vector.broadcast %98 : vector<1x64xf32> to vector<8x64xf32>
    %100 = arith.addf %97, %99 : vector<8x64xf32>
    %101 = arith.truncf %100 : vector<8x64xf32> to vector<8x64xbf16>
    %cst_47 = arith.constant dense<0.000000e+00> : vector<8x8xf32>
    %102 = tpu.matmul %101, %16, %cst_47 {dimension_numbers = #tpu.dot_dimension_numbers<[1], [0], [0], [1], [0, 0, 1, 1], [], []>} : vector<8x64xbf16>, vector<64x8xbf16>, vector<8x8xf32> -> vector<8x8xf32>
    %103 = arith.truncf %102 : vector<8x8xf32> to vector<8x8xbf16>
    %c0_48 = arith.constant 0 : index
    %c24 = arith.constant 24 : index
    %104 = vector.load %arg8[%c0_48, %c24] : memref<8x128xbf16, #tpu.memory_space<vmem>>, vector<8x8xbf16>
    tpu.vector_store %arg8[%c0_48, %c24], %103 {strides = array<i32>} : memref<8x128xbf16, #tpu.memory_space<vmem>>, vector<8x8xbf16>,
    %c4 = arith.constant 4 : index
    %c0_49 = arith.constant 0 : index
    %105 = vector.load %arg5[%c4, %c0_49] : memref<80x64xf32, #tpu.memory_space<vmem>>, vector<1x64xf32>
    %106 = vector.broadcast %105 : vector<1x64xf32> to vector<8x64xf32>
    %107 = arith.mulf %5, %106 : vector<8x64xf32>
    %c20 = arith.constant 20 : index
    %c0_50 = arith.constant 0 : index
    %108 = vector.load %arg5[%c20, %c0_50] : memref<80x64xf32, #tpu.memory_space<vmem>>, vector<1x64xf32>
    %109 = vector.broadcast %108 : vector<1x64xf32> to vector<8x64xf32>
    %110 = arith.mulf %8, %109 : vector<8x64xf32>
    %111 = arith.addf %107, %110 : vector<8x64xf32>
    %c36 = arith.constant 36 : index
    %c0_51 = arith.constant 0 : index
    %112 = vector.load %arg5[%c36, %c0_51] : memref<80x64xf32, #tpu.memory_space<vmem>>, vector<1x64xf32>
    %113 = vector.broadcast %112 : vector<1x64xf32> to vector<8x64xf32>
    %114 = arith.mulf %11, %113 : vector<8x64xf32>
    %115 = arith.addf %111, %114 : vector<8x64xf32>
    %c52 = arith.constant 52 : index
    %c0_52 = arith.constant 0 : index
    %116 = vector.load %arg5[%c52, %c0_52] : memref<80x64xf32, #tpu.memory_space<vmem>>, vector<1x64xf32>
    %117 = vector.broadcast %116 : vector<1x64xf32> to vector<8x64xf32>
    %118 = arith.mulf %14, %117 : vector<8x64xf32>
    %119 = arith.addf %115, %118 : vector<8x64xf32>
    %c68 = arith.constant 68 : index
    %c0_53 = arith.constant 0 : index
    %120 = vector.load %arg5[%c68, %c0_53] : memref<80x64xf32, #tpu.memory_space<vmem>>, vector<1x64xf32>
    %121 = vector.broadcast %120 : vector<1x64xf32> to vector<8x64xf32>
    %122 = arith.addf %119, %121 : vector<8x64xf32>
    %123 = arith.truncf %122 : vector<8x64xf32> to vector<8x64xbf16>
    %cst_54 = arith.constant dense<0.000000e+00> : vector<8x8xf32>
    %124 = tpu.matmul %123, %16, %cst_54 {dimension_numbers = #tpu.dot_dimension_numbers<[1], [0], [0], [1], [0, 0, 1, 1], [], []>} : vector<8x64xbf16>, vector<64x8xbf16>, vector<8x8xf32> -> vector<8x8xf32>
    %125 = arith.truncf %124 : vector<8x8xf32> to vector<8x8xbf16>
    %c0_55 = arith.constant 0 : index
    %c32_56 = arith.constant 32 : index
    %126 = vector.load %arg8[%c0_55, %c32_56] : memref<8x128xbf16, #tpu.memory_space<vmem>>, vector<8x8xbf16>
    tpu.vector_store %arg8[%c0_55, %c32_56], %125 {strides = array<i32>} : memref<8x128xbf16, #tpu.memory_space<vmem>>, vector<8x8xbf16>,
    %c5 = arith.constant 5 : index
    %c0_57 = arith.constant 0 : index
    %127 = vector.load %arg5[%c5, %c0_57] : memref<80x64xf32, #tpu.memory_space<vmem>>, vector<1x64xf32>
    %128 = vector.broadcast %127 : vector<1x64xf32> to vector<8x64xf32>
    %129 = arith.mulf %5, %128 : vector<8x64xf32>
    %c21 = arith.constant 21 : index
    %c0_58 = arith.constant 0 : index
    %130 = vector.load %arg5[%c21, %c0_58] : memref<80x64xf32, #tpu.memory_space<vmem>>, vector<1x64xf32>
    %131 = vector.broadcast %130 : vector<1x64xf32> to vector<8x64xf32>
    %132 = arith.mulf %8, %131 : vector<8x64xf32>
    %133 = arith.addf %129, %132 : vector<8x64xf32>
    %c37 = arith.constant 37 : index
    %c0_59 = arith.constant 0 : index
    %134 = vector.load %arg5[%c37, %c0_59] : memref<80x64xf32, #tpu.memory_space<vmem>>, vector<1x64xf32>
    %135 = vector.broadcast %134 : vector<1x64xf32> to vector<8x64xf32>
    %136 = arith.mulf %11, %135 : vector<8x64xf32>
    %137 = arith.addf %133, %136 : vector<8x64xf32>
    %c53 = arith.constant 53 : index
    %c0_60 = arith.constant 0 : index
    %138 = vector.load %arg5[%c53, %c0_60] : memref<80x64xf32, #tpu.memory_space<vmem>>, vector<1x64xf32>
    %139 = vector.broadcast %138 : vector<1x64xf32> to vector<8x64xf32>
    %140 = arith.mulf %14, %139 : vector<8x64xf32>
    %141 = arith.addf %137, %140 : vector<8x64xf32>
    %c69 = arith.constant 69 : index
    %c0_61 = arith.constant 0 : index
    %142 = vector.load %arg5[%c69, %c0_61] : memref<80x64xf32, #tpu.memory_space<vmem>>, vector<1x64xf32>
    %143 = vector.broadcast %142 : vector<1x64xf32> to vector<8x64xf32>
    %144 = arith.addf %141, %143 : vector<8x64xf32>
    %145 = arith.truncf %144 : vector<8x64xf32> to vector<8x64xbf16>
    %cst_62 = arith.constant dense<0.000000e+00> : vector<8x8xf32>
    %146 = tpu.matmul %145, %16, %cst_62 {dimension_numbers = #tpu.dot_dimension_numbers<[1], [0], [0], [1], [0, 0, 1, 1], [], []>} : vector<8x64xbf16>, vector<64x8xbf16>, vector<8x8xf32> -> vector<8x8xf32>
    %147 = arith.truncf %146 : vector<8x8xf32> to vector<8x8xbf16>
    %c0_63 = arith.constant 0 : index
    %c40 = arith.constant 40 : index
    %148 = vector.load %arg8[%c0_63, %c40] : memref<8x128xbf16, #tpu.memory_space<vmem>>, vector<8x8xbf16>
    tpu.vector_store %arg8[%c0_63, %c40], %147 {strides = array<i32>} : memref<8x128xbf16, #tpu.memory_space<vmem>>, vector<8x8xbf16>,
    %c6 = arith.constant 6 : index
    %c0_64 = arith.constant 0 : index
    %149 = vector.load %arg5[%c6, %c0_64] : memref<80x64xf32, #tpu.memory_space<vmem>>, vector<1x64xf32>
    %150 = vector.broadcast %149 : vector<1x64xf32> to vector<8x64xf32>
    %151 = arith.mulf %5, %150 : vector<8x64xf32>
    %c22 = arith.constant 22 : index
    %c0_65 = arith.constant 0 : index
    %152 = vector.load %arg5[%c22, %c0_65] : memref<80x64xf32, #tpu.memory_space<vmem>>, vector<1x64xf32>
    %153 = vector.broadcast %152 : vector<1x64xf32> to vector<8x64xf32>
    %154 = arith.mulf %8, %153 : vector<8x64xf32>
    %155 = arith.addf %151, %154 : vector<8x64xf32>
    %c38 = arith.constant 38 : index
    %c0_66 = arith.constant 0 : index
    %156 = vector.load %arg5[%c38, %c0_66] : memref<80x64xf32, #tpu.memory_space<vmem>>, vector<1x64xf32>
    %157 = vector.broadcast %156 : vector<1x64xf32> to vector<8x64xf32>
    %158 = arith.mulf %11, %157 : vector<8x64xf32>
    %159 = arith.addf %155, %158 : vector<8x64xf32>
    %c54 = arith.constant 54 : index
    %c0_67 = arith.constant 0 : index
    %160 = vector.load %arg5[%c54, %c0_67] : memref<80x64xf32, #tpu.memory_space<vmem>>, vector<1x64xf32>
    %161 = vector.broadcast %160 : vector<1x64xf32> to vector<8x64xf32>
    %162 = arith.mulf %14, %161 : vector<8x64xf32>
    %163 = arith.addf %159, %162 : vector<8x64xf32>
    %c70 = arith.constant 70 : index
    %c0_68 = arith.constant 0 : index
    %164 = vector.load %arg5[%c70, %c0_68] : memref<80x64xf32, #tpu.memory_space<vmem>>, vector<1x64xf32>
    %165 = vector.broadcast %164 : vector<1x64xf32> to vector<8x64xf32>
    %166 = arith.addf %163, %165 : vector<8x64xf32>
    %167 = arith.truncf %166 : vector<8x64xf32> to vector<8x64xbf16>
    %cst_69 = arith.constant dense<0.000000e+00> : vector<8x8xf32>
    %168 = tpu.matmul %167, %16, %cst_69 {dimension_numbers = #tpu.dot_dimension_numbers<[1], [0], [0], [1], [0, 0, 1, 1], [], []>} : vector<8x64xbf16>, vector<64x8xbf16>, vector<8x8xf32> -> vector<8x8xf32>
    %169 = arith.truncf %168 : vector<8x8xf32> to vector<8x8xbf16>
    %c0_70 = arith.constant 0 : index
    %c48_71 = arith.constant 48 : index
    %170 = vector.load %arg8[%c0_70, %c48_71] : memref<8x128xbf16, #tpu.memory_space<vmem>>, vector<8x8xbf16>
    tpu.vector_store %arg8[%c0_70, %c48_71], %169 {strides = array<i32>} : memref<8x128xbf16, #tpu.memory_space<vmem>>, vector<8x8xbf16>,
    %c7 = arith.constant 7 : index
    %c0_72 = arith.constant 0 : index
    %171 = vector.load %arg5[%c7, %c0_72] : memref<80x64xf32, #tpu.memory_space<vmem>>, vector<1x64xf32>
    %172 = vector.broadcast %171 : vector<1x64xf32> to vector<8x64xf32>
    %173 = arith.mulf %5, %172 : vector<8x64xf32>
    %c23 = arith.constant 23 : index
    %c0_73 = arith.constant 0 : index
    %174 = vector.load %arg5[%c23, %c0_73] : memref<80x64xf32, #tpu.memory_space<vmem>>, vector<1x64xf32>
    %175 = vector.broadcast %174 : vector<1x64xf32> to vector<8x64xf32>
    %176 = arith.mulf %8, %175 : vector<8x64xf32>
    %177 = arith.addf %173, %176 : vector<8x64xf32>
    %c39 = arith.constant 39 : index
    %c0_74 = arith.constant 0 : index
    %178 = vector.load %arg5[%c39, %c0_74] : memref<80x64xf32, #tpu.memory_space<vmem>>, vector<1x64xf32>
    %179 = vector.broadcast %178 : vector<1x64xf32> to vector<8x64xf32>
    %180 = arith.mulf %11, %179 : vector<8x64xf32>
    %181 = arith.addf %177, %180 : vector<8x64xf32>
    %c55 = arith.constant 55 : index
    %c0_75 = arith.constant 0 : index
    %182 = vector.load %arg5[%c55, %c0_75] : memref<80x64xf32, #tpu.memory_space<vmem>>, vector<1x64xf32>
    %183 = vector.broadcast %182 : vector<1x64xf32> to vector<8x64xf32>
    %184 = arith.mulf %14, %183 : vector<8x64xf32>
    %185 = arith.addf %181, %184 : vector<8x64xf32>
    %c71 = arith.constant 71 : index
    %c0_76 = arith.constant 0 : index
    %186 = vector.load %arg5[%c71, %c0_76] : memref<80x64xf32, #tpu.memory_space<vmem>>, vector<1x64xf32>
    %187 = vector.broadcast %186 : vector<1x64xf32> to vector<8x64xf32>
    %188 = arith.addf %185, %187 : vector<8x64xf32>
    %189 = arith.truncf %188 : vector<8x64xf32> to vector<8x64xbf16>
    %cst_77 = arith.constant dense<0.000000e+00> : vector<8x8xf32>
    %190 = tpu.matmul %189, %16, %cst_77 {dimension_numbers = #tpu.dot_dimension_numbers<[1], [0], [0], [1], [0, 0, 1, 1], [], []>} : vector<8x64xbf16>, vector<64x8xbf16>, vector<8x8xf32> -> vector<8x8xf32>
    %191 = arith.truncf %190 : vector<8x8xf32> to vector<8x8xbf16>
    %c0_78 = arith.constant 0 : index
    %c56 = arith.constant 56 : index
    %192 = vector.load %arg8[%c0_78, %c56] : memref<8x128xbf16, #tpu.memory_space<vmem>>, vector<8x8xbf16>
    tpu.vector_store %arg8[%c0_78, %c56], %191 {strides = array<i32>} : memref<8x128xbf16, #tpu.memory_space<vmem>>, vector<8x8xbf16>,
    %c8_79 = arith.constant 8 : index
    %c0_80 = arith.constant 0 : index
    %193 = vector.load %arg5[%c8_79, %c0_80] : memref<80x64xf32, #tpu.memory_space<vmem>>, vector<1x64xf32>
    %194 = vector.broadcast %193 : vector<1x64xf32> to vector<8x64xf32>
    %195 = arith.mulf %5, %194 : vector<8x64xf32>
    %c24_81 = arith.constant 24 : index
    %c0_82 = arith.constant 0 : index
    %196 = vector.load %arg5[%c24_81, %c0_82] : memref<80x64xf32, #tpu.memory_space<vmem>>, vector<1x64xf32>
    %197 = vector.broadcast %196 : vector<1x64xf32> to vector<8x64xf32>
    %198 = arith.mulf %8, %197 : vector<8x64xf32>
    %199 = arith.addf %195, %198 : vector<8x64xf32>
    %c40_83 = arith.constant 40 : index
    %c0_84 = arith.constant 0 : index
    %200 = vector.load %arg5[%c40_83, %c0_84] : memref<80x64xf32, #tpu.memory_space<vmem>>, vector<1x64xf32>
    %201 = vector.broadcast %200 : vector<1x64xf32> to vector<8x64xf32>
    %202 = arith.mulf %11, %201 : vector<8x64xf32>
    %203 = arith.addf %199, %202 : vector<8x64xf32>
    %c56_85 = arith.constant 56 : index
    %c0_86 = arith.constant 0 : index
    %204 = vector.load %arg5[%c56_85, %c0_86] : memref<80x64xf32, #tpu.memory_space<vmem>>, vector<1x64xf32>
    %205 = vector.broadcast %204 : vector<1x64xf32> to vector<8x64xf32>
    %206 = arith.mulf %14, %205 : vector<8x64xf32>
    %207 = arith.addf %203, %206 : vector<8x64xf32>
    %c72 = arith.constant 72 : index
    %c0_87 = arith.constant 0 : index
    %208 = vector.load %arg5[%c72, %c0_87] : memref<80x64xf32, #tpu.memory_space<vmem>>, vector<1x64xf32>
    %209 = vector.broadcast %208 : vector<1x64xf32> to vector<8x64xf32>
    %210 = arith.addf %207, %209 : vector<8x64xf32>
    %211 = arith.truncf %210 : vector<8x64xf32> to vector<8x64xbf16>
    %cst_88 = arith.constant dense<0.000000e+00> : vector<8x8xf32>
    %212 = tpu.matmul %211, %16, %cst_88 {dimension_numbers = #tpu.dot_dimension_numbers<[1], [0], [0], [1], [0, 0, 1, 1], [], []>} : vector<8x64xbf16>, vector<64x8xbf16>, vector<8x8xf32> -> vector<8x8xf32>
    %213 = arith.truncf %212 : vector<8x8xf32> to vector<8x8xbf16>
    %c0_89 = arith.constant 0 : index
    %c64_90 = arith.constant 64 : index
    %214 = vector.load %arg8[%c0_89, %c64_90] : memref<8x128xbf16, #tpu.memory_space<vmem>>, vector<8x8xbf16>
    tpu.vector_store %arg8[%c0_89, %c64_90], %213 {strides = array<i32>} : memref<8x128xbf16, #tpu.memory_space<vmem>>, vector<8x8xbf16>,
    %c9 = arith.constant 9 : index
    %c0_91 = arith.constant 0 : index
    %215 = vector.load %arg5[%c9, %c0_91] : memref<80x64xf32, #tpu.memory_space<vmem>>, vector<1x64xf32>
    %216 = vector.broadcast %215 : vector<1x64xf32> to vector<8x64xf32>
    %217 = arith.mulf %5, %216 : vector<8x64xf32>
    %c25 = arith.constant 25 : index
    %c0_92 = arith.constant 0 : index
    %218 = vector.load %arg5[%c25, %c0_92] : memref<80x64xf32, #tpu.memory_space<vmem>>, vector<1x64xf32>
    %219 = vector.broadcast %218 : vector<1x64xf32> to vector<8x64xf32>
    %220 = arith.mulf %8, %219 : vector<8x64xf32>
    %221 = arith.addf %217, %220 : vector<8x64xf32>
    %c41 = arith.constant 41 : index
    %c0_93 = arith.constant 0 : index
    %222 = vector.load %arg5[%c41, %c0_93] : memref<80x64xf32, #tpu.memory_space<vmem>>, vector<1x64xf32>
    %223 = vector.broadcast %222 : vector<1x64xf32> to vector<8x64xf32>
    %224 = arith.mulf %11, %223 : vector<8x64xf32>
    %225 = arith.addf %221, %224 : vector<8x64xf32>
    %c57 = arith.constant 57 : index
    %c0_94 = arith.constant 0 : index
    %226 = vector.load %arg5[%c57, %c0_94] : memref<80x64xf32, #tpu.memory_space<vmem>>, vector<1x64xf32>
    %227 = vector.broadcast %226 : vector<1x64xf32> to vector<8x64xf32>
    %228 = arith.mulf %14, %227 : vector<8x64xf32>
    %229 = arith.addf %225, %228 : vector<8x64xf32>
    %c73 = arith.constant 73 : index
    %c0_95 = arith.constant 0 : index
    %230 = vector.load %arg5[%c73, %c0_95] : memref<80x64xf32, #tpu.memory_space<vmem>>, vector<1x64xf32>
    %231 = vector.broadcast %230 : vector<1x64xf32> to vector<8x64xf32>
    %232 = arith.addf %229, %231 : vector<8x64xf32>
    %233 = arith.truncf %232 : vector<8x64xf32> to vector<8x64xbf16>
    %cst_96 = arith.constant dense<0.000000e+00> : vector<8x8xf32>
    %234 = tpu.matmul %233, %16, %cst_96 {dimension_numbers = #tpu.dot_dimension_numbers<[1], [0], [0], [1], [0, 0, 1, 1], [], []>} : vector<8x64xbf16>, vector<64x8xbf16>, vector<8x8xf32> -> vector<8x8xf32>
    %235 = arith.truncf %234 : vector<8x8xf32> to vector<8x8xbf16>
    %c0_97 = arith.constant 0 : index
    %c72_98 = arith.constant 72 : index
    %236 = vector.load %arg8[%c0_97, %c72_98] : memref<8x128xbf16, #tpu.memory_space<vmem>>, vector<8x8xbf16>
    tpu.vector_store %arg8[%c0_97, %c72_98], %235 {strides = array<i32>} : memref<8x128xbf16, #tpu.memory_space<vmem>>, vector<8x8xbf16>,
    %c10 = arith.constant 10 : index
    %c0_99 = arith.constant 0 : index
    %237 = vector.load %arg5[%c10, %c0_99] : memref<80x64xf32, #tpu.memory_space<vmem>>, vector<1x64xf32>
    %238 = vector.broadcast %237 : vector<1x64xf32> to vector<8x64xf32>
    %239 = arith.mulf %5, %238 : vector<8x64xf32>
    %c26 = arith.constant 26 : index
    %c0_100 = arith.constant 0 : index
    %240 = vector.load %arg5[%c26, %c0_100] : memref<80x64xf32, #tpu.memory_space<vmem>>, vector<1x64xf32>
    %241 = vector.broadcast %240 : vector<1x64xf32> to vector<8x64xf32>
    %242 = arith.mulf %8, %241 : vector<8x64xf32>
    %243 = arith.addf %239, %242 : vector<8x64xf32>
    %c42 = arith.constant 42 : index
    %c0_101 = arith.constant 0 : index
    %244 = vector.load %arg5[%c42, %c0_101] : memref<80x64xf32, #tpu.memory_space<vmem>>, vector<1x64xf32>
    %245 = vector.broadcast %244 : vector<1x64xf32> to vector<8x64xf32>
    %246 = arith.mulf %11, %245 : vector<8x64xf32>
    %247 = arith.addf %243, %246 : vector<8x64xf32>
    %c58 = arith.constant 58 : index
    %c0_102 = arith.constant 0 : index
    %248 = vector.load %arg5[%c58, %c0_102] : memref<80x64xf32, #tpu.memory_space<vmem>>, vector<1x64xf32>
    %249 = vector.broadcast %248 : vector<1x64xf32> to vector<8x64xf32>
    %250 = arith.mulf %14, %249 : vector<8x64xf32>
    %251 = arith.addf %247, %250 : vector<8x64xf32>
    %c74 = arith.constant 74 : index
    %c0_103 = arith.constant 0 : index
    %252 = vector.load %arg5[%c74, %c0_103] : memref<80x64xf32, #tpu.memory_space<vmem>>, vector<1x64xf32>
    %253 = vector.broadcast %252 : vector<1x64xf32> to vector<8x64xf32>
    %254 = arith.addf %251, %253 : vector<8x64xf32>
    %255 = arith.truncf %254 : vector<8x64xf32> to vector<8x64xbf16>
    %cst_104 = arith.constant dense<0.000000e+00> : vector<8x8xf32>
    %256 = tpu.matmul %255, %16, %cst_104 {dimension_numbers = #tpu.dot_dimension_numbers<[1], [0], [0], [1], [0, 0, 1, 1], [], []>} : vector<8x64xbf16>, vector<64x8xbf16>, vector<8x8xf32> -> vector<8x8xf32>
    %257 = arith.truncf %256 : vector<8x8xf32> to vector<8x8xbf16>
    %c0_105 = arith.constant 0 : index
    %c80 = arith.constant 80 : index
    %258 = vector.load %arg8[%c0_105, %c80] : memref<8x128xbf16, #tpu.memory_space<vmem>>, vector<8x8xbf16>
    tpu.vector_store %arg8[%c0_105, %c80], %257 {strides = array<i32>} : memref<8x128xbf16, #tpu.memory_space<vmem>>, vector<8x8xbf16>,
    %c11 = arith.constant 11 : index
    %c0_106 = arith.constant 0 : index
    %259 = vector.load %arg5[%c11, %c0_106] : memref<80x64xf32, #tpu.memory_space<vmem>>, vector<1x64xf32>
    %260 = vector.broadcast %259 : vector<1x64xf32> to vector<8x64xf32>
    %261 = arith.mulf %5, %260 : vector<8x64xf32>
    %c27 = arith.constant 27 : index
    %c0_107 = arith.constant 0 : index
    %262 = vector.load %arg5[%c27, %c0_107] : memref<80x64xf32, #tpu.memory_space<vmem>>, vector<1x64xf32>
    %263 = vector.broadcast %262 : vector<1x64xf32> to vector<8x64xf32>
    %264 = arith.mulf %8, %263 : vector<8x64xf32>
    %265 = arith.addf %261, %264 : vector<8x64xf32>
    %c43 = arith.constant 43 : index
    %c0_108 = arith.constant 0 : index
    %266 = vector.load %arg5[%c43, %c0_108] : memref<80x64xf32, #tpu.memory_space<vmem>>, vector<1x64xf32>
    %267 = vector.broadcast %266 : vector<1x64xf32> to vector<8x64xf32>
    %268 = arith.mulf %11, %267 : vector<8x64xf32>
    %269 = arith.addf %265, %268 : vector<8x64xf32>
    %c59 = arith.constant 59 : index
    %c0_109 = arith.constant 0 : index
    %270 = vector.load %arg5[%c59, %c0_109] : memref<80x64xf32, #tpu.memory_space<vmem>>, vector<1x64xf32>
    %271 = vector.broadcast %270 : vector<1x64xf32> to vector<8x64xf32>
    %272 = arith.mulf %14, %271 : vector<8x64xf32>
    %273 = arith.addf %269, %272 : vector<8x64xf32>
    %c75 = arith.constant 75 : index
    %c0_110 = arith.constant 0 : index
    %274 = vector.load %arg5[%c75, %c0_110] : memref<80x64xf32, #tpu.memory_space<vmem>>, vector<1x64xf32>
    %275 = vector.broadcast %274 : vector<1x64xf32> to vector<8x64xf32>
    %276 = arith.addf %273, %275 : vector<8x64xf32>
    %277 = arith.truncf %276 : vector<8x64xf32> to vector<8x64xbf16>
    %cst_111 = arith.constant dense<0.000000e+00> : vector<8x8xf32>
    %278 = tpu.matmul %277, %16, %cst_111 {dimension_numbers = #tpu.dot_dimension_numbers<[1], [0], [0], [1], [0, 0, 1, 1], [], []>} : vector<8x64xbf16>, vector<64x8xbf16>, vector<8x8xf32> -> vector<8x8xf32>
    %279 = arith.truncf %278 : vector<8x8xf32> to vector<8x8xbf16>
    %c0_112 = arith.constant 0 : index
    %c88 = arith.constant 88 : index
    %280 = vector.load %arg8[%c0_112, %c88] : memref<8x128xbf16, #tpu.memory_space<vmem>>, vector<8x8xbf16>
    tpu.vector_store %arg8[%c0_112, %c88], %279 {strides = array<i32>} : memref<8x128xbf16, #tpu.memory_space<vmem>>, vector<8x8xbf16>,
    %c12 = arith.constant 12 : index
    %c0_113 = arith.constant 0 : index
    %281 = vector.load %arg5[%c12, %c0_113] : memref<80x64xf32, #tpu.memory_space<vmem>>, vector<1x64xf32>
    %282 = vector.broadcast %281 : vector<1x64xf32> to vector<8x64xf32>
    %283 = arith.mulf %5, %282 : vector<8x64xf32>
    %c28 = arith.constant 28 : index
    %c0_114 = arith.constant 0 : index
    %284 = vector.load %arg5[%c28, %c0_114] : memref<80x64xf32, #tpu.memory_space<vmem>>, vector<1x64xf32>
    %285 = vector.broadcast %284 : vector<1x64xf32> to vector<8x64xf32>
    %286 = arith.mulf %8, %285 : vector<8x64xf32>
    %287 = arith.addf %283, %286 : vector<8x64xf32>
    %c44 = arith.constant 44 : index
    %c0_115 = arith.constant 0 : index
    %288 = vector.load %arg5[%c44, %c0_115] : memref<80x64xf32, #tpu.memory_space<vmem>>, vector<1x64xf32>
    %289 = vector.broadcast %288 : vector<1x64xf32> to vector<8x64xf32>
    %290 = arith.mulf %11, %289 : vector<8x64xf32>
    %291 = arith.addf %287, %290 : vector<8x64xf32>
    %c60 = arith.constant 60 : index
    %c0_116 = arith.constant 0 : index
    %292 = vector.load %arg5[%c60, %c0_116] : memref<80x64xf32, #tpu.memory_space<vmem>>, vector<1x64xf32>
    %293 = vector.broadcast %292 : vector<1x64xf32> to vector<8x64xf32>
    %294 = arith.mulf %14, %293 : vector<8x64xf32>
    %295 = arith.addf %291, %294 : vector<8x64xf32>
    %c76 = arith.constant 76 : index
    %c0_117 = arith.constant 0 : index
    %296 = vector.load %arg5[%c76, %c0_117] : memref<80x64xf32, #tpu.memory_space<vmem>>, vector<1x64xf32>
    %297 = vector.broadcast %296 : vector<1x64xf32> to vector<8x64xf32>
    %298 = arith.addf %295, %297 : vector<8x64xf32>
    %299 = arith.truncf %298 : vector<8x64xf32> to vector<8x64xbf16>
    %cst_118 = arith.constant dense<0.000000e+00> : vector<8x8xf32>
    %300 = tpu.matmul %299, %16, %cst_118 {dimension_numbers = #tpu.dot_dimension_numbers<[1], [0], [0], [1], [0, 0, 1, 1], [], []>} : vector<8x64xbf16>, vector<64x8xbf16>, vector<8x8xf32> -> vector<8x8xf32>
    %301 = arith.truncf %300 : vector<8x8xf32> to vector<8x8xbf16>
    %c0_119 = arith.constant 0 : index
    %c96 = arith.constant 96 : index
    %302 = vector.load %arg8[%c0_119, %c96] : memref<8x128xbf16, #tpu.memory_space<vmem>>, vector<8x8xbf16>
    tpu.vector_store %arg8[%c0_119, %c96], %301 {strides = array<i32>} : memref<8x128xbf16, #tpu.memory_space<vmem>>, vector<8x8xbf16>,
    %c13 = arith.constant 13 : index
    %c0_120 = arith.constant 0 : index
    %303 = vector.load %arg5[%c13, %c0_120] : memref<80x64xf32, #tpu.memory_space<vmem>>, vector<1x64xf32>
    %304 = vector.broadcast %303 : vector<1x64xf32> to vector<8x64xf32>
    %305 = arith.mulf %5, %304 : vector<8x64xf32>
    %c29 = arith.constant 29 : index
    %c0_121 = arith.constant 0 : index
    %306 = vector.load %arg5[%c29, %c0_121] : memref<80x64xf32, #tpu.memory_space<vmem>>, vector<1x64xf32>
    %307 = vector.broadcast %306 : vector<1x64xf32> to vector<8x64xf32>
    %308 = arith.mulf %8, %307 : vector<8x64xf32>
    %309 = arith.addf %305, %308 : vector<8x64xf32>
    %c45 = arith.constant 45 : index
    %c0_122 = arith.constant 0 : index
    %310 = vector.load %arg5[%c45, %c0_122] : memref<80x64xf32, #tpu.memory_space<vmem>>, vector<1x64xf32>
    %311 = vector.broadcast %310 : vector<1x64xf32> to vector<8x64xf32>
    %312 = arith.mulf %11, %311 : vector<8x64xf32>
    %313 = arith.addf %309, %312 : vector<8x64xf32>
    %c61 = arith.constant 61 : index
    %c0_123 = arith.constant 0 : index
    %314 = vector.load %arg5[%c61, %c0_123] : memref<80x64xf32, #tpu.memory_space<vmem>>, vector<1x64xf32>
    %315 = vector.broadcast %314 : vector<1x64xf32> to vector<8x64xf32>
    %316 = arith.mulf %14, %315 : vector<8x64xf32>
    %317 = arith.addf %313, %316 : vector<8x64xf32>
    %c77 = arith.constant 77 : index
    %c0_124 = arith.constant 0 : index
    %318 = vector.load %arg5[%c77, %c0_124] : memref<80x64xf32, #tpu.memory_space<vmem>>, vector<1x64xf32>
    %319 = vector.broadcast %318 : vector<1x64xf32> to vector<8x64xf32>
    %320 = arith.addf %317, %319 : vector<8x64xf32>
    %321 = arith.truncf %320 : vector<8x64xf32> to vector<8x64xbf16>
    %cst_125 = arith.constant dense<0.000000e+00> : vector<8x8xf32>
    %322 = tpu.matmul %321, %16, %cst_125 {dimension_numbers = #tpu.dot_dimension_numbers<[1], [0], [0], [1], [0, 0, 1, 1], [], []>} : vector<8x64xbf16>, vector<64x8xbf16>, vector<8x8xf32> -> vector<8x8xf32>
    %323 = arith.truncf %322 : vector<8x8xf32> to vector<8x8xbf16>
    %c0_126 = arith.constant 0 : index
    %c104 = arith.constant 104 : index
    %324 = vector.load %arg8[%c0_126, %c104] : memref<8x128xbf16, #tpu.memory_space<vmem>>, vector<8x8xbf16>
    tpu.vector_store %arg8[%c0_126, %c104], %323 {strides = array<i32>} : memref<8x128xbf16, #tpu.memory_space<vmem>>, vector<8x8xbf16>,
    %c14 = arith.constant 14 : index
    %c0_127 = arith.constant 0 : index
    %325 = vector.load %arg5[%c14, %c0_127] : memref<80x64xf32, #tpu.memory_space<vmem>>, vector<1x64xf32>
    %326 = vector.broadcast %325 : vector<1x64xf32> to vector<8x64xf32>
    %327 = arith.mulf %5, %326 : vector<8x64xf32>
    %c30 = arith.constant 30 : index
    %c0_128 = arith.constant 0 : index
    %328 = vector.load %arg5[%c30, %c0_128] : memref<80x64xf32, #tpu.memory_space<vmem>>, vector<1x64xf32>
    %329 = vector.broadcast %328 : vector<1x64xf32> to vector<8x64xf32>
    %330 = arith.mulf %8, %329 : vector<8x64xf32>
    %331 = arith.addf %327, %330 : vector<8x64xf32>
    %c46 = arith.constant 46 : index
    %c0_129 = arith.constant 0 : index
    %332 = vector.load %arg5[%c46, %c0_129] : memref<80x64xf32, #tpu.memory_space<vmem>>, vector<1x64xf32>
    %333 = vector.broadcast %332 : vector<1x64xf32> to vector<8x64xf32>
    %334 = arith.mulf %11, %333 : vector<8x64xf32>
    %335 = arith.addf %331, %334 : vector<8x64xf32>
    %c62 = arith.constant 62 : index
    %c0_130 = arith.constant 0 : index
    %336 = vector.load %arg5[%c62, %c0_130] : memref<80x64xf32, #tpu.memory_space<vmem>>, vector<1x64xf32>
    %337 = vector.broadcast %336 : vector<1x64xf32> to vector<8x64xf32>
    %338 = arith.mulf %14, %337 : vector<8x64xf32>
    %339 = arith.addf %335, %338 : vector<8x64xf32>
    %c78 = arith.constant 78 : index
    %c0_131 = arith.constant 0 : index
    %340 = vector.load %arg5[%c78, %c0_131] : memref<80x64xf32, #tpu.memory_space<vmem>>, vector<1x64xf32>
    %341 = vector.broadcast %340 : vector<1x64xf32> to vector<8x64xf32>
    %342 = arith.addf %339, %341 : vector<8x64xf32>
    %343 = arith.truncf %342 : vector<8x64xf32> to vector<8x64xbf16>
    %cst_132 = arith.constant dense<0.000000e+00> : vector<8x8xf32>
    %344 = tpu.matmul %343, %16, %cst_132 {dimension_numbers = #tpu.dot_dimension_numbers<[1], [0], [0], [1], [0, 0, 1, 1], [], []>} : vector<8x64xbf16>, vector<64x8xbf16>, vector<8x8xf32> -> vector<8x8xf32>
    %345 = arith.truncf %344 : vector<8x8xf32> to vector<8x8xbf16>
    %c0_133 = arith.constant 0 : index
    %c112 = arith.constant 112 : index
    %346 = vector.load %arg8[%c0_133, %c112] : memref<8x128xbf16, #tpu.memory_space<vmem>>, vector<8x8xbf16>
    tpu.vector_store %arg8[%c0_133, %c112], %345 {strides = array<i32>} : memref<8x128xbf16, #tpu.memory_space<vmem>>, vector<8x8xbf16>,
    %c15 = arith.constant 15 : index
    %c0_134 = arith.constant 0 : index
    %347 = vector.load %arg5[%c15, %c0_134] : memref<80x64xf32, #tpu.memory_space<vmem>>, vector<1x64xf32>
    %348 = vector.broadcast %347 : vector<1x64xf32> to vector<8x64xf32>
    %349 = arith.mulf %5, %348 : vector<8x64xf32>
    %c31 = arith.constant 31 : index
    %c0_135 = arith.constant 0 : index
    %350 = vector.load %arg5[%c31, %c0_135] : memref<80x64xf32, #tpu.memory_space<vmem>>, vector<1x64xf32>
    %351 = vector.broadcast %350 : vector<1x64xf32> to vector<8x64xf32>
    %352 = arith.mulf %8, %351 : vector<8x64xf32>
    %353 = arith.addf %349, %352 : vector<8x64xf32>
    %c47 = arith.constant 47 : index
    %c0_136 = arith.constant 0 : index
    %354 = vector.load %arg5[%c47, %c0_136] : memref<80x64xf32, #tpu.memory_space<vmem>>, vector<1x64xf32>
    %355 = vector.broadcast %354 : vector<1x64xf32> to vector<8x64xf32>
    %356 = arith.mulf %11, %355 : vector<8x64xf32>
    %357 = arith.addf %353, %356 : vector<8x64xf32>
    %c63 = arith.constant 63 : index
    %c0_137 = arith.constant 0 : index
    %358 = vector.load %arg5[%c63, %c0_137] : memref<80x64xf32, #tpu.memory_space<vmem>>, vector<1x64xf32>
    %359 = vector.broadcast %358 : vector<1x64xf32> to vector<8x64xf32>
    %360 = arith.mulf %14, %359 : vector<8x64xf32>
    %361 = arith.addf %357, %360 : vector<8x64xf32>
    %c79 = arith.constant 79 : index
    %c0_138 = arith.constant 0 : index
    %362 = vector.load %arg5[%c79, %c0_138] : memref<80x64xf32, #tpu.memory_space<vmem>>, vector<1x64xf32>
    %363 = vector.broadcast %362 : vector<1x64xf32> to vector<8x64xf32>
    %364 = arith.addf %361, %363 : vector<8x64xf32>
    %365 = arith.truncf %364 : vector<8x64xf32> to vector<8x64xbf16>
    %cst_139 = arith.constant dense<0.000000e+00> : vector<8x8xf32>
    %366 = tpu.matmul %365, %16, %cst_139 {dimension_numbers = #tpu.dot_dimension_numbers<[1], [0], [0], [1], [0, 0, 1, 1], [], []>} : vector<8x64xbf16>, vector<64x8xbf16>, vector<8x8xf32> -> vector<8x8xf32>
    %367 = arith.truncf %366 : vector<8x8xf32> to vector<8x8xbf16>
    %c0_140 = arith.constant 0 : index
    %c120 = arith.constant 120 : index
    %368 = vector.load %arg8[%c0_140, %c120] : memref<8x128xbf16, #tpu.memory_space<vmem>>, vector<8x8xbf16>
    tpu.vector_store %arg8[%c0_140, %c120], %367 {strides = array<i32>} : memref<8x128xbf16, #tpu.memory_space<vmem>>, vector<8x8xbf16>,
    %c0_141 = arith.constant 0 : index
    %c0_142 = arith.constant 0 : index
    %369 = vector.load %arg8[%c0_141, %c0_142] : memref<8x128xbf16, #tpu.memory_space<vmem>>, vector<8x128xbf16>
    %c0_143 = arith.constant 0 : index
    %c0_144 = arith.constant 0 : index
    %370 = vector.load %arg9[%c0_143, %c0_144] : memref<128x128xbf16, #tpu.memory_space<vmem>>, vector<128x128xbf16>
    %cst_145 = arith.constant dense<0.000000e+00> : vector<8x128xf32>
    %371 = tpu.matmul %369, %370, %cst_145 {dimension_numbers = #tpu.dot_dimension_numbers<[1], [0], [0], [1], [0, 0, 1, 1], [], []>} : vector<8x128xbf16>, vector<128x128xbf16>, vector<8x128xf32> -> vector<8x128xf32>
    %372 = arith.truncf %371 : vector<8x128xf32> to vector<8x128xbf16>
    %c0_146 = arith.constant 0 : index
    %c0_147 = arith.constant 0 : index
    %c0_148 = arith.constant 0 : index
    %373 = vector.load %arg7[%c0_146, %c0_147, %c0_148] : memref<1x8x128xbf16, #tpu.memory_space<vmem>>, vector<1x8x128xbf16>
    %374 = vector.shape_cast %373 : vector<1x8x128xbf16> to vector<8x128xbf16>
    %375 = vector.shape_cast %372 : vector<8x128xbf16> to vector<1x8x128xbf16>
    tpu.vector_store %arg7[%c0_146, %c0_147, %c0_148], %375 {strides = array<i32>} : memref<1x8x128xbf16, #tpu.memory_space<vmem>>, vector<1x8x128xbf16>,
    return
  }
  func.func @transform_0(%arg0: i32, %arg1: i32) -> (i32, i32, i32, i32) {
    %c0_i32 = arith.constant 0 : i32
    %c0_i32_0 = arith.constant 0 : i32
    %c0_i32_1 = arith.constant 0 : i32
    return %arg0, %c0_i32, %arg1, %c0_i32_0 : i32, i32, i32, i32
  }
  func.func @transform_1(%arg0: i32, %arg1: i32) -> (i32, i32, i32, i32) {
    %c0_i32 = arith.constant 0 : i32
    %c0_i32_0 = arith.constant 0 : i32
    %c0_i32_1 = arith.constant 0 : i32
    %c0_i32_2 = arith.constant 0 : i32
    return %arg0, %c0_i32, %c0_i32_0, %c0_i32_1 : i32, i32, i32, i32
  }
  func.func @transform_2(%arg0: i32, %arg1: i32) -> (i32, i32, i32) {
    %c0_i32 = arith.constant 0 : i32
    %c0_i32_0 = arith.constant 0 : i32
    %c0_i32_1 = arith.constant 0 : i32
    return %arg0, %c0_i32, %c0_i32_0 : i32, i32, i32
  }
  func.func @transform_3(%arg0: i32, %arg1: i32) -> (i32, i32) {
    %c0_i32 = arith.constant 0 : i32
    %c0_i32_0 = arith.constant 0 : i32
    %c0_i32_1 = arith.constant 0 : i32
    return %c0_i32, %c0_i32_0 : i32, i32
  }
  func.func @transform_4(%arg0: i32, %arg1: i32) -> (i32, i32) {
    %c0_i32 = arith.constant 0 : i32
    %c0_i32_0 = arith.constant 0 : i32
    %c0_i32_1 = arith.constant 0 : i32
    return %c0_i32, %c0_i32_0 : i32, i32
  }
  func.func @transform_5(%arg0: i32, %arg1: i32) -> (i32, i32, i32) {
    %c0_i32 = arith.constant 0 : i32
    %c0_i32_0 = arith.constant 0 : i32
    return %arg0, %arg1, %c0_i32 : i32, i32, i32
  }
}

</mosaic_0001>

<llo_original>
// kernel: pair_convolution2.1
$region0: #{pair_convolution2.1}
  #allocation0 [shape = 'u32[]', space=smem, size = 0x4, offset = 0x4, fixed_abs, tag = 'smem constant byte address 0x4 - core index']
  #allocation1 [shape = 'u32[144,128]{1,0:T(1,128)}', space=vmem, size = 0x12000, scoped, tag = 'internal scratch']
  #allocation2 [shape = 'bf16[8,128]{1,0:T(8,128)(2,1)}', space=vmem, size = 0x800, scoped, tag = 'scratch operand']
  #allocation3 [shape = 'bf16[128,128]{1,0:T(8,128)(2,1)}', space=vmem, size = 0x8000, scoped, tag = 'scratch operand']
  %s0 = inlined_call_operand.vmem [shape: f32[2,4,8,8], index: 0, kind: input, shape index: {}]
  %s1 = inlined_call_operand.vmem [shape: f32[2,4,8,8], index: 1, kind: input, shape index: {}]
  %s2 = inlined_call_operand.vmem [shape: bf16[2,64,8], index: 2, kind: input, shape index: {}]
  %s3 = inlined_call_operand.vmem [shape: f32[80,64], index: 3, kind: input, shape index: {}]
  %s4 = inlined_call_operand.vmem [shape: f32[80,128], index: 4, kind: input, shape index: {}]
  %s5 = inlined_call_operand.vmem [shape: bf16[2,8,128], index: 5, kind: output, shape index: {}]
  %s6 = sld [smem:[#allocation0]]
  $region57: #{pair_convolution2.1} parent=0
    _
  %s8 = ssub.s32 1, %s6
  %s9 = scalar_select 0, %s8, %s6
  loop: start=0, step=1, limit=4
  $region2: #{pair_convolution2.1} parent=0 // loop_pre_header
    _
  $region3: #{pair_convolution2.1} parent=0 // loop_header
    %s11 = sphi 0, %s15
    %p12 = scmp.ge.s32.totalorder %s11, 4
    %s18 = sphi 0, %s30
    %s19 = sphi 0, %s26
    %s20 = sphi 0, %s18
    %s21 = sphi 0, %s19
    %s22 = sphi 0, %s20
    %s23 = sphi 0, %s21
    %s35 = sphi 0, %s37
    %s38 = sphi 0, %s35
    %s39 = sphi 0, %s38
    %s55 = sphi 0, %s39
    %s61 = sphi 0, %s63
    %s64 = sphi 0, %s61
    %s65 = sphi 0, %s64
    %s81 = sphi 0, %s65
    %s87 = sphi 0, %s89
    %s90 = sphi 0, %s87
    %s91 = sphi 0, %s90
    %s107 = sphi 0, %s91
    %s111 = sphi 0, %s111
    %s113 = sphi 0, %s111
    %s114 = sphi 0, %s113
    %s128 = sphi 0, %s114
    %s132 = sphi 0, %s132
    %s134 = sphi 0, %s132
    %s135 = sphi 0, %s134
    %s149 = sphi 0, %s135
    %s157 = sphi 0, %s159
    %s160 = sphi 0, %s157
    %s161 = sphi 0, %s160
    %s177 = sphi 0, %s161
  $region4: #{pair_convolution2.1} parent=0 // loop_header_branch
    %14 = sbr.rel (%p12) target = $region8
  $region5: #{pair_convolution2.1} parent=0 // loop_body
    %s16 = ssub.s32 %s11, 1
    %s17 = ssub.s32 %s11, 2
    %s24 = sadd.s32 1, %s19
    %p25 = scmp.ge.s32.totalorder %s24, 1
    %s26 = scalar_select %p25, 0, %s24
    %s27 = sadd.s32 1, %s18
    %s28 = scalar_select %p25, %s27, %s18
    %p29 = scmp.ge.s32.totalorder %s28, 2
    %s30 = scalar_select %p29, 0, %s28
    %s31 = ssub.s32 %s18, %s30
    %s32 = ssub.s32 %s19, %s26
    %s33 = sor.u32 %s31, %s32
    %p34 = scmp.eq.s32.totalorder %s33, 0
    %s36 = sadd.s32 %s35, 1
    %s37 = scalar_select %p34, %s35, %s36
    %p40 = pneg %p34
    %p41 = scmp.eq.s32.totalorder %s11, 1
    %p42 = por %p40, %p41
    %p43 = scmp.ne.s32.totalorder %s35, %s38
    %p44 = scmp.eq.s32.totalorder %s11, 0
    %p45 = por %p43, %p44
    %p46 = scmp.ne.s32.totalorder %s35, %s38
    %p47 = scmp.eq.s32.totalorder %s16, 1
    %p48 = por %p46, %p47
    %p49 = scmp.ne.s32.totalorder %s38, %s39
    %p50 = scmp.eq.s32.totalorder %s16, 0
    %p51 = por %p49, %p50
    %p52 = scmp.ne.s32.totalorder %s38, %s39
    %p53 = scmp.eq.s32.totalorder %s17, 1
    %p54 = por %p52, %p53
    %p56 = scmp.ne.s32.totalorder %s39, %s55
    %p57 = scmp.eq.s32.totalorder %s17, 0
    %p58 = por %p56, %p57
    %s59 = ssub.s32 %s18, %s30
    %p60 = scmp.eq.s32.totalorder %s59, 0
    %s62 = sadd.s32 %s61, 1
    %s63 = scalar_select %p60, %s61, %s62
    %p66 = pneg %p60
    %p67 = scmp.eq.s32.totalorder %s11, 1
    %p68 = por %p66, %p67
    %p69 = scmp.ne.s32.totalorder %s61, %s64
    %p70 = scmp.eq.s32.totalorder %s11, 0
    %p71 = por %p69, %p70
    %p72 = scmp.ne.s32.totalorder %s61, %s64
    %p73 = scmp.eq.s32.totalorder %s16, 1
    %p74 = por %p72, %p73
    %p75 = scmp.ne.s32.totalorder %s64, %s65
    %p76 = scmp.eq.s32.totalorder %s16, 0
    %p77 = por %p75, %p76
    %p78 = scmp.ne.s32.totalorder %s64, %s65
    %p79 = scmp.eq.s32.totalorder %s17, 1
    %p80 = por %p78, %p79
    %p82 = scmp.ne.s32.totalorder %s65, %s81
    %p83 = scmp.eq.s32.totalorder %s17, 0
    %p84 = por %p82, %p83
    %s85 = ssub.s32 %s18, %s30
    %p86 = scmp.eq.s32.totalorder %s85, 0
    %s88 = sadd.s32 %s87, 1
    %s89 = scalar_select %p86, %s87, %s88
    %p92 = pneg %p86
    %p93 = scmp.eq.s32.totalorder %s11, 1
    %p94 = por %p92, %p93
    %p95 = scmp.ne.s32.totalorder %s87, %s90
    %p96 = scmp.eq.s32.totalorder %s11, 0
    %p97 = por %p95, %p96
    %p98 = scmp.ne.s32.totalorder %s87, %s90
    %p99 = scmp.eq.s32.totalorder %s16, 1
    %p100 = por %p98, %p99
    %p101 = scmp.ne.s32.totalorder %s90, %s91
    %p102 = scmp.eq.s32.totalorder %s16, 0
    %p103 = por %p101, %p102
    %p104 = scmp.ne.s32.totalorder %s90, %s91
    %p105 = scmp.eq.s32.totalorder %s17, 1
    %p106 = por %p104, %p105
    %p108 = scmp.ne.s32.totalorder %s91, %s107
    %p109 = scmp.eq.s32.totalorder %s17, 0
    %p110 = por %p108, %p109
    %s112 = sadd.s32 %s111, 1
    %p115 = scmp.eq.s32.totalorder %s11, 1
    %p116 = scmp.ne.s32.totalorder %s111, %s113
    %p117 = scmp.eq.s32.totalorder %s11, 0
    %p118 = por %p116, %p117
    %p119 = scmp.ne.s32.totalorder %s111, %s113
    %p120 = scmp.eq.s32.totalorder %s16, 1
    %p121 = por %p119, %p120
    %p122 = scmp.ne.s32.totalorder %s113, %s114
    %p123 = scmp.eq.s32.totalorder %s16, 0
    %p124 = por %p122, %p123
    %p125 = scmp.ne.s32.totalorder %s113, %s114
    %p126 = scmp.eq.s32.totalorder %s17, 1
    %p127 = por %p125, %p126
    %p129 = scmp.ne.s32.totalorder %s114, %s128
    %p130 = scmp.eq.s32.totalorder %s17, 0
    %p131 = por %p129, %p130
    %s133 = sadd.s32 %s132, 1
    %p136 = scmp.eq.s32.totalorder %s11, 1
    %p137 = scmp.ne.s32.totalorder %s132, %s134
    %p138 = scmp.eq.s32.totalorder %s11, 0
    %p139 = por %p137, %p138
    %p140 = scmp.ne.s32.totalorder %s132, %s134
    %p141 = scmp.eq.s32.totalorder %s16, 1
    %p142 = por %p140, %p141
    %p143 = scmp.ne.s32.totalorder %s134, %s135
    %p144 = scmp.eq.s32.totalorder %s16, 0
    %p145 = por %p143, %p144
    %p146 = scmp.ne.s32.totalorder %s134, %s135
    %p147 = scmp.eq.s32.totalorder %s17, 1
    %p148 = por %p146, %p147
    %p150 = scmp.ne.s32.totalorder %s135, %s149
    %p151 = scmp.eq.s32.totalorder %s17, 0
    %p152 = por %p150, %p151
    %s153 = ssub.s32 %s18, %s30
    %s154 = ssub.s32 %s19, %s26
    %s155 = sor.u32 %s153, %s154
    %p156 = scmp.eq.s32.totalorder %s155, 0
    %s158 = sadd.s32 %s157, 1
    %s159 = scalar_select %p156, %s157, %s158
    %p162 = pneg %p156
    %p163 = scmp.eq.s32.totalorder %s11, 1
    %p164 = por %p162, %p163
    %p165 = scmp.ne.s32.totalorder %s157, %s160
    %p166 = scmp.eq.s32.totalorder %s11, 0
    %p167 = por %p165, %p166
    %p168 = scmp.ne.s32.totalorder %s157, %s160
    %p169 = scmp.eq.s32.totalorder %s16, 1
    %p170 = por %p168, %p169
    %p171 = scmp.ne.s32.totalorder %s160, %s161
    %p172 = scmp.eq.s32.totalorder %s16, 0
    %p173 = por %p171, %p172
    %p174 = scmp.ne.s32.totalorder %s160, %s161
    %p175 = scmp.eq.s32.totalorder %s17, 1
    %p176 = por %p174, %p175
    %p178 = scmp.ne.s32.totalorder %s161, %s177
    %p179 = scmp.eq.s32.totalorder %s17, 0
    %p180 = por %p178, %p179
    %p181 = scmp.le.s32.totalorder 1, %s11
    %p182 = scmp.lt.s32.totalorder %s11, 3
    %p183 = pnand %p181, %p182
    %p184 = pneg %p183
    // Predicated region
    $region9: #{pair_convolution2.1} parent=5 // pred_check
      _
    $region10: #{pair_convolution2.1} parent=5 // pred_check_branch
      %186 = sbr.rel (%p183) target = $region12
    $region11: #{pair_convolution2.1} parent=5 // pred_region
      %s187 = ssub.s32 %s11, 1
      // Predicated region
      $region13: #{pair_convolution2.1} parent=11 // pred_check
        %p188 = pneg %p124
      $region14: #{pair_convolution2.1} parent=11 // pred_check_branch
        %190 = sbr.rel (%p188) target = $region16
      $region15: #{pair_convolution2.1} parent=11 // pred_region
        _
      $region16: #{pair_convolution2.1} parent=11 // pred_fallthru
        _
      // Predicated region
      $region17: #{pair_convolution2.1} parent=11 // pred_check
        %p191 = pneg %p145
      $region18: #{pair_convolution2.1} parent=11 // pred_check_branch
        %193 = sbr.rel (%p191) target = $region20
      $region19: #{pair_convolution2.1} parent=11 // pred_region
        _
      $region20: #{pair_convolution2.1} parent=11 // pred_fallthru
        _
    $region12: #{pair_convolution2.1} parent=5 // pred_fallthru
      _
    %p194 = scmp.lt.s32.totalorder %s11, 2
    // Predicated region
    $region21: #{pair_convolution2.1} parent=5 // pred_check
      %p195 = pneg %p194
    $region22: #{pair_convolution2.1} parent=5 // pred_check_branch
      %197 = sbr.rel (%p195) target = $region24
    $region23: #{pair_convolution2.1} parent=5 // pred_region
      // Predicated region
      $region25: #{pair_convolution2.1} parent=23 // pred_check
        %p198 = pneg %p45
      $region26: #{pair_convolution2.1} parent=23 // pred_check_branch
        %200 = sbr.rel (%p198) target = $region28
      $region27: #{pair_convolution2.1} parent=23 // pred_region
        %p201 = scmp.lt.s32.totalorder %s18, 1
        %s202 = scalar_select %p201, %s18, 1
        %p203 = scmp.lt.s32.totalorder %s19, 0
        %s204 = scalar_select %p203, %s19, 0
        %s205 = smul.addr %s202, 4
        %s206 = sadd.s32 %s204, %s205
        %s207 = smul.addr %s206, 8
        %s208 = scalar_lea.vmem %s0, %s207
      $region28: #{pair_convolution2.1} parent=23 // pred_fallthru
        _
      // Predicated region
      $region29: #{pair_convolution2.1} parent=23 // pred_check
        %p209 = pneg %p71
      $region30: #{pair_convolution2.1} parent=23 // pred_check_branch
        %211 = sbr.rel (%p209) target = $region32
      $region31: #{pair_convolution2.1} parent=23 // pred_region
        %p212 = scmp.lt.s32.totalorder %s18, 1
        %s213 = scalar_select %p212, %s18, 1
        %s214 = smul.addr %s213, 4
        %s215 = smul.addr %s214, 8
        %s216 = scalar_lea.vmem %s1, %s215
      $region32: #{pair_convolution2.1} parent=23 // pred_fallthru
        _
      // Predicated region
      $region33: #{pair_convolution2.1} parent=23 // pred_check
        %p217 = pneg %p97
      $region34: #{pair_convolution2.1} parent=23 // pred_check_branch
        %219 = sbr.rel (%p217) target = $region36
      $region35: #{pair_convolution2.1} parent=23 // pred_region
        %p220 = scmp.lt.s32.totalorder %s18, 1
        %s221 = scalar_select %p220, %s18, 1
        %s222 = smul.addr %s221, 8
        %s223 = smul.addr %s222, 4
        %s224 = scalar_lea.vmem %s2, %s223
      $region36: #{pair_convolution2.1} parent=23 // pred_fallthru
        _
    $region24: #{pair_convolution2.1} parent=5 // pred_fallthru
      _
    %p225 = scmp.le.s32.totalorder 1, %s11
    %p226 = scmp.lt.s32.totalorder %s11, 3
    %p227 = pnand %p225, %p226
    %p228 = pneg %p227
    // Predicated region
    $region37: #{pair_convolution2.1} parent=5 // pred_check
      _
    $region38: #{pair_convolution2.1} parent=5 // pred_check_branch
      %230 = sbr.rel (%p227) target = $region40
    $region39: #{pair_convolution2.1} parent=5 // pred_region
      %s231 = ssub.s32 %s11, 1
      %p232 = scmp.lt.s32.totalorder %s20, 1
      %s233 = scalar_select %p232, %s20, 1
      %p234 = scmp.lt.s32.totalorder %s21, 0
      %s235 = scalar_select %p234, %s21, 0
      %s236 = smul.addr %s233, 4
      %s237 = sadd.s32 %s235, %s236
      %s238 = smul.addr %s237, 8
      %s239 = scalar_lea.vmem %s0, %s238
      %p240 = pneg %p51
      %p241 = pneg %p48
      %p242 = scmp.lt.s32.totalorder %s20, 1
      %s243 = scalar_select %p242, %s20, 1
      %s244 = smul.addr %s243, 4
      %s245 = smul.addr %s244, 8
      %s246 = scalar_lea.vmem %s1, %s245
      %p247 = pneg %p77
      %p248 = pneg %p74
      %p249 = scmp.lt.s32.totalorder %s20, 1
      %s250 = scalar_select %p249, %s20, 1
      %s251 = smul.addr %s250, 8
      %s252 = smul.addr %s251, 4
      %s253 = scalar_lea.vmem %s2, %s252
      %p254 = pneg %p103
      %p255 = pneg %p100
      %p256 = pneg %p124
      %p257 = pneg %p121
      %p258 = pneg %p145
      %p259 = pneg %p142
      %p260 = pneg %p173
      %p261 = pneg %p170
      %p262 = scmp.lt.s32.totalorder %s20, 1
      %s263 = scalar_select %p262, %s20, 1
      %p264 = scmp.lt.s32.totalorder %s21, 0
      %s265 = scalar_select %p264, %s21, 0
      %s266 = sadd.s32 %s265, %s263
      %s267 = smul.addr %s266, 4
      %s268 = scalar_lea.vmem %s5, %s267
      %p269 = scmp.lt.s32.totalorder %s20, 1
      %s270 = scalar_select %p269, %s20, 1
      %p271 = scmp.lt.s32.totalorder %s21, 0
      %s272 = scalar_select %p271, %s21, 0
      %s273 = smul.addr %s270, 4
      %s274 = sadd.s32 %s272, %s273
      %s275 = smul.addr %s274, 8
      %s276 = scalar_lea.vmem %s0, %s275
      %p277 = scmp.lt.s32.totalorder %s20, 1
      %s278 = scalar_select %p277, %s20, 1
      %s279 = smul.addr %s278, 4
      %s280 = smul.addr %s279, 8
      %s281 = scalar_lea.vmem %s1, %s280
      %p282 = scmp.lt.s32.totalorder %s20, 1
      %s283 = scalar_select %p282, %s20, 1
      %s284 = smul.addr %s283, 8
      %s285 = smul.addr %s284, 4
      %s286 = scalar_lea.vmem %s2, %s285
      %p287 = scmp.lt.s32.totalorder %s20, 1
      %s288 = scalar_select %p287, %s20, 1
      %p289 = scmp.lt.s32.totalorder %s21, 0
      %s290 = scalar_select %p289, %s21, 0
      %s291 = sadd.s32 %s290, %s288
      %s292 = smul.addr %s291, 4
      %s293 = scalar_lea.vmem %s5, %s292
      %p295 = scmp.eq.s32.totalorder %s21, 0
      // Predicated region
      $region41: #{pair_convolution2.1} parent=39 // pred_check
        %p296 = pneg %p295
      $region42: #{pair_convolution2.1} parent=39 // pred_check_branch
        %298 = sbr.rel (%p296) target = $region44
      $region43: #{pair_convolution2.1} parent=39 // pred_region
        %v299 = vld [vmem:[%s281] sm:$0xff]
        %301 = vrot.lane.b32.xlu0 %v299, 8
        %v302 = vpop.permute.xlu0 %301
        %304 = vrot.lane.b32.xlu0 %v299, 16
        %v305 = vpop.permute.xlu0 %304
        %307 = vrot.lane.b32.xlu0 %v299, 24
        %v308 = vpop.permute.xlu0 %307
        %310 = vrot.lane.b32.xlu0 %v299, 32
        %v311 = vpop.permute.xlu0 %310
        %313 = vrot.lane.b32.xlu0 %v299, 40
        %v314 = vpop.permute.xlu0 %313
        %316 = vrot.lane.b32.xlu0 %v299, 48
        %v317 = vpop.permute.xlu0 %316
        %319 = vrot.lane.b32.xlu0 %v299, 56
        %v320 = vpop.permute.xlu0 %319
        %322 = vrot.lane.b32.xlu0 %v299, 64
        %v323 = vpop.permute.xlu0 %322
        %325 = vrot.lane.b32.xlu0 %v299, 72
        %v326 = vpop.permute.xlu0 %325
        %328 = vrot.lane.b32.xlu0 %v299, 80
        %v329 = vpop.permute.xlu0 %328
        %331 = vrot.lane.b32.xlu0 %v299, 88
        %v332 = vpop.permute.xlu0 %331
        %334 = vrot.lane.b32.xlu0 %v299, 96
        %v335 = vpop.permute.xlu0 %334
        %337 = vrot.lane.b32.xlu0 %v299, 104
        %v338 = vpop.permute.xlu0 %337
        %340 = vrot.lane.b32.xlu0 %v299, 112
        %v341 = vpop.permute.xlu0 %340
        %343 = vrot.lane.b32.xlu0 %v299, 120
        %v344 = vpop.permute.xlu0 %343
        %vm346 = vcmask 64512
        %v347 = vsel %vm346, %v299, %v302
        %vm348 = vcmask 130048
        %v349 = vsel %vm348, %v347, %v305
        %vm350 = vcmask 195584
        %v351 = vsel %vm350, %v349, %v308
        %vm352 = vcmask 261120
        %v353 = vsel %vm352, %v351, %v311
        %vm354 = vcmask 326656
        %v355 = vsel %vm354, %v353, %v314
        %vm356 = vcmask 392192
        %v357 = vsel %vm356, %v355, %v317
        %vm358 = vcmask 457728
        %v359 = vsel %vm358, %v357, %v320
        %vm360 = vcmask 523264
        %v361 = vsel %vm360, %v359, %v323
        %vm362 = vcmask 588800
        %v363 = vsel %vm362, %v361, %v326
        %vm364 = vcmask 654336
        %v365 = vsel %vm364, %v363, %v329
        %vm366 = vcmask 719872
        %v367 = vsel %vm366, %v365, %v332
        %vm368 = vcmask 785408
        %v369 = vsel %vm368, %v367, %v335
        %vm370 = vcmask 850944
        %v371 = vsel %vm370, %v369, %v338
        %vm372 = vcmask 916480
        %v373 = vsel %vm372, %v371, %v341
        %vm374 = vcmask 982016
        %v375 = vsel %vm374, %v373, %v344
        %s376 = scalar_lea.vmem %s281, 8
        %v377 = vld [vmem:[%s376] sm:$0xff]
        %379 = vrot.lane.b32.xlu0 %v377, 8
        %v380 = vpop.permute.xlu0 %379
        %382 = vrot.lane.b32.xlu0 %v377, 16
        %v383 = vpop.permute.xlu0 %382
        %385 = vrot.lane.b32.xlu0 %v377, 24
        %v386 = vpop.permute.xlu0 %385
        %388 = vrot.lane.b32.xlu0 %v377, 32
        %v389 = vpop.permute.xlu0 %388
        %391 = vrot.lane.b32.xlu0 %v377, 40
        %v392 = vpop.permute.xlu0 %391
        %394 = vrot.lane.b32.xlu0 %v377, 48
        %v395 = vpop.permute.xlu0 %394
        %397 = vrot.lane.b32.xlu0 %v377, 56
        %v398 = vpop.permute.xlu0 %397
        %400 = vrot.lane.b32.xlu0 %v377, 64
        %v401 = vpop.permute.xlu0 %400
        %403 = vrot.lane.b32.xlu0 %v377, 72
        %v404 = vpop.permute.xlu0 %403
        %406 = vrot.lane.b32.xlu0 %v377, 80
        %v407 = vpop.permute.xlu0 %406
        %409 = vrot.lane.b32.xlu0 %v377, 88
        %v410 = vpop.permute.xlu0 %409
        %412 = vrot.lane.b32.xlu0 %v377, 96
        %v413 = vpop.permute.xlu0 %412
        %415 = vrot.lane.b32.xlu0 %v377, 104
        %v416 = vpop.permute.xlu0 %415
        %418 = vrot.lane.b32.xlu0 %v377, 112
        %v419 = vpop.permute.xlu0 %418
        %421 = vrot.lane.b32.xlu0 %v377, 120
        %v422 = vpop.permute.xlu0 %421
        %v424 = vsel %vm346, %v377, %v380
        %v425 = vsel %vm348, %v424, %v383
        %v426 = vsel %vm350, %v425, %v386
        %v427 = vsel %vm352, %v426, %v389
        %v428 = vsel %vm354, %v427, %v392
        %v429 = vsel %vm356, %v428, %v395
        %v430 = vsel %vm358, %v429, %v398
        %v431 = vsel %vm360, %v430, %v401
        %v432 = vsel %vm362, %v431, %v404
        %v433 = vsel %vm364, %v432, %v407
        %v434 = vsel %vm366, %v433, %v410
        %v435 = vsel %vm368, %v434, %v413
        %v436 = vsel %vm370, %v435, %v416
        %v437 = vsel %vm372, %v436, %v419
        %v438 = vsel %vm374, %v437, %v422
        %s439 = scalar_lea.vmem %s281, 16
        %v440 = vld [vmem:[%s439] sm:$0xff]
        %442 = vrot.lane.b32.xlu0 %v440, 8
        %v443 = vpop.permute.xlu0 %442
        %445 = vrot.lane.b32.xlu0 %v440, 16
        %v446 = vpop.permute.xlu0 %445
        %448 = vrot.lane.b32.xlu0 %v440, 24
        %v449 = vpop.permute.xlu0 %448
        %451 = vrot.lane.b32.xlu0 %v440, 32
        %v452 = vpop.permute.xlu0 %451
        %454 = vrot.lane.b32.xlu0 %v440, 40
        %v455 = vpop.permute.xlu0 %454
        %457 = vrot.lane.b32.xlu0 %v440, 48
        %v458 = vpop.permute.xlu0 %457
        %460 = vrot.lane.b32.xlu0 %v440, 56
        %v461 = vpop.permute.xlu0 %460
        %463 = vrot.lane.b32.xlu0 %v440, 64
        %v464 = vpop.permute.xlu0 %463
        %466 = vrot.lane.b32.xlu0 %v440, 72
        %v467 = vpop.permute.xlu0 %466
        %469 = vrot.lane.b32.xlu0 %v440, 80
        %v470 = vpop.permute.xlu0 %469
        %472 = vrot.lane.b32.xlu0 %v440, 88
        %v473 = vpop.permute.xlu0 %472
        %475 = vrot.lane.b32.xlu0 %v440, 96
        %v476 = vpop.permute.xlu0 %475
        %478 = vrot.lane.b32.xlu0 %v440, 104
        %v479 = vpop.permute.xlu0 %478
        %481 = vrot.lane.b32.xlu0 %v440, 112
        %v482 = vpop.permute.xlu0 %481
        %484 = vrot.lane.b32.xlu0 %v440, 120
        %v485 = vpop.permute.xlu0 %484
        %v487 = vsel %vm346, %v440, %v443
        %v488 = vsel %vm348, %v487, %v446
        %v489 = vsel %vm350, %v488, %v449
        %v490 = vsel %vm352, %v489, %v452
        %v491 = vsel %vm354, %v490, %v455
        %v492 = vsel %vm356, %v491, %v458
        %v493 = vsel %vm358, %v492, %v461
        %v494 = vsel %vm360, %v493, %v464
        %v495 = vsel %vm362, %v494, %v467
        %v496 = vsel %vm364, %v495, %v470
        %v497 = vsel %vm366, %v496, %v473
        %v498 = vsel %vm368, %v497, %v476
        %v499 = vsel %vm370, %v498, %v479
        %v500 = vsel %vm372, %v499, %v482
        %v501 = vsel %vm374, %v500, %v485
        %s502 = scalar_lea.vmem %s281, 24
        %v503 = vld [vmem:[%s502] sm:$0xff]
        %505 = vrot.lane.b32.xlu0 %v503, 8
        %v506 = vpop.permute.xlu0 %505
        %508 = vrot.lane.b32.xlu0 %v503, 16
        %v509 = vpop.permute.xlu0 %508
        %511 = vrot.lane.b32.xlu0 %v503, 24
        %v512 = vpop.permute.xlu0 %511
        %514 = vrot.lane.b32.xlu0 %v503, 32
        %v515 = vpop.permute.xlu0 %514
        %517 = vrot.lane.b32.xlu0 %v503, 40
        %v518 = vpop.permute.xlu0 %517
        %520 = vrot.lane.b32.xlu0 %v503, 48
        %v521 = vpop.permute.xlu0 %520
        %523 = vrot.lane.b32.xlu0 %v503, 56
        %v524 = vpop.permute.xlu0 %523
        %526 = vrot.lane.b32.xlu0 %v503, 64
        %v527 = vpop.permute.xlu0 %526
        %529 = vrot.lane.b32.xlu0 %v503, 72
        %v530 = vpop.permute.xlu0 %529
        %532 = vrot.lane.b32.xlu0 %v503, 80
        %v533 = vpop.permute.xlu0 %532
        %535 = vrot.lane.b32.xlu0 %v503, 88
        %v536 = vpop.permute.xlu0 %535
        %538 = vrot.lane.b32.xlu0 %v503, 96
        %v539 = vpop.permute.xlu0 %538
        %541 = vrot.lane.b32.xlu0 %v503, 104
        %v542 = vpop.permute.xlu0 %541
        %544 = vrot.lane.b32.xlu0 %v503, 112
        %v545 = vpop.permute.xlu0 %544
        %547 = vrot.lane.b32.xlu0 %v503, 120
        %v548 = vpop.permute.xlu0 %547
        %v550 = vsel %vm346, %v503, %v506
        %v551 = vsel %vm348, %v550, %v509
        %v552 = vsel %vm350, %v551, %v512
        %v553 = vsel %vm352, %v552, %v515
        %v554 = vsel %vm354, %v553, %v518
        %v555 = vsel %vm356, %v554, %v521
        %v556 = vsel %vm358, %v555, %v524
        %v557 = vsel %vm360, %v556, %v527
        %v558 = vsel %vm362, %v557, %v530
        %v559 = vsel %vm364, %v558, %v533
        %v560 = vsel %vm366, %v559, %v536
        %v561 = vsel %vm368, %v560, %v539
        %v562 = vsel %vm370, %v561, %v542
        %v563 = vsel %vm372, %v562, %v545
        %v564 = vsel %vm374, %v563, %v548
        %v565 = vld [vmem:[%s4] sm:$0x1]
        %v566 = vlaneseq
        %v567 = vshrl.u32 %v566, 7
        %v568 = vsub.s32 0, %v567
        %v569 = vrot.slane %v565, %v568
        %v570 = vmul.f32 %v375, %v569
        %v571 = vld [vmem:[%s4 + $0x10] sm:$0x1]
        %v572 = vlaneseq
        %v573 = vshrl.u32 %v572, 7
        %v574 = vsub.s32 0, %v573
        %v575 = vrot.slane %v571, %v574
        %v576 = vmul.f32 %v438, %v575
        %v577 = vadd.f32 %v570, %v576
        %v578 = vld [vmem:[%s4 + $0x20] sm:$0x1]
        %v579 = vlaneseq
        %v580 = vshrl.u32 %v579, 7
        %v581 = vsub.s32 0, %v580
        %v582 = vrot.slane %v578, %v581
        %v583 = vmul.f32 %v501, %v582
        %v584 = vadd.f32 %v577, %v583
        %v585 = vld [vmem:[%s4 + $0x30] sm:$0x1]
        %v586 = vlaneseq
        %v587 = vshrl.u32 %v586, 7
        %v588 = vsub.s32 0, %v587
        %v589 = vrot.slane %v585, %v588
        %v590 = vmul.f32 %v564, %v589
        %v591 = vadd.f32 %v584, %v590
        %v592 = vld [vmem:[%s4 + $0x40] sm:$0x1]
        %v593 = vlaneseq
        %v594 = vshrl.u32 %v593, 7
        %v595 = vsub.s32 0, %v594
        %v596 = vrot.slane %v592, %v595
        %v597 = vadd.f32 %v591, %v596
        %v598 = vpack.c.bf16 %v597, %v597
        %599 = vst [vmem:[#allocation3] sm:$0xf] %v598
        %v600 = vld [vmem:[%s4 + $0x1] sm:$0x1]
        %v601 = vlaneseq
        %v602 = vshrl.u32 %v601, 7
        %v603 = vsub.s32 0, %v602
        %v604 = vrot.slane %v600, %v603
        %v605 = vmul.f32 %v375, %v604
        %v606 = vld [vmem:[%s4 + $0x11] sm:$0x1]
        %v607 = vlaneseq
        %v608 = vshrl.u32 %v607, 7
        %v609 = vsub.s32 0, %v608
        %v610 = vrot.slane %v606, %v609
        %v611 = vmul.f32 %v438, %v610
        %v612 = vadd.f32 %v605, %v611
        %v613 = vld [vmem:[%s4 + $0x21] sm:$0x1]
        %v614 = vlaneseq
        %v615 = vshrl.u32 %v614, 7
        %v616 = vsub.s32 0, %v615
        %v617 = vrot.slane %v613, %v616
        %v618 = vmul.f32 %v501, %v617
        %v619 = vadd.f32 %v612, %v618
        %v620 = vld [vmem:[%s4 + $0x31] sm:$0x1]
        %v621 = vlaneseq
        %v622 = vshrl.u32 %v621, 7
        %v623 = vsub.s32 0, %v622
        %v624 = vrot.slane %v620, %v623
        %v625 = vmul.f32 %v564, %v624
        %v626 = vadd.f32 %v619, %v625
        %v627 = vld [vmem:[%s4 + $0x41] sm:$0x1]
        %v628 = vlaneseq
        %v629 = vshrl.u32 %v628, 7
        %v630 = vsub.s32 0, %v629
        %v631 = vrot.slane %v627, %v630
        %v632 = vadd.f32 %v626, %v631
        %v633 = vpack.c.bf16 %v632, %v632
        %634 = vst [vmem:[#allocation3 + $0x4] sm:$0xf] %v633
        %v635 = vld [vmem:[%s4 + $0x2] sm:$0x1]
        %v636 = vlaneseq
        %v637 = vshrl.u32 %v636, 7
        %v638 = vsub.s32 0, %v637
        %v639 = vrot.slane %v635, %v638
        %v640 = vmul.f32 %v375, %v639
        %v641 = vld [vmem:[%s4 + $0x12] sm:$0x1]
        %v642 = vlaneseq
        %v643 = vshrl.u32 %v642, 7
        %v644 = vsub.s32 0, %v643
        %v645 = vrot.slane %v641, %v644
        %v646 = vmul.f32 %v438, %v645
        %v647 = vadd.f32 %v640, %v646
        %v648 = vld [vmem:[%s4 + $0x22] sm:$0x1]
        %v649 = vlaneseq
        %v650 = vshrl.u32 %v649, 7
        %v651 = vsub.s32 0, %v650
        %v652 = vrot.slane %v648, %v651
        %v653 = vmul.f32 %v501, %v652
        %v654 = vadd.f32 %v647, %v653
        %v655 = vld [vmem:[%s4 + $0x32] sm:$0x1]
        %v656 = vlaneseq
        %v657 = vshrl.u32 %v656, 7
        %v658 = vsub.s32 0, %v657
        %v659 = vrot.slane %v655, %v658
        %v660 = vmul.f32 %v564, %v659
        %v661 = vadd.f32 %v654, %v660
        %v662 = vld [vmem:[%s4 + $0x42] sm:$0x1]
        %v663 = vlaneseq
        %v664 = vshrl.u32 %v663, 7
        %v665 = vsub.s32 0, %v664
        %v666 = vrot.slane %v662, %v665
        %v667 = vadd.f32 %v661, %v666
        %v668 = vpack.c.bf16 %v667, %v667
        %669 = vst [vmem:[#allocation3 + $0x8] sm:$0xf] %v668
        %v670 = vld [vmem:[%s4 + $0x3] sm:$0x1]
        %v671 = vlaneseq
        %v672 = vshrl.u32 %v671, 7
        %v673 = vsub.s32 0, %v672
        %v674 = vrot.slane %v670, %v673
        %v675 = vmul.f32 %v375, %v674
        %v676 = vld [vmem:[%s4 + $0x13] sm:$0x1]
        %v677 = vlaneseq
        %v678 = vshrl.u32 %v677, 7
        %v679 = vsub.s32 0, %v678
        %v680 = vrot.slane %v676, %v679
        %v681 = vmul.f32 %v438, %v680
        %v682 = vadd.f32 %v675, %v681
        %v683 = vld [vmem:[%s4 + $0x23] sm:$0x1]
        %v684 = vlaneseq
        %v685 = vshrl.u32 %v684, 7
        %v686 = vsub.s32 0, %v685
        %v687 = vrot.slane %v683, %v686
        %v688 = vmul.f32 %v501, %v687
        %v689 = vadd.f32 %v682, %v688
        %v690 = vld [vmem:[%s4 + $0x33] sm:$0x1]
        %v691 = vlaneseq
        %v692 = vshrl.u32 %v691, 7
        %v693 = vsub.s32 0, %v692
        %v694 = vrot.slane %v690, %v693
        %v695 = vmul.f32 %v564, %v694
        %v696 = vadd.f32 %v689, %v695
        %v697 = vld [vmem:[%s4 + $0x43] sm:$0x1]
        %v698 = vlaneseq
        %v699 = vshrl.u32 %v698, 7
        %v700 = vsub.s32 0, %v699
        %v701 = vrot.slane %v697, %v700
        %v702 = vadd.f32 %v696, %v701
        %v703 = vpack.c.bf16 %v702, %v702
        %704 = vst [vmem:[#allocation3 + $0xc] sm:$0xf] %v703
        %v705 = vld [vmem:[%s4 + $0x4] sm:$0x1]
        %v706 = vlaneseq
        %v707 = vshrl.u32 %v706, 7
        %v708 = vsub.s32 0, %v707
        %v709 = vrot.slane %v705, %v708
        %v710 = vmul.f32 %v375, %v709
        %v711 = vld [vmem:[%s4 + $0x14] sm:$0x1]
        %v712 = vlaneseq
        %v713 = vshrl.u32 %v712, 7
        %v714 = vsub.s32 0, %v713
        %v715 = vrot.slane %v711, %v714
        %v716 = vmul.f32 %v438, %v715
        %v717 = vadd.f32 %v710, %v716
        %v718 = vld [vmem:[%s4 + $0x24] sm:$0x1]
        %v719 = vlaneseq
        %v720 = vshrl.u32 %v719, 7
        %v721 = vsub.s32 0, %v720
        %v722 = vrot.slane %v718, %v721
        %v723 = vmul.f32 %v501, %v722
        %v724 = vadd.f32 %v717, %v723
        %v725 = vld [vmem:[%s4 + $0x34] sm:$0x1]
        %v726 = vlaneseq
        %v727 = vshrl.u32 %v726, 7
        %v728 = vsub.s32 0, %v727
        %v729 = vrot.slane %v725, %v728
        %v730 = vmul.f32 %v564, %v729
        %v731 = vadd.f32 %v724, %v730
        %v732 = vld [vmem:[%s4 + $0x44] sm:$0x1]
        %v733 = vlaneseq
        %v734 = vshrl.u32 %v733, 7
        %v735 = vsub.s32 0, %v734
        %v736 = vrot.slane %v732, %v735
        %v737 = vadd.f32 %v731, %v736
        %v738 = vpack.c.bf16 %v737, %v737
        %739 = vst [vmem:[#allocation3 + $0x10] sm:$0xf] %v738
        %v740 = vld [vmem:[%s4 + $0x5] sm:$0x1]
        %v741 = vlaneseq
        %v742 = vshrl.u32 %v741, 7
        %v743 = vsub.s32 0, %v742
        %v744 = vrot.slane %v740, %v743
        %v745 = vmul.f32 %v375, %v744
        %v746 = vld [vmem:[%s4 + $0x15] sm:$0x1]
        %v747 = vlaneseq
        %v748 = vshrl.u32 %v747, 7
        %v749 = vsub.s32 0, %v748
        %v750 = vrot.slane %v746, %v749
        %v751 = vmul.f32 %v438, %v750
        %v752 = vadd.f32 %v745, %v751
        %v753 = vld [vmem:[%s4 + $0x25] sm:$0x1]
        %v754 = vlaneseq
        %v755 = vshrl.u32 %v754, 7
        %v756 = vsub.s32 0, %v755
        %v757 = vrot.slane %v753, %v756
        %v758 = vmul.f32 %v501, %v757
        %v759 = vadd.f32 %v752, %v758
        %v760 = vld [vmem:[%s4 + $0x35] sm:$0x1]
        %v761 = vlaneseq
        %v762 = vshrl.u32 %v761, 7
        %v763 = vsub.s32 0, %v762
        %v764 = vrot.slane %v760, %v763
        %v765 = vmul.f32 %v564, %v764
        %v766 = vadd.f32 %v759, %v765
        %v767 = vld [vmem:[%s4 + $0x45] sm:$0x1]
        %v768 = vlaneseq
        %v769 = vshrl.u32 %v768, 7
        %v770 = vsub.s32 0, %v769
        %v771 = vrot.slane %v767, %v770
        %v772 = vadd.f32 %v766, %v771
        %v773 = vpack.c.bf16 %v772, %v772
        %774 = vst [vmem:[#allocation3 + $0x14] sm:$0xf] %v773
        %v775 = vld [vmem:[%s4 + $0x6] sm:$0x1]
        %v776 = vlaneseq
        %v777 = vshrl.u32 %v776, 7
        %v778 = vsub.s32 0, %v777
        %v779 = vrot.slane %v775, %v778
        %v780 = vmul.f32 %v375, %v779
        %v781 = vld [vmem:[%s4 + $0x16] sm:$0x1]
        %v782 = vlaneseq
        %v783 = vshrl.u32 %v782, 7
        %v784 = vsub.s32 0, %v783
        %v785 = vrot.slane %v781, %v784
        %v786 = vmul.f32 %v438, %v785
        %v787 = vadd.f32 %v780, %v786
        %v788 = vld [vmem:[%s4 + $0x26] sm:$0x1]
        %v789 = vlaneseq
        %v790 = vshrl.u32 %v789, 7
        %v791 = vsub.s32 0, %v790
        %v792 = vrot.slane %v788, %v791
        %v793 = vmul.f32 %v501, %v792
        %v794 = vadd.f32 %v787, %v793
        %v795 = vld [vmem:[%s4 + $0x36] sm:$0x1]
        %v796 = vlaneseq
        %v797 = vshrl.u32 %v796, 7
        %v798 = vsub.s32 0, %v797
        %v799 = vrot.slane %v795, %v798
        %v800 = vmul.f32 %v564, %v799
        %v801 = vadd.f32 %v794, %v800
        %v802 = vld [vmem:[%s4 + $0x46] sm:$0x1]
        %v803 = vlaneseq
        %v804 = vshrl.u32 %v803, 7
        %v805 = vsub.s32 0, %v804
        %v806 = vrot.slane %v802, %v805
        %v807 = vadd.f32 %v801, %v806
        %v808 = vpack.c.bf16 %v807, %v807
        %809 = vst [vmem:[#allocation3 + $0x18] sm:$0xf] %v808
        %v810 = vld [vmem:[%s4 + $0x7] sm:$0x1]
        %v811 = vlaneseq
        %v812 = vshrl.u32 %v811, 7
        %v813 = vsub.s32 0, %v812
        %v814 = vrot.slane %v810, %v813
        %v815 = vmul.f32 %v375, %v814
        %v816 = vld [vmem:[%s4 + $0x17] sm:$0x1]
        %v817 = vlaneseq
        %v818 = vshrl.u32 %v817, 7
        %v819 = vsub.s32 0, %v818
        %v820 = vrot.slane %v816, %v819
        %v821 = vmul.f32 %v438, %v820
        %v822 = vadd.f32 %v815, %v821
        %v823 = vld [vmem:[%s4 + $0x27] sm:$0x1]
        %v824 = vlaneseq
        %v825 = vshrl.u32 %v824, 7
        %v826 = vsub.s32 0, %v825
        %v827 = vrot.slane %v823, %v826
        %v828 = vmul.f32 %v501, %v827
        %v829 = vadd.f32 %v822, %v828
        %v830 = vld [vmem:[%s4 + $0x37] sm:$0x1]
        %v831 = vlaneseq
        %v832 = vshrl.u32 %v831, 7
        %v833 = vsub.s32 0, %v832
        %v834 = vrot.slane %v830, %v833
        %v835 = vmul.f32 %v564, %v834
        %v836 = vadd.f32 %v829, %v835
        %v837 = vld [vmem:[%s4 + $0x47] sm:$0x1]
        %v838 = vlaneseq
        %v839 = vshrl.u32 %v838, 7
        %v840 = vsub.s32 0, %v839
        %v841 = vrot.slane %v837, %v840
        %v842 = vadd.f32 %v836, %v841
        %v843 = vpack.c.bf16 %v842, %v842
        %844 = vst [vmem:[#allocation3 + $0x1c] sm:$0xf] %v843
        %v845 = vld [vmem:[%s4 + $0x8] sm:$0x1]
        %v846 = vlaneseq
        %v847 = vshrl.u32 %v846, 7
        %v848 = vsub.s32 0, %v847
        %v849 = vrot.slane %v845, %v848
        %v850 = vmul.f32 %v375, %v849
        %v851 = vld [vmem:[%s4 + $0x18] sm:$0x1]
        %v852 = vlaneseq
        %v853 = vshrl.u32 %v852, 7
        %v854 = vsub.s32 0, %v853
        %v855 = vrot.slane %v851, %v854
        %v856 = vmul.f32 %v438, %v855
        %v857 = vadd.f32 %v850, %v856
        %v858 = vld [vmem:[%s4 + $0x28] sm:$0x1]
        %v859 = vlaneseq
        %v860 = vshrl.u32 %v859, 7
        %v861 = vsub.s32 0, %v860
        %v862 = vrot.slane %v858, %v861
        %v863 = vmul.f32 %v501, %v862
        %v864 = vadd.f32 %v857, %v863
        %v865 = vld [vmem:[%s4 + $0x38] sm:$0x1]
        %v866 = vlaneseq
        %v867 = vshrl.u32 %v866, 7
        %v868 = vsub.s32 0, %v867
        %v869 = vrot.slane %v865, %v868
        %v870 = vmul.f32 %v564, %v869
        %v871 = vadd.f32 %v864, %v870
        %v872 = vld [vmem:[%s4 + $0x48] sm:$0x1]
        %v873 = vlaneseq
        %v874 = vshrl.u32 %v873, 7
        %v875 = vsub.s32 0, %v874
        %v876 = vrot.slane %v872, %v875
        %v877 = vadd.f32 %v871, %v876
        %v878 = vpack.c.bf16 %v877, %v877
        %879 = vst [vmem:[#allocation3 + $0x20] sm:$0xf] %v878
        %v880 = vld [vmem:[%s4 + $0x9] sm:$0x1]
        %v881 = vlaneseq
        %v882 = vshrl.u32 %v881, 7
        %v883 = vsub.s32 0, %v882
        %v884 = vrot.slane %v880, %v883
        %v885 = vmul.f32 %v375, %v884
        %v886 = vld [vmem:[%s4 + $0x19] sm:$0x1]
        %v887 = vlaneseq
        %v888 = vshrl.u32 %v887, 7
        %v889 = vsub.s32 0, %v888
        %v890 = vrot.slane %v886, %v889
        %v891 = vmul.f32 %v438, %v890
        %v892 = vadd.f32 %v885, %v891
        %v893 = vld [vmem:[%s4 + $0x29] sm:$0x1]
        %v894 = vlaneseq
        %v895 = vshrl.u32 %v894, 7
        %v896 = vsub.s32 0, %v895
        %v897 = vrot.slane %v893, %v896
        %v898 = vmul.f32 %v501, %v897
        %v899 = vadd.f32 %v892, %v898
        %v900 = vld [vmem:[%s4 + $0x39] sm:$0x1]
        %v901 = vlaneseq
        %v902 = vshrl.u32 %v901, 7
        %v903 = vsub.s32 0, %v902
        %v904 = vrot.slane %v900, %v903
        %v905 = vmul.f32 %v564, %v904
        %v906 = vadd.f32 %v899, %v905
        %v907 = vld [vmem:[%s4 + $0x49] sm:$0x1]
        %v908 = vlaneseq
        %v909 = vshrl.u32 %v908, 7
        %v910 = vsub.s32 0, %v909
        %v911 = vrot.slane %v907, %v910
        %v912 = vadd.f32 %v906, %v911
        %v913 = vpack.c.bf16 %v912, %v912
        %914 = vst [vmem:[#allocation3 + $0x24] sm:$0xf] %v913
        %v915 = vld [vmem:[%s4 + $0xa] sm:$0x1]
        %v916 = vlaneseq
        %v917 = vshrl.u32 %v916, 7
        %v918 = vsub.s32 0, %v917
        %v919 = vrot.slane %v915, %v918
        %v920 = vmul.f32 %v375, %v919
        %v921 = vld [vmem:[%s4 + $0x1a] sm:$0x1]
        %v922 = vlaneseq
        %v923 = vshrl.u32 %v922, 7
        %v924 = vsub.s32 0, %v923
        %v925 = vrot.slane %v921, %v924
        %v926 = vmul.f32 %v438, %v925
        %v927 = vadd.f32 %v920, %v926
        %v928 = vld [vmem:[%s4 + $0x2a] sm:$0x1]
        %v929 = vlaneseq
        %v930 = vshrl.u32 %v929, 7
        %v931 = vsub.s32 0, %v930
        %v932 = vrot.slane %v928, %v931
        %v933 = vmul.f32 %v501, %v932
        %v934 = vadd.f32 %v927, %v933
        %v935 = vld [vmem:[%s4 + $0x3a] sm:$0x1]
        %v936 = vlaneseq
        %v937 = vshrl.u32 %v936, 7
        %v938 = vsub.s32 0, %v937
        %v939 = vrot.slane %v935, %v938
        %v940 = vmul.f32 %v564, %v939
        %v941 = vadd.f32 %v934, %v940
        %v942 = vld [vmem:[%s4 + $0x4a] sm:$0x1]
        %v943 = vlaneseq
        %v944 = vshrl.u32 %v943, 7
        %v945 = vsub.s32 0, %v944
        %v946 = vrot.slane %v942, %v945
        %v947 = vadd.f32 %v941, %v946
        %v948 = vpack.c.bf16 %v947, %v947
        %949 = vst [vmem:[#allocation3 + $0x28] sm:$0xf] %v948
        %v950 = vld [vmem:[%s4 + $0xb] sm:$0x1]
        %v951 = vlaneseq
        %v952 = vshrl.u32 %v951, 7
        %v953 = vsub.s32 0, %v952
        %v954 = vrot.slane %v950, %v953
        %v955 = vmul.f32 %v375, %v954
        %v956 = vld [vmem:[%s4 + $0x1b] sm:$0x1]
        %v957 = vlaneseq
        %v958 = vshrl.u32 %v957, 7
        %v959 = vsub.s32 0, %v958
        %v960 = vrot.slane %v956, %v959
        %v961 = vmul.f32 %v438, %v960
        %v962 = vadd.f32 %v955, %v961
        %v963 = vld [vmem:[%s4 + $0x2b] sm:$0x1]
        %v964 = vlaneseq
        %v965 = vshrl.u32 %v964, 7
        %v966 = vsub.s32 0, %v965
        %v967 = vrot.slane %v963, %v966
        %v968 = vmul.f32 %v501, %v967
        %v969 = vadd.f32 %v962, %v968
        %v970 = vld [vmem:[%s4 + $0x3b] sm:$0x1]
        %v971 = vlaneseq
        %v972 = vshrl.u32 %v971, 7
        %v973 = vsub.s32 0, %v972
        %v974 = vrot.slane %v970, %v973
        %v975 = vmul.f32 %v564, %v974
        %v976 = vadd.f32 %v969, %v975
        %v977 = vld [vmem:[%s4 + $0x4b] sm:$0x1]
        %v978 = vlaneseq
        %v979 = vshrl.u32 %v978, 7
        %v980 = vsub.s32 0, %v979
        %v981 = vrot.slane %v977, %v980
        %v982 = vadd.f32 %v976, %v981
        %v983 = vpack.c.bf16 %v982, %v982
        %984 = vst [vmem:[#allocation3 + $0x2c] sm:$0xf] %v983
        %v985 = vld [vmem:[%s4 + $0xc] sm:$0x1]
        %v986 = vlaneseq
        %v987 = vshrl.u32 %v986, 7
        %v988 = vsub.s32 0, %v987
        %v989 = vrot.slane %v985, %v988
        %v990 = vmul.f32 %v375, %v989
        %v991 = vld [vmem:[%s4 + $0x1c] sm:$0x1]
        %v992 = vlaneseq
        %v993 = vshrl.u32 %v992, 7
        %v994 = vsub.s32 0, %v993
        %v995 = vrot.slane %v991, %v994
        %v996 = vmul.f32 %v438, %v995
        %v997 = vadd.f32 %v990, %v996
        %v998 = vld [vmem:[%s4 + $0x2c] sm:$0x1]
        %v999 = vlaneseq
        %v1000 = vshrl.u32 %v999, 7
        %v1001 = vsub.s32 0, %v1000
        %v1002 = vrot.slane %v998, %v1001
        %v1003 = vmul.f32 %v501, %v1002
        %v1004 = vadd.f32 %v997, %v1003
        %v1005 = vld [vmem:[%s4 + $0x3c] sm:$0x1]
        %v1006 = vlaneseq
        %v1007 = vshrl.u32 %v1006, 7
        %v1008 = vsub.s32 0, %v1007
        %v1009 = vrot.slane %v1005, %v1008
        %v1010 = vmul.f32 %v564, %v1009
        %v1011 = vadd.f32 %v1004, %v1010
        %v1012 = vld [vmem:[%s4 + $0x4c] sm:$0x1]
        %v1013 = vlaneseq
        %v1014 = vshrl.u32 %v1013, 7
        %v1015 = vsub.s32 0, %v1014
        %v1016 = vrot.slane %v1012, %v1015
        %v1017 = vadd.f32 %v1011, %v1016
        %v1018 = vpack.c.bf16 %v1017, %v1017
        %1019 = vst [vmem:[#allocation3 + $0x30] sm:$0xf] %v1018
        %v1020 = vld [vmem:[%s4 + $0xd] sm:$0x1]
        %v1021 = vlaneseq
        %v1022 = vshrl.u32 %v1021, 7
        %v1023 = vsub.s32 0, %v1022
        %v1024 = vrot.slane %v1020, %v1023
        %v1025 = vmul.f32 %v375, %v1024
        %v1026 = vld [vmem:[%s4 + $0x1d] sm:$0x1]
        %v1027 = vlaneseq
        %v1028 = vshrl.u32 %v1027, 7
        %v1029 = vsub.s32 0, %v1028
        %v1030 = vrot.slane %v1026, %v1029
        %v1031 = vmul.f32 %v438, %v1030
        %v1032 = vadd.f32 %v1025, %v1031
        %v1033 = vld [vmem:[%s4 + $0x2d] sm:$0x1]
        %v1034 = vlaneseq
        %v1035 = vshrl.u32 %v1034, 7
        %v1036 = vsub.s32 0, %v1035
        %v1037 = vrot.slane %v1033, %v1036
        %v1038 = vmul.f32 %v501, %v1037
        %v1039 = vadd.f32 %v1032, %v1038
        %v1040 = vld [vmem:[%s4 + $0x3d] sm:$0x1]
        %v1041 = vlaneseq
        %v1042 = vshrl.u32 %v1041, 7
        %v1043 = vsub.s32 0, %v1042
        %v1044 = vrot.slane %v1040, %v1043
        %v1045 = vmul.f32 %v564, %v1044
        %v1046 = vadd.f32 %v1039, %v1045
        %v1047 = vld [vmem:[%s4 + $0x4d] sm:$0x1]
        %v1048 = vlaneseq
        %v1049 = vshrl.u32 %v1048, 7
        %v1050 = vsub.s32 0, %v1049
        %v1051 = vrot.slane %v1047, %v1050
        %v1052 = vadd.f32 %v1046, %v1051
        %v1053 = vpack.c.bf16 %v1052, %v1052
        %1054 = vst [vmem:[#allocation3 + $0x34] sm:$0xf] %v1053
        %v1055 = vld [vmem:[%s4 + $0xe] sm:$0x1]
        %v1056 = vlaneseq
        %v1057 = vshrl.u32 %v1056, 7
        %v1058 = vsub.s32 0, %v1057
        %v1059 = vrot.slane %v1055, %v1058
        %v1060 = vmul.f32 %v375, %v1059
        %v1061 = vld [vmem:[%s4 + $0x1e] sm:$0x1]
        %v1062 = vlaneseq
        %v1063 = vshrl.u32 %v1062, 7
        %v1064 = vsub.s32 0, %v1063
        %v1065 = vrot.slane %v1061, %v1064
        %v1066 = vmul.f32 %v438, %v1065
        %v1067 = vadd.f32 %v1060, %v1066
        %v1068 = vld [vmem:[%s4 + $0x2e] sm:$0x1]
        %v1069 = vlaneseq
        %v1070 = vshrl.u32 %v1069, 7
        %v1071 = vsub.s32 0, %v1070
        %v1072 = vrot.slane %v1068, %v1071
        %v1073 = vmul.f32 %v501, %v1072
        %v1074 = vadd.f32 %v1067, %v1073
        %v1075 = vld [vmem:[%s4 + $0x3e] sm:$0x1]
        %v1076 = vlaneseq
        %v1077 = vshrl.u32 %v1076, 7
        %v1078 = vsub.s32 0, %v1077
        %v1079 = vrot.slane %v1075, %v1078
        %v1080 = vmul.f32 %v564, %v1079
        %v1081 = vadd.f32 %v1074, %v1080
        %v1082 = vld [vmem:[%s4 + $0x4e] sm:$0x1]
        %v1083 = vlaneseq
        %v1084 = vshrl.u32 %v1083, 7
        %v1085 = vsub.s32 0, %v1084
        %v1086 = vrot.slane %v1082, %v1085
        %v1087 = vadd.f32 %v1081, %v1086
        %v1088 = vpack.c.bf16 %v1087, %v1087
        %1089 = vst [vmem:[#allocation3 + $0x38] sm:$0xf] %v1088
        %v1090 = vld [vmem:[%s4 + $0xf] sm:$0x1]
        %v1091 = vlaneseq
        %v1092 = vshrl.u32 %v1091, 7
        %v1093 = vsub.s32 0, %v1092
        %v1094 = vrot.slane %v1090, %v1093
        %v1095 = vmul.f32 %v375, %v1094
        %v1096 = vld [vmem:[%s4 + $0x1f] sm:$0x1]
        %v1097 = vlaneseq
        %v1098 = vshrl.u32 %v1097, 7
        %v1099 = vsub.s32 0, %v1098
        %v1100 = vrot.slane %v1096, %v1099
        %v1101 = vmul.f32 %v438, %v1100
        %v1102 = vadd.f32 %v1095, %v1101
        %v1103 = vld [vmem:[%s4 + $0x2f] sm:$0x1]
        %v1104 = vlaneseq
        %v1105 = vshrl.u32 %v1104, 7
        %v1106 = vsub.s32 0, %v1105
        %v1107 = vrot.slane %v1103, %v1106
        %v1108 = vmul.f32 %v501, %v1107
        %v1109 = vadd.f32 %v1102, %v1108
        %v1110 = vld [vmem:[%s4 + $0x3f] sm:$0x1]
        %v1111 = vlaneseq
        %v1112 = vshrl.u32 %v1111, 7
        %v1113 = vsub.s32 0, %v1112
        %v1114 = vrot.slane %v1110, %v1113
        %v1115 = vmul.f32 %v564, %v1114
        %v1116 = vadd.f32 %v1109, %v1115
        %v1117 = vld [vmem:[%s4 + $0x4f] sm:$0x1]
        %v1118 = vlaneseq
        %v1119 = vshrl.u32 %v1118, 7
        %v1120 = vsub.s32 0, %v1119
        %v1121 = vrot.slane %v1117, %v1120
        %v1122 = vadd.f32 %v1116, %v1121
        %v1123 = vpack.c.bf16 %v1122, %v1122
        %1124 = vst [vmem:[#allocation3 + $0x3c] sm:$0xf] %v1123
      $region44: #{pair_convolution2.1} parent=39 // pred_fallthru
        _
      %v1125 = vld [vmem:[%s276] sm:$0xff]
      %1127 = vrot.lane.b32.xlu0 %v1125, 8
      %v1128 = vpop.permute.xlu0 %1127
      %1130 = vrot.lane.b32.xlu0 %v1125, 16
      %v1131 = vpop.permute.xlu0 %1130
      %1133 = vrot.lane.b32.xlu0 %v1125, 24
      %v1134 = vpop.permute.xlu0 %1133
      %1136 = vrot.lane.b32.xlu0 %v1125, 32
      %v1137 = vpop.permute.xlu0 %1136
      %1139 = vrot.lane.b32.xlu0 %v1125, 40
      %v1140 = vpop.permute.xlu0 %1139
      %1142 = vrot.lane.b32.xlu0 %v1125, 48
      %v1143 = vpop.permute.xlu0 %1142
      %1145 = vrot.lane.b32.xlu0 %v1125, 56
      %v1146 = vpop.permute.xlu0 %1145
      %vm1148 = vcmask 64512
      %v1149 = vsel %vm1148, %v1125, %v1128
      %vm1150 = vcmask 130048
      %v1151 = vsel %vm1150, %v1149, %v1131
      %vm1152 = vcmask 195584
      %v1153 = vsel %vm1152, %v1151, %v1134
      %vm1154 = vcmask 261120
      %v1155 = vsel %vm1154, %v1153, %v1137
      %vm1156 = vcmask 326656
      %v1157 = vsel %vm1156, %v1155, %v1140
      %vm1158 = vcmask 392192
      %v1159 = vsel %vm1158, %v1157, %v1143
      %vm1160 = vcmask 457728
      %v1161 = vsel %vm1160, %v1159, %v1146
      %s1162 = scalar_lea.vmem %s276, 8
      %v1163 = vld [vmem:[%s1162] sm:$0xff]
      %1165 = vrot.lane.b32.xlu0 %v1163, 8
      %v1166 = vpop.permute.xlu0 %1165
      %1168 = vrot.lane.b32.xlu0 %v1163, 16
      %v1169 = vpop.permute.xlu0 %1168
      %1171 = vrot.lane.b32.xlu0 %v1163, 24
      %v1172 = vpop.permute.xlu0 %1171
      %1174 = vrot.lane.b32.xlu0 %v1163, 32
      %v1175 = vpop.permute.xlu0 %1174
      %1177 = vrot.lane.b32.xlu0 %v1163, 40
      %v1178 = vpop.permute.xlu0 %1177
      %1180 = vrot.lane.b32.xlu0 %v1163, 48
      %v1181 = vpop.permute.xlu0 %1180
      %1183 = vrot.lane.b32.xlu0 %v1163, 56
      %v1184 = vpop.permute.xlu0 %1183
      %v1186 = vsel %vm1148, %v1163, %v1166
      %v1187 = vsel %vm1150, %v1186, %v1169
      %v1188 = vsel %vm1152, %v1187, %v1172
      %v1189 = vsel %vm1154, %v1188, %v1175
      %v1190 = vsel %vm1156, %v1189, %v1178
      %v1191 = vsel %vm1158, %v1190, %v1181
      %v1192 = vsel %vm1160, %v1191, %v1184
      %s1193 = scalar_lea.vmem %s276, 16
      %v1194 = vld [vmem:[%s1193] sm:$0xff]
      %1196 = vrot.lane.b32.xlu0 %v1194, 8
      %v1197 = vpop.permute.xlu0 %1196
      %1199 = vrot.lane.b32.xlu0 %v1194, 16
      %v1200 = vpop.permute.xlu0 %1199
      %1202 = vrot.lane.b32.xlu0 %v1194, 24
      %v1203 = vpop.permute.xlu0 %1202
      %1205 = vrot.lane.b32.xlu0 %v1194, 32
      %v1206 = vpop.permute.xlu0 %1205
      %1208 = vrot.lane.b32.xlu0 %v1194, 40
      %v1209 = vpop.permute.xlu0 %1208
      %1211 = vrot.lane.b32.xlu0 %v1194, 48
      %v1212 = vpop.permute.xlu0 %1211
      %1214 = vrot.lane.b32.xlu0 %v1194, 56
      %v1215 = vpop.permute.xlu0 %1214
      %v1217 = vsel %vm1148, %v1194, %v1197
      %v1218 = vsel %vm1150, %v1217, %v1200
      %v1219 = vsel %vm1152, %v1218, %v1203
      %v1220 = vsel %vm1154, %v1219, %v1206
      %v1221 = vsel %vm1156, %v1220, %v1209
      %v1222 = vsel %vm1158, %v1221, %v1212
      %v1223 = vsel %vm1160, %v1222, %v1215
      %s1224 = scalar_lea.vmem %s276, 24
      %v1225 = vld [vmem:[%s1224] sm:$0xff]
      %1227 = vrot.lane.b32.xlu0 %v1225, 8
      %v1228 = vpop.permute.xlu0 %1227
      %1230 = vrot.lane.b32.xlu0 %v1225, 16
      %v1231 = vpop.permute.xlu0 %1230
      %1233 = vrot.lane.b32.xlu0 %v1225, 24
      %v1234 = vpop.permute.xlu0 %1233
      %1236 = vrot.lane.b32.xlu0 %v1225, 32
      %v1237 = vpop.permute.xlu0 %1236
      %1239 = vrot.lane.b32.xlu0 %v1225, 40
      %v1240 = vpop.permute.xlu0 %1239
      %1242 = vrot.lane.b32.xlu0 %v1225, 48
      %v1243 = vpop.permute.xlu0 %1242
      %1245 = vrot.lane.b32.xlu0 %v1225, 56
      %v1246 = vpop.permute.xlu0 %1245
      %v1248 = vsel %vm1148, %v1225, %v1228
      %v1249 = vsel %vm1150, %v1248, %v1231
      %v1250 = vsel %vm1152, %v1249, %v1234
      %v1251 = vsel %vm1154, %v1250, %v1237
      %v1252 = vsel %vm1156, %v1251, %v1240
      %v1253 = vsel %vm1158, %v1252, %v1243
      %v1254 = vsel %vm1160, %v1253, %v1246
      %v1255 = vld [vmem:[%s286] sm:$0xf]
      %v1256 = vld [vmem:[%s286 + $0x4] sm:$0xf]
      %v1257 = vld [vmem:[%s286 + $0x8] sm:$0xf]
      %v1258 = vld [vmem:[%s286 + $0xc] sm:$0xf]
      %v1259 = vld [vmem:[%s286 + $0x10] sm:$0xf]
      %v1260 = vld [vmem:[%s286 + $0x14] sm:$0xf]
      %v1261 = vld [vmem:[%s286 + $0x18] sm:$0xf]
      %v1262 = vld [vmem:[%s286 + $0x1c] sm:$0xf]
      %v1263 = vld [vmem:[%s3] sm:$0x1]
      %v1264 = vlaneseq
      %v1265 = vshrl.u32 %v1264, 7
      %v1266 = vsub.s32 0, %v1265
      %v1267 = vrot.slane %v1263, %v1266
      %v1268 = vmul.f32 %v1161, %v1267
      %v1269 = vld [vmem:[%s3 + $0x10] sm:$0x1]
      %v1270 = vlaneseq
      %v1271 = vshrl.u32 %v1270, 7
      %v1272 = vsub.s32 0, %v1271
      %v1273 = vrot.slane %v1269, %v1272
      %v1274 = vmul.f32 %v1192, %v1273
      %v1275 = vadd.f32 %v1268, %v1274
      %v1276 = vld [vmem:[%s3 + $0x20] sm:$0x1]
      %v1277 = vlaneseq
      %v1278 = vshrl.u32 %v1277, 7
      %v1279 = vsub.s32 0, %v1278
      %v1280 = vrot.slane %v1276, %v1279
      %v1281 = vmul.f32 %v1223, %v1280
      %v1282 = vadd.f32 %v1275, %v1281
      %v1283 = vld [vmem:[%s3 + $0x30] sm:$0x1]
      %v1284 = vlaneseq
      %v1285 = vshrl.u32 %v1284, 7
      %v1286 = vsub.s32 0, %v1285
      %v1287 = vrot.slane %v1283, %v1286
      %v1288 = vmul.f32 %v1254, %v1287
      %v1289 = vadd.f32 %v1282, %v1288
      %v1290 = vld [vmem:[%s3 + $0x40] sm:$0x1]
      %v1291 = vlaneseq
      %v1292 = vshrl.u32 %v1291, 7
      %v1293 = vsub.s32 0, %v1292
      %v1294 = vrot.slane %v1290, %v1293
      %v1295 = vadd.f32 %v1289, %v1294
      %v1296 = vpack.c.bf16 %v1295, %v1295
      %v1305 = vunpack.c.l.b16 %v1255
      %v1306 = vunpack.c.l.b16 %v1256
      %v1307 = vunpack.c.l.b16 %v1257
      %v1308 = vunpack.c.l.b16 %v1258
      %v1309 = vunpack.c.l.b16 %v1259
      %v1310 = vunpack.c.l.b16 %v1260
      %v1311 = vunpack.c.l.b16 %v1261
      %v1312 = vunpack.c.l.b16 %v1262
      %v1313 = vpack.c.b16 %v1306, %v1305
      %v1314 = vpack.c.b16 %v1308, %v1307
      %v1315 = vpack.c.b16 %v1310, %v1309
      %v1316 = vpack.c.b16 %v1312, %v1311
      %vm1321 = vcmask 523264
      %v1323 = vsel %vm1321, %v1296, 0
      %1325 = vmatprep.subr.bf16.mxu0 0
      %1326 = vmatpush1.bf16.msra.mxu0 0
      %1327 = vmatprep.subr.bf16.mxu0 0
      %1328 = vmatpush1.bf16.msra.mxu0 0
      %1329 = vmatprep.subr.bf16.mxu0 0
      %1330 = vmatpush1.bf16.msra.mxu0 0
      %1331 = vmatprep.subr.bf16.mxu0 0
      %1332 = vmatpush1.bf16.msra.mxu0 0
      %1333 = vmatprep.subr.bf16.mxu0 0
      %1334 = vmatpush1.bf16.msra.mxu0 %v1316
      %1335 = vmatprep.subr.bf16.mxu0 0
      %1336 = vmatpush1.bf16.msra.mxu0 %v1315
      %1337 = vmatprep.subr.bf16.mxu0 0
      %1338 = vmatpush1.bf16.msra.mxu0 %v1314
      %1339 = vmatprep.subr.bf16.mxu0 0
      %1340 = vmatpush1.bf16.msra.mxu0 %v1313
      %1341 = vmatprep.subr.bf16.mxu0 0
      %1342 = vmatpush2.bf16.msra.mxu0 0
      %1343 = vmatprep.subr.bf16.mxu0 0
      %1344 = vmatpush2.bf16.msra.mxu0 0
      %1345 = vmatprep.subr.bf16.mxu0 0
      %1346 = vmatpush2.bf16.msra.mxu0 0
      %1347 = vmatprep.subr.bf16.mxu0 0
      %1348 = vmatpush2.bf16.msra.mxu0 0
      %1349 = vmatprep.subr.bf16.mxu0 0
      %1350 = vmatpush2.bf16.msra.mxu0 0
      %1351 = vmatprep.subr.bf16.mxu0 0
      %1352 = vmatpush2.bf16.msra.mxu0 0
      %1353 = vmatprep.subr.bf16.mxu0 0
      %1354 = vmatpush2.bf16.msra.mxu0 0
      %1355 = vmatprep.subr.bf16.mxu0 0
      %1356 = vmatpush2.bf16.msra.mxu0 0
      %1357 = vmatprep.mubr.bf16.mxu0 0
      %1358 = vmatmul.mubr.bf16.gmra.mxu0 %v1323
      %v1359 = vpop.f32.mrf.mxu0
      %v1360 = vadd.f32 0.0, %v1359
      %v1361 = vpop.f32.mrf.mxu0
      %v1362 = vpop.f32.mrf.mxu0
      %v1363 = vpop.f32.mrf.mxu0
      %1364 = vdwg.mxu0
      %v1365 = vpack.c.bf16 %v1360, %v1360
      %vm1366 = vcmask 60416
      %1367 = vst.msk [vmem:[#allocation2] sm:$0xf] %vm1366, %v1365
      %v1368 = vld [vmem:[%s3 + $0x1] sm:$0x1]
      %v1369 = vlaneseq
      %v1370 = vshrl.u32 %v1369, 7
      %v1371 = vsub.s32 0, %v1370
      %v1372 = vrot.slane %v1368, %v1371
      %v1373 = vmul.f32 %v1161, %v1372
      %v1374 = vld [vmem:[%s3 + $0x11] sm:$0x1]
      %v1375 = vlaneseq
      %v1376 = vshrl.u32 %v1375, 7
      %v1377 = vsub.s32 0, %v1376
      %v1378 = vrot.slane %v1374, %v1377
      %v1379 = vmul.f32 %v1192, %v1378
      %v1380 = vadd.f32 %v1373, %v1379
      %v1381 = vld [vmem:[%s3 + $0x21] sm:$0x1]
      %v1382 = vlaneseq
      %v1383 = vshrl.u32 %v1382, 7
      %v1384 = vsub.s32 0, %v1383
      %v1385 = vrot.slane %v1381, %v1384
      %v1386 = vmul.f32 %v1223, %v1385
      %v1387 = vadd.f32 %v1380, %v1386
      %v1388 = vld [vmem:[%s3 + $0x31] sm:$0x1]
      %v1389 = vlaneseq
      %v1390 = vshrl.u32 %v1389, 7
      %v1391 = vsub.s32 0, %v1390
      %v1392 = vrot.slane %v1388, %v1391
      %v1393 = vmul.f32 %v1254, %v1392
      %v1394 = vadd.f32 %v1387, %v1393
      %v1395 = vld [vmem:[%s3 + $0x41] sm:$0x1]
      %v1396 = vlaneseq
      %v1397 = vshrl.u32 %v1396, 7
      %v1398 = vsub.s32 0, %v1397
      %v1399 = vrot.slane %v1395, %v1398
      %v1400 = vadd.f32 %v1394, %v1399
      %v1401 = vpack.c.bf16 %v1400, %v1400
      %v1403 = vsel %vm1321, %v1401, 0
      %1405 = vmatprep.subr.bf16.mxu0 0
      %1406 = vmatpush1.bf16.msra.mxu0 0
      %1407 = vmatprep.subr.bf16.mxu0 0
      %1408 = vmatpush1.bf16.msra.mxu0 0
      %1409 = vmatprep.subr.bf16.mxu0 0
      %1410 = vmatpush1.bf16.msra.mxu0 0
      %1411 = vmatprep.subr.bf16.mxu0 0
      %1412 = vmatpush1.bf16.msra.mxu0 0
      %1413 = vmatprep.subr.bf16.mxu0 0
      %1414 = vmatpush1.bf16.msra.mxu0 %v1316
      %1415 = vmatprep.subr.bf16.mxu0 0
      %1416 = vmatpush1.bf16.msra.mxu0 %v1315
      %1417 = vmatprep.subr.bf16.mxu0 0
      %1418 = vmatpush1.bf16.msra.mxu0 %v1314
      %1419 = vmatprep.subr.bf16.mxu0 0
      %1420 = vmatpush1.bf16.msra.mxu0 %v1313
      %1421 = vmatprep.subr.bf16.mxu0 0
      %1422 = vmatpush2.bf16.msra.mxu0 0
      %1423 = vmatprep.subr.bf16.mxu0 0
      %1424 = vmatpush2.bf16.msra.mxu0 0
      %1425 = vmatprep.subr.bf16.mxu0 0
      %1426 = vmatpush2.bf16.msra.mxu0 0
      %1427 = vmatprep.subr.bf16.mxu0 0
      %1428 = vmatpush2.bf16.msra.mxu0 0
      %1429 = vmatprep.subr.bf16.mxu0 0
      %1430 = vmatpush2.bf16.msra.mxu0 0
      %1431 = vmatprep.subr.bf16.mxu0 0
      %1432 = vmatpush2.bf16.msra.mxu0 0
      %1433 = vmatprep.subr.bf16.mxu0 0
      %1434 = vmatpush2.bf16.msra.mxu0 0
      %1435 = vmatprep.subr.bf16.mxu0 0
      %1436 = vmatpush2.bf16.msra.mxu0 0
      %1437 = vmatprep.mubr.bf16.mxu0 0
      %1438 = vmatmul.mubr.bf16.gmra.mxu0 %v1403
      %v1439 = vpop.f32.mrf.mxu0
      %v1440 = vadd.f32 0.0, %v1439
      %v1441 = vpop.f32.mrf.mxu0
      %v1442 = vpop.f32.mrf.mxu0
      %v1443 = vpop.f32.mrf.mxu0
      %1444 = vdwg.mxu0
      %v1445 = vpack.c.bf16 %v1440, %v1440
      %v1447 = vunpack.c.l.b16 %v1445
      %v1448 = vpack.c.b16 %v1447, %v1447
      %1449 = vrot.lane.b32.xlu0 %v1448, 8
      %v1450 = vpop.permute.xlu0 %1449
      %vm1452 = vcmask 126016
      %1453 = vst.msk [vmem:[#allocation2] sm:$0xf] %vm1452, %v1450
      %v1454 = vld [vmem:[%s3 + $0x2] sm:$0x1]
      %v1455 = vlaneseq
      %v1456 = vshrl.u32 %v1455, 7
      %v1457 = vsub.s32 0, %v1456
      %v1458 = vrot.slane %v1454, %v1457
      %v1459 = vmul.f32 %v1161, %v1458
      %v1460 = vld [vmem:[%s3 + $0x12] sm:$0x1]
      %v1461 = vlaneseq
      %v1462 = vshrl.u32 %v1461, 7
      %v1463 = vsub.s32 0, %v1462
      %v1464 = vrot.slane %v1460, %v1463
      %v1465 = vmul.f32 %v1192, %v1464
      %v1466 = vadd.f32 %v1459, %v1465
      %v1467 = vld [vmem:[%s3 + $0x22] sm:$0x1]
      %v1468 = vlaneseq
      %v1469 = vshrl.u32 %v1468, 7
      %v1470 = vsub.s32 0, %v1469
      %v1471 = vrot.slane %v1467, %v1470
      %v1472 = vmul.f32 %v1223, %v1471
      %v1473 = vadd.f32 %v1466, %v1472
      %v1474 = vld [vmem:[%s3 + $0x32] sm:$0x1]
      %v1475 = vlaneseq
      %v1476 = vshrl.u32 %v1475, 7
      %v1477 = vsub.s32 0, %v1476
      %v1478 = vrot.slane %v1474, %v1477
      %v1479 = vmul.f32 %v1254, %v1478
      %v1480 = vadd.f32 %v1473, %v1479
      %v1481 = vld [vmem:[%s3 + $0x42] sm:$0x1]
      %v1482 = vlaneseq
      %v1483 = vshrl.u32 %v1482, 7
      %v1484 = vsub.s32 0, %v1483
      %v1485 = vrot.slane %v1481, %v1484
      %v1486 = vadd.f32 %v1480, %v1485
      %v1487 = vpack.c.bf16 %v1486, %v1486
      %v1489 = vsel %vm1321, %v1487, 0
      %1491 = vmatprep.subr.bf16.mxu0 0
      %1492 = vmatpush1.bf16.msra.mxu0 0
      %1493 = vmatprep.subr.bf16.mxu0 0
      %1494 = vmatpush1.bf16.msra.mxu0 0
      %1495 = vmatprep.subr.bf16.mxu0 0
      %1496 = vmatpush1.bf16.msra.mxu0 0
      %1497 = vmatprep.subr.bf16.mxu0 0
      %1498 = vmatpush1.bf16.msra.mxu0 0
      %1499 = vmatprep.subr.bf16.mxu0 0
      %1500 = vmatpush1.bf16.msra.mxu0 %v1316
      %1501 = vmatprep.subr.bf16.mxu0 0
      %1502 = vmatpush1.bf16.msra.mxu0 %v1315
      %1503 = vmatprep.subr.bf16.mxu0 0
      %1504 = vmatpush1.bf16.msra.mxu0 %v1314
      %1505 = vmatprep.subr.bf16.mxu0 0
      %1506 = vmatpush1.bf16.msra.mxu0 %v1313
      %1507 = vmatprep.subr.bf16.mxu0 0
      %1508 = vmatpush2.bf16.msra.mxu0 0
      %1509 = vmatprep.subr.bf16.mxu0 0
      %1510 = vmatpush2.bf16.msra.mxu0 0
      %1511 = vmatprep.subr.bf16.mxu0 0
      %1512 = vmatpush2.bf16.msra.mxu0 0
      %1513 = vmatprep.subr.bf16.mxu0 0
      %1514 = vmatpush2.bf16.msra.mxu0 0
      %1515 = vmatprep.subr.bf16.mxu0 0
      %1516 = vmatpush2.bf16.msra.mxu0 0
      %1517 = vmatprep.subr.bf16.mxu0 0
      %1518 = vmatpush2.bf16.msra.mxu0 0
      %1519 = vmatprep.subr.bf16.mxu0 0
      %1520 = vmatpush2.bf16.msra.mxu0 0
      %1521 = vmatprep.subr.bf16.mxu0 0
      %1522 = vmatpush2.bf16.msra.mxu0 0
      %1523 = vmatprep.mubr.bf16.mxu0 0
      %1524 = vmatmul.mubr.bf16.gmra.mxu0 %v1489
      %v1525 = vpop.f32.mrf.mxu0
      %v1526 = vadd.f32 0.0, %v1525
      %v1527 = vpop.f32.mrf.mxu0
      %v1528 = vpop.f32.mrf.mxu0
      %v1529 = vpop.f32.mrf.mxu0
      %1530 = vdwg.mxu0
      %v1531 = vpack.c.bf16 %v1526, %v1526
      %v1533 = vunpack.c.l.b16 %v1531
      %v1534 = vpack.c.b16 %v1533, %v1533
      %1535 = vrot.lane.b32.xlu0 %v1534, 16
      %v1536 = vpop.permute.xlu0 %1535
      %vm1538 = vcmask 191616
      %1539 = vst.msk [vmem:[#allocation2] sm:$0xf] %vm1538, %v1536
      %v1540 = vld [vmem:[%s3 + $0x3] sm:$0x1]
      %v1541 = vlaneseq
      %v1542 = vshrl.u32 %v1541, 7
      %v1543 = vsub.s32 0, %v1542
      %v1544 = vrot.slane %v1540, %v1543
      %v1545 = vmul.f32 %v1161, %v1544
      %v1546 = vld [vmem:[%s3 + $0x13] sm:$0x1]
      %v1547 = vlaneseq
      %v1548 = vshrl.u32 %v1547, 7
      %v1549 = vsub.s32 0, %v1548
      %v1550 = vrot.slane %v1546, %v1549
      %v1551 = vmul.f32 %v1192, %v1550
      %v1552 = vadd.f32 %v1545, %v1551
      %v1553 = vld [vmem:[%s3 + $0x23] sm:$0x1]
      %v1554 = vlaneseq
      %v1555 = vshrl.u32 %v1554, 7
      %v1556 = vsub.s32 0, %v1555
      %v1557 = vrot.slane %v1553, %v1556
      %v1558 = vmul.f32 %v1223, %v1557
      %v1559 = vadd.f32 %v1552, %v1558
      %v1560 = vld [vmem:[%s3 + $0x33] sm:$0x1]
      %v1561 = vlaneseq
      %v1562 = vshrl.u32 %v1561, 7
      %v1563 = vsub.s32 0, %v1562
      %v1564 = vrot.slane %v1560, %v1563
      %v1565 = vmul.f32 %v1254, %v1564
      %v1566 = vadd.f32 %v1559, %v1565
      %v1567 = vld [vmem:[%s3 + $0x43] sm:$0x1]
      %v1568 = vlaneseq
      %v1569 = vshrl.u32 %v1568, 7
      %v1570 = vsub.s32 0, %v1569
      %v1571 = vrot.slane %v1567, %v1570
      %v1572 = vadd.f32 %v1566, %v1571
      %v1573 = vpack.c.bf16 %v1572, %v1572
      %v1575 = vsel %vm1321, %v1573, 0
      %1577 = vmatprep.subr.bf16.mxu0 0
      %1578 = vmatpush1.bf16.msra.mxu0 0
      %1579 = vmatprep.subr.bf16.mxu0 0
      %1580 = vmatpush1.bf16.msra.mxu0 0
      %1581 = vmatprep.subr.bf16.mxu0 0
      %1582 = vmatpush1.bf16.msra.mxu0 0
      %1583 = vmatprep.subr.bf16.mxu0 0
      %1584 = vmatpush1.bf16.msra.mxu0 0
      %1585 = vmatprep.subr.bf16.mxu0 0
      %1586 = vmatpush1.bf16.msra.mxu0 %v1316
      %1587 = vmatprep.subr.bf16.mxu0 0
      %1588 = vmatpush1.bf16.msra.mxu0 %v1315
      %1589 = vmatprep.subr.bf16.mxu0 0
      %1590 = vmatpush1.bf16.msra.mxu0 %v1314
      %1591 = vmatprep.subr.bf16.mxu0 0
      %1592 = vmatpush1.bf16.msra.mxu0 %v1313
      %1593 = vmatprep.subr.bf16.mxu0 0
      %1594 = vmatpush2.bf16.msra.mxu0 0
      %1595 = vmatprep.subr.bf16.mxu0 0
      %1596 = vmatpush2.bf16.msra.mxu0 0
      %1597 = vmatprep.subr.bf16.mxu0 0
      %1598 = vmatpush2.bf16.msra.mxu0 0
      %1599 = vmatprep.subr.bf16.mxu0 0
      %1600 = vmatpush2.bf16.msra.mxu0 0
      %1601 = vmatprep.subr.bf16.mxu0 0
      %1602 = vmatpush2.bf16.msra.mxu0 0
      %1603 = vmatprep.subr.bf16.mxu0 0
      %1604 = vmatpush2.bf16.msra.mxu0 0
      %1605 = vmatprep.subr.bf16.mxu0 0
      %1606 = vmatpush2.bf16.msra.mxu0 0
      %1607 = vmatprep.subr.bf16.mxu0 0
      %1608 = vmatpush2.bf16.msra.mxu0 0
      %1609 = vmatprep.mubr.bf16.mxu0 0
      %1610 = vmatmul.mubr.bf16.gmra.mxu0 %v1575
      %v1611 = vpop.f32.mrf.mxu0
      %v1612 = vadd.f32 0.0, %v1611
      %v1613 = vpop.f32.mrf.mxu0
      %v1614 = vpop.f32.mrf.mxu0
      %v1615 = vpop.f32.mrf.mxu0
      %1616 = vdwg.mxu0
      %v1617 = vpack.c.bf16 %v1612, %v1612
      %v1619 = vunpack.c.l.b16 %v1617
      %v1620 = vpack.c.b16 %v1619, %v1619
      %1621 = vrot.lane.b32.xlu0 %v1620, 24
      %v1622 = vpop.permute.xlu0 %1621
      %vm1624 = vcmask 257216
      %1625 = vst.msk [vmem:[#allocation2] sm:$0xf] %vm1624, %v1622
      %v1626 = vld [vmem:[%s3 + $0x4] sm:$0x1]
      %v1627 = vlaneseq
      %v1628 = vshrl.u32 %v1627, 7
      %v1629 = vsub.s32 0, %v1628
      %v1630 = vrot.slane %v1626, %v1629
      %v1631 = vmul.f32 %v1161, %v1630
      %v1632 = vld [vmem:[%s3 + $0x14] sm:$0x1]
      %v1633 = vlaneseq
      %v1634 = vshrl.u32 %v1633, 7
      %v1635 = vsub.s32 0, %v1634
      %v1636 = vrot.slane %v1632, %v1635
      %v1637 = vmul.f32 %v1192, %v1636
      %v1638 = vadd.f32 %v1631, %v1637
      %v1639 = vld [vmem:[%s3 + $0x24] sm:$0x1]
      %v1640 = vlaneseq
      %v1641 = vshrl.u32 %v1640, 7
      %v1642 = vsub.s32 0, %v1641
      %v1643 = vrot.slane %v1639, %v1642
      %v1644 = vmul.f32 %v1223, %v1643
      %v1645 = vadd.f32 %v1638, %v1644
      %v1646 = vld [vmem:[%s3 + $0x34] sm:$0x1]
      %v1647 = vlaneseq
      %v1648 = vshrl.u32 %v1647, 7
      %v1649 = vsub.s32 0, %v1648
      %v1650 = vrot.slane %v1646, %v1649
      %v1651 = vmul.f32 %v1254, %v1650
      %v1652 = vadd.f32 %v1645, %v1651
      %v1653 = vld [vmem:[%s3 + $0x44] sm:$0x1]
      %v1654 = vlaneseq
      %v1655 = vshrl.u32 %v1654, 7
      %v1656 = vsub.s32 0, %v1655
      %v1657 = vrot.slane %v1653, %v1656
      %v1658 = vadd.f32 %v1652, %v1657
      %v1659 = vpack.c.bf16 %v1658, %v1658
      %v1661 = vsel %vm1321, %v1659, 0
      %1663 = vmatprep.subr.bf16.mxu0 0
      %1664 = vmatpush1.bf16.msra.mxu0 0
      %1665 = vmatprep.subr.bf16.mxu0 0
      %1666 = vmatpush1.bf16.msra.mxu0 0
      %1667 = vmatprep.subr.bf16.mxu0 0
      %1668 = vmatpush1.bf16.msra.mxu0 0
      %1669 = vmatprep.subr.bf16.mxu0 0
      %1670 = vmatpush1.bf16.msra.mxu0 0
      %1671 = vmatprep.subr.bf16.mxu0 0
      %1672 = vmatpush1.bf16.msra.mxu0 %v1316
      %1673 = vmatprep.subr.bf16.mxu0 0
      %1674 = vmatpush1.bf16.msra.mxu0 %v1315
      %1675 = vmatprep.subr.bf16.mxu0 0
      %1676 = vmatpush1.bf16.msra.mxu0 %v1314
      %1677 = vmatprep.subr.bf16.mxu0 0
      %1678 = vmatpush1.bf16.msra.mxu0 %v1313
      %1679 = vmatprep.subr.bf16.mxu0 0
      %1680 = vmatpush2.bf16.msra.mxu0 0
      %1681 = vmatprep.subr.bf16.mxu0 0
      %1682 = vmatpush2.bf16.msra.mxu0 0
      %1683 = vmatprep.subr.bf16.mxu0 0
      %1684 = vmatpush2.bf16.msra.mxu0 0
      %1685 = vmatprep.subr.bf16.mxu0 0
      %1686 = vmatpush2.bf16.msra.mxu0 0
      %1687 = vmatprep.subr.bf16.mxu0 0
      %1688 = vmatpush2.bf16.msra.mxu0 0
      %1689 = vmatprep.subr.bf16.mxu0 0
      %1690 = vmatpush2.bf16.msra.mxu0 0
      %1691 = vmatprep.subr.bf16.mxu0 0
      %1692 = vmatpush2.bf16.msra.mxu0 0
      %1693 = vmatprep.subr.bf16.mxu0 0
      %1694 = vmatpush2.bf16.msra.mxu0 0
      %1695 = vmatprep.mubr.bf16.mxu0 0
      %1696 = vmatmul.mubr.bf16.gmra.mxu0 %v1661
      %v1697 = vpop.f32.mrf.mxu0
      %v1698 = vadd.f32 0.0, %v1697
      %v1699 = vpop.f32.mrf.mxu0
      %v1700 = vpop.f32.mrf.mxu0
      %v1701 = vpop.f32.mrf.mxu0
      %1702 = vdwg.mxu0
      %v1703 = vpack.c.bf16 %v1698, %v1698
      %v1705 = vunpack.c.l.b16 %v1703
      %v1706 = vpack.c.b16 %v1705, %v1705
      %1707 = vrot.lane.b32.xlu0 %v1706, 32
      %v1708 = vpop.permute.xlu0 %1707
      %vm1710 = vcmask 322816
      %1711 = vst.msk [vmem:[#allocation2] sm:$0xf] %vm1710, %v1708
      %v1712 = vld [vmem:[%s3 + $0x5] sm:$0x1]
      %v1713 = vlaneseq
      %v1714 = vshrl.u32 %v1713, 7
      %v1715 = vsub.s32 0, %v1714
      %v1716 = vrot.slane %v1712, %v1715
      %v1717 = vmul.f32 %v1161, %v1716
      %v1718 = vld [vmem:[%s3 + $0x15] sm:$0x1]
      %v1719 = vlaneseq
      %v1720 = vshrl.u32 %v1719, 7
      %v1721 = vsub.s32 0, %v1720
      %v1722 = vrot.slane %v1718, %v1721
      %v1723 = vmul.f32 %v1192, %v1722
      %v1724 = vadd.f32 %v1717, %v1723
      %v1725 = vld [vmem:[%s3 + $0x25] sm:$0x1]
      %v1726 = vlaneseq
      %v1727 = vshrl.u32 %v1726, 7
      %v1728 = vsub.s32 0, %v1727
      %v1729 = vrot.slane %v1725, %v1728
      %v1730 = vmul.f32 %v1223, %v1729
      %v1731 = vadd.f32 %v1724, %v1730
      %v1732 = vld [vmem:[%s3 + $0x35] sm:$0x1]
      %v1733 = vlaneseq
      %v1734 = vshrl.u32 %v1733, 7
      %v1735 = vsub.s32 0, %v1734
      %v1736 = vrot.slane %v1732, %v1735
      %v1737 = vmul.f32 %v1254, %v1736
      %v1738 = vadd.f32 %v1731, %v1737
      %v1739 = vld [vmem:[%s3 + $0x45] sm:$0x1]
      %v1740 = vlaneseq
      %v1741 = vshrl.u32 %v1740, 7
      %v1742 = vsub.s32 0, %v1741
      %v1743 = vrot.slane %v1739, %v1742
      %v1744 = vadd.f32 %v1738, %v1743
      %v1745 = vpack.c.bf16 %v1744, %v1744
      %v1747 = vsel %vm1321, %v1745, 0
      %1749 = vmatprep.subr.bf16.mxu0 0
      %1750 = vmatpush1.bf16.msra.mxu0 0
      %1751 = vmatprep.subr.bf16.mxu0 0
      %1752 = vmatpush1.bf16.msra.mxu0 0
      %1753 = vmatprep.subr.bf16.mxu0 0
      %1754 = vmatpush1.bf16.msra.mxu0 0
      %1755 = vmatprep.subr.bf16.mxu0 0
      %1756 = vmatpush1.bf16.msra.mxu0 0
      %1757 = vmatprep.subr.bf16.mxu0 0
      %1758 = vmatpush1.bf16.msra.mxu0 %v1316
      %1759 = vmatprep.subr.bf16.mxu0 0
      %1760 = vmatpush1.bf16.msra.mxu0 %v1315
      %1761 = vmatprep.subr.bf16.mxu0 0
      %1762 = vmatpush1.bf16.msra.mxu0 %v1314
      %1763 = vmatprep.subr.bf16.mxu0 0
      %1764 = vmatpush1.bf16.msra.mxu0 %v1313
      %1765 = vmatprep.subr.bf16.mxu0 0
      %1766 = vmatpush2.bf16.msra.mxu0 0
      %1767 = vmatprep.subr.bf16.mxu0 0
      %1768 = vmatpush2.bf16.msra.mxu0 0
      %1769 = vmatprep.subr.bf16.mxu0 0
      %1770 = vmatpush2.bf16.msra.mxu0 0
      %1771 = vmatprep.subr.bf16.mxu0 0
      %1772 = vmatpush2.bf16.msra.mxu0 0
      %1773 = vmatprep.subr.bf16.mxu0 0
      %1774 = vmatpush2.bf16.msra.mxu0 0
      %1775 = vmatprep.subr.bf16.mxu0 0
      %1776 = vmatpush2.bf16.msra.mxu0 0
      %1777 = vmatprep.subr.bf16.mxu0 0
      %1778 = vmatpush2.bf16.msra.mxu0 0
      %1779 = vmatprep.subr.bf16.mxu0 0
      %1780 = vmatpush2.bf16.msra.mxu0 0
      %1781 = vmatprep.mubr.bf16.mxu0 0
      %1782 = vmatmul.mubr.bf16.gmra.mxu0 %v1747
      %v1783 = vpop.f32.mrf.mxu0
      %v1784 = vadd.f32 0.0, %v1783
      %v1785 = vpop.f32.mrf.mxu0
      %v1786 = vpop.f32.mrf.mxu0
      %v1787 = vpop.f32.mrf.mxu0
      %1788 = vdwg.mxu0
      %v1789 = vpack.c.bf16 %v1784, %v1784
      %v1791 = vunpack.c.l.b16 %v1789
      %v1792 = vpack.c.b16 %v1791, %v1791
      %1793 = vrot.lane.b32.xlu0 %v1792, 40
      %v1794 = vpop.permute.xlu0 %1793
      %vm1796 = vcmask 388416
      %1797 = vst.msk [vmem:[#allocation2] sm:$0xf] %vm1796, %v1794
      %v1798 = vld [vmem:[%s3 + $0x6] sm:$0x1]
      %v1799 = vlaneseq
      %v1800 = vshrl.u32 %v1799, 7
      %v1801 = vsub.s32 0, %v1800
      %v1802 = vrot.slane %v1798, %v1801
      %v1803 = vmul.f32 %v1161, %v1802
      %v1804 = vld [vmem:[%s3 + $0x16] sm:$0x1]
      %v1805 = vlaneseq
      %v1806 = vshrl.u32 %v1805, 7
      %v1807 = vsub.s32 0, %v1806
      %v1808 = vrot.slane %v1804, %v1807
      %v1809 = vmul.f32 %v1192, %v1808
      %v1810 = vadd.f32 %v1803, %v1809
      %v1811 = vld [vmem:[%s3 + $0x26] sm:$0x1]
      %v1812 = vlaneseq
      %v1813 = vshrl.u32 %v1812, 7
      %v1814 = vsub.s32 0, %v1813
      %v1815 = vrot.slane %v1811, %v1814
      %v1816 = vmul.f32 %v1223, %v1815
      %v1817 = vadd.f32 %v1810, %v1816
      %v1818 = vld [vmem:[%s3 + $0x36] sm:$0x1]
      %v1819 = vlaneseq
      %v1820 = vshrl.u32 %v1819, 7
      %v1821 = vsub.s32 0, %v1820
      %v1822 = vrot.slane %v1818, %v1821
      %v1823 = vmul.f32 %v1254, %v1822
      %v1824 = vadd.f32 %v1817, %v1823
      %v1825 = vld [vmem:[%s3 + $0x46] sm:$0x1]
      %v1826 = vlaneseq
      %v1827 = vshrl.u32 %v1826, 7
      %v1828 = vsub.s32 0, %v1827
      %v1829 = vrot.slane %v1825, %v1828
      %v1830 = vadd.f32 %v1824, %v1829
      %v1831 = vpack.c.bf16 %v1830, %v1830
      %v1833 = vsel %vm1321, %v1831, 0
      %1835 = vmatprep.subr.bf16.mxu0 0
      %1836 = vmatpush1.bf16.msra.mxu0 0
      %1837 = vmatprep.subr.bf16.mxu0 0
      %1838 = vmatpush1.bf16.msra.mxu0 0
      %1839 = vmatprep.subr.bf16.mxu0 0
      %1840 = vmatpush1.bf16.msra.mxu0 0
      %1841 = vmatprep.subr.bf16.mxu0 0
      %1842 = vmatpush1.bf16.msra.mxu0 0
      %1843 = vmatprep.subr.bf16.mxu0 0
      %1844 = vmatpush1.bf16.msra.mxu0 %v1316
      %1845 = vmatprep.subr.bf16.mxu0 0
      %1846 = vmatpush1.bf16.msra.mxu0 %v1315
      %1847 = vmatprep.subr.bf16.mxu0 0
      %1848 = vmatpush1.bf16.msra.mxu0 %v1314
      %1849 = vmatprep.subr.bf16.mxu0 0
      %1850 = vmatpush1.bf16.msra.mxu0 %v1313
      %1851 = vmatprep.subr.bf16.mxu0 0
      %1852 = vmatpush2.bf16.msra.mxu0 0
      %1853 = vmatprep.subr.bf16.mxu0 0
      %1854 = vmatpush2.bf16.msra.mxu0 0
      %1855 = vmatprep.subr.bf16.mxu0 0
      %1856 = vmatpush2.bf16.msra.mxu0 0
      %1857 = vmatprep.subr.bf16.mxu0 0
      %1858 = vmatpush2.bf16.msra.mxu0 0
      %1859 = vmatprep.subr.bf16.mxu0 0
      %1860 = vmatpush2.bf16.msra.mxu0 0
      %1861 = vmatprep.subr.bf16.mxu0 0
      %1862 = vmatpush2.bf16.msra.mxu0 0
      %1863 = vmatprep.subr.bf16.mxu0 0
      %1864 = vmatpush2.bf16.msra.mxu0 0
      %1865 = vmatprep.subr.bf16.mxu0 0
      %1866 = vmatpush2.bf16.msra.mxu0 0
      %1867 = vmatprep.mubr.bf16.mxu0 0
      %1868 = vmatmul.mubr.bf16.gmra.mxu0 %v1833
      %v1869 = vpop.f32.mrf.mxu0
      %v1870 = vadd.f32 0.0, %v1869
      %v1871 = vpop.f32.mrf.mxu0
      %v1872 = vpop.f32.mrf.mxu0
      %v1873 = vpop.f32.mrf.mxu0
      %1874 = vdwg.mxu0
      %v1875 = vpack.c.bf16 %v1870, %v1870
      %v1877 = vunpack.c.l.b16 %v1875
      %v1878 = vpack.c.b16 %v1877, %v1877
      %1879 = vrot.lane.b32.xlu0 %v1878, 48
      %v1880 = vpop.permute.xlu0 %1879
      %vm1882 = vcmask 454016
      %1883 = vst.msk [vmem:[#allocation2] sm:$0xf] %vm1882, %v1880
      %v1884 = vld [vmem:[%s3 + $0x7] sm:$0x1]
      %v1885 = vlaneseq
      %v1886 = vshrl.u32 %v1885, 7
      %v1887 = vsub.s32 0, %v1886
      %v1888 = vrot.slane %v1884, %v1887
      %v1889 = vmul.f32 %v1161, %v1888
      %v1890 = vld [vmem:[%s3 + $0x17] sm:$0x1]
      %v1891 = vlaneseq
      %v1892 = vshrl.u32 %v1891, 7
      %v1893 = vsub.s32 0, %v1892
      %v1894 = vrot.slane %v1890, %v1893
      %v1895 = vmul.f32 %v1192, %v1894
      %v1896 = vadd.f32 %v1889, %v1895
      %v1897 = vld [vmem:[%s3 + $0x27] sm:$0x1]
      %v1898 = vlaneseq
      %v1899 = vshrl.u32 %v1898, 7
      %v1900 = vsub.s32 0, %v1899
      %v1901 = vrot.slane %v1897, %v1900
      %v1902 = vmul.f32 %v1223, %v1901
      %v1903 = vadd.f32 %v1896, %v1902
      %v1904 = vld [vmem:[%s3 + $0x37] sm:$0x1]
      %v1905 = vlaneseq
      %v1906 = vshrl.u32 %v1905, 7
      %v1907 = vsub.s32 0, %v1906
      %v1908 = vrot.slane %v1904, %v1907
      %v1909 = vmul.f32 %v1254, %v1908
      %v1910 = vadd.f32 %v1903, %v1909
      %v1911 = vld [vmem:[%s3 + $0x47] sm:$0x1]
      %v1912 = vlaneseq
      %v1913 = vshrl.u32 %v1912, 7
      %v1914 = vsub.s32 0, %v1913
      %v1915 = vrot.slane %v1911, %v1914
      %v1916 = vadd.f32 %v1910, %v1915
      %v1917 = vpack.c.bf16 %v1916, %v1916
      %v1919 = vsel %vm1321, %v1917, 0
      %1921 = vmatprep.subr.bf16.mxu0 0
      %1922 = vmatpush1.bf16.msra.mxu0 0
      %1923 = vmatprep.subr.bf16.mxu0 0
      %1924 = vmatpush1.bf16.msra.mxu0 0
      %1925 = vmatprep.subr.bf16.mxu0 0
      %1926 = vmatpush1.bf16.msra.mxu0 0
      %1927 = vmatprep.subr.bf16.mxu0 0
      %1928 = vmatpush1.bf16.msra.mxu0 0
      %1929 = vmatprep.subr.bf16.mxu0 0
      %1930 = vmatpush1.bf16.msra.mxu0 %v1316
      %1931 = vmatprep.subr.bf16.mxu0 0
      %1932 = vmatpush1.bf16.msra.mxu0 %v1315
      %1933 = vmatprep.subr.bf16.mxu0 0
      %1934 = vmatpush1.bf16.msra.mxu0 %v1314
      %1935 = vmatprep.subr.bf16.mxu0 0
      %1936 = vmatpush1.bf16.msra.mxu0 %v1313
      %1937 = vmatprep.subr.bf16.mxu0 0
      %1938 = vmatpush2.bf16.msra.mxu0 0
      %1939 = vmatprep.subr.bf16.mxu0 0
      %1940 = vmatpush2.bf16.msra.mxu0 0
      %1941 = vmatprep.subr.bf16.mxu0 0
      %1942 = vmatpush2.bf16.msra.mxu0 0
      %1943 = vmatprep.subr.bf16.mxu0 0
      %1944 = vmatpush2.bf16.msra.mxu0 0
      %1945 = vmatprep.subr.bf16.mxu0 0
      %1946 = vmatpush2.bf16.msra.mxu0 0
      %1947 = vmatprep.subr.bf16.mxu0 0
      %1948 = vmatpush2.bf16.msra.mxu0 0
      %1949 = vmatprep.subr.bf16.mxu0 0
      %1950 = vmatpush2.bf16.msra.mxu0 0
      %1951 = vmatprep.subr.bf16.mxu0 0
      %1952 = vmatpush2.bf16.msra.mxu0 0
      %1953 = vmatprep.mubr.bf16.mxu0 0
      %1954 = vmatmul.mubr.bf16.gmra.mxu0 %v1919
      %v1955 = vpop.f32.mrf.mxu0
      %v1956 = vadd.f32 0.0, %v1955
      %v1957 = vpop.f32.mrf.mxu0
      %v1958 = vpop.f32.mrf.mxu0
      %v1959 = vpop.f32.mrf.mxu0
      %1960 = vdwg.mxu0
      %v1961 = vpack.c.bf16 %v1956, %v1956
      %v1963 = vunpack.c.l.b16 %v1961
      %v1964 = vpack.c.b16 %v1963, %v1963
      %1965 = vrot.lane.b32.xlu0 %v1964, 56
      %v1966 = vpop.permute.xlu0 %1965
      %vm1968 = vcmask 519616
      %1969 = vst.msk [vmem:[#allocation2] sm:$0xf] %vm1968, %v1966
      %v1970 = vld [vmem:[%s3 + $0x8] sm:$0x1]
      %v1971 = vlaneseq
      %v1972 = vshrl.u32 %v1971, 7
      %v1973 = vsub.s32 0, %v1972
      %v1974 = vrot.slane %v1970, %v1973
      %v1975 = vmul.f32 %v1161, %v1974
      %v1976 = vld [vmem:[%s3 + $0x18] sm:$0x1]
      %v1977 = vlaneseq
      %v1978 = vshrl.u32 %v1977, 7
      %v1979 = vsub.s32 0, %v1978
      %v1980 = vrot.slane %v1976, %v1979
      %v1981 = vmul.f32 %v1192, %v1980
      %v1982 = vadd.f32 %v1975, %v1981
      %v1983 = vld [vmem:[%s3 + $0x28] sm:$0x1]
      %v1984 = vlaneseq
      %v1985 = vshrl.u32 %v1984, 7
      %v1986 = vsub.s32 0, %v1985
      %v1987 = vrot.slane %v1983, %v1986
      %v1988 = vmul.f32 %v1223, %v1987
      %v1989 = vadd.f32 %v1982, %v1988
      %v1990 = vld [vmem:[%s3 + $0x38] sm:$0x1]
      %v1991 = vlaneseq
      %v1992 = vshrl.u32 %v1991, 7
      %v1993 = vsub.s32 0, %v1992
      %v1994 = vrot.slane %v1990, %v1993
      %v1995 = vmul.f32 %v1254, %v1994
      %v1996 = vadd.f32 %v1989, %v1995
      %v1997 = vld [vmem:[%s3 + $0x48] sm:$0x1]
      %v1998 = vlaneseq
      %v1999 = vshrl.u32 %v1998, 7
      %v2000 = vsub.s32 0, %v1999
      %v2001 = vrot.slane %v1997, %v2000
      %v2002 = vadd.f32 %v1996, %v2001
      %v2003 = vpack.c.bf16 %v2002, %v2002
      %v2005 = vsel %vm1321, %v2003, 0
      %2007 = vmatprep.subr.bf16.mxu0 0
      %2008 = vmatpush1.bf16.msra.mxu0 0
      %2009 = vmatprep.subr.bf16.mxu0 0
      %2010 = vmatpush1.bf16.msra.mxu0 0
      %2011 = vmatprep.subr.bf16.mxu0 0
      %2012 = vmatpush1.bf16.msra.mxu0 0
      %2013 = vmatprep.subr.bf16.mxu0 0
      %2014 = vmatpush1.bf16.msra.mxu0 0
      %2015 = vmatprep.subr.bf16.mxu0 0
      %2016 = vmatpush1.bf16.msra.mxu0 %v1316
      %2017 = vmatprep.subr.bf16.mxu0 0
      %2018 = vmatpush1.bf16.msra.mxu0 %v1315
      %2019 = vmatprep.subr.bf16.mxu0 0
      %2020 = vmatpush1.bf16.msra.mxu0 %v1314
      %2021 = vmatprep.subr.bf16.mxu0 0
      %2022 = vmatpush1.bf16.msra.mxu0 %v1313
      %2023 = vmatprep.subr.bf16.mxu0 0
      %2024 = vmatpush2.bf16.msra.mxu0 0
      %2025 = vmatprep.subr.bf16.mxu0 0
      %2026 = vmatpush2.bf16.msra.mxu0 0
      %2027 = vmatprep.subr.bf16.mxu0 0
      %2028 = vmatpush2.bf16.msra.mxu0 0
      %2029 = vmatprep.subr.bf16.mxu0 0
      %2030 = vmatpush2.bf16.msra.mxu0 0
      %2031 = vmatprep.subr.bf16.mxu0 0
      %2032 = vmatpush2.bf16.msra.mxu0 0
      %2033 = vmatprep.subr.bf16.mxu0 0
      %2034 = vmatpush2.bf16.msra.mxu0 0
      %2035 = vmatprep.subr.bf16.mxu0 0
      %2036 = vmatpush2.bf16.msra.mxu0 0
      %2037 = vmatprep.subr.bf16.mxu0 0
      %2038 = vmatpush2.bf16.msra.mxu0 0
      %2039 = vmatprep.mubr.bf16.mxu0 0
      %2040 = vmatmul.mubr.bf16.gmra.mxu0 %v2005
      %v2041 = vpop.f32.mrf.mxu0
      %v2042 = vadd.f32 0.0, %v2041
      %v2043 = vpop.f32.mrf.mxu0
      %v2044 = vpop.f32.mrf.mxu0
      %v2045 = vpop.f32.mrf.mxu0
      %2046 = vdwg.mxu0
      %v2047 = vpack.c.bf16 %v2042, %v2042
      %v2049 = vunpack.c.l.b16 %v2047
      %v2050 = vpack.c.b16 %v2049, %v2049
      %2051 = vrot.lane.b32.xlu0 %v2050, 64
      %v2052 = vpop.permute.xlu0 %2051
      %vm2054 = vcmask 585216
      %2055 = vst.msk [vmem:[#allocation2] sm:$0xf] %vm2054, %v2052
      %v2056 = vld [vmem:[%s3 + $0x9] sm:$0x1]
      %v2057 = vlaneseq
      %v2058 = vshrl.u32 %v2057, 7
      %v2059 = vsub.s32 0, %v2058
      %v2060 = vrot.slane %v2056, %v2059
      %v2061 = vmul.f32 %v1161, %v2060
      %v2062 = vld [vmem:[%s3 + $0x19] sm:$0x1]
      %v2063 = vlaneseq
      %v2064 = vshrl.u32 %v2063, 7
      %v2065 = vsub.s32 0, %v2064
      %v2066 = vrot.slane %v2062, %v2065
      %v2067 = vmul.f32 %v1192, %v2066
      %v2068 = vadd.f32 %v2061, %v2067
      %v2069 = vld [vmem:[%s3 + $0x29] sm:$0x1]
      %v2070 = vlaneseq
      %v2071 = vshrl.u32 %v2070, 7
      %v2072 = vsub.s32 0, %v2071
      %v2073 = vrot.slane %v2069, %v2072
      %v2074 = vmul.f32 %v1223, %v2073
      %v2075 = vadd.f32 %v2068, %v2074
      %v2076 = vld [vmem:[%s3 + $0x39] sm:$0x1]
      %v2077 = vlaneseq
      %v2078 = vshrl.u32 %v2077, 7
      %v2079 = vsub.s32 0, %v2078
      %v2080 = vrot.slane %v2076, %v2079
      %v2081 = vmul.f32 %v1254, %v2080
      %v2082 = vadd.f32 %v2075, %v2081
      %v2083 = vld [vmem:[%s3 + $0x49] sm:$0x1]
      %v2084 = vlaneseq
      %v2085 = vshrl.u32 %v2084, 7
      %v2086 = vsub.s32 0, %v2085
      %v2087 = vrot.slane %v2083, %v2086
      %v2088 = vadd.f32 %v2082, %v2087
      %v2089 = vpack.c.bf16 %v2088, %v2088
      %v2091 = vsel %vm1321, %v2089, 0
      %2093 = vmatprep.subr.bf16.mxu0 0
      %2094 = vmatpush1.bf16.msra.mxu0 0
      %2095 = vmatprep.subr.bf16.mxu0 0
      %2096 = vmatpush1.bf16.msra.mxu0 0
      %2097 = vmatprep.subr.bf16.mxu0 0
      %2098 = vmatpush1.bf16.msra.mxu0 0
      %2099 = vmatprep.subr.bf16.mxu0 0
      %2100 = vmatpush1.bf16.msra.mxu0 0
      %2101 = vmatprep.subr.bf16.mxu0 0
      %2102 = vmatpush1.bf16.msra.mxu0 %v1316
      %2103 = vmatprep.subr.bf16.mxu0 0
      %2104 = vmatpush1.bf16.msra.mxu0 %v1315
      %2105 = vmatprep.subr.bf16.mxu0 0
      %2106 = vmatpush1.bf16.msra.mxu0 %v1314
      %2107 = vmatprep.subr.bf16.mxu0 0
      %2108 = vmatpush1.bf16.msra.mxu0 %v1313
      %2109 = vmatprep.subr.bf16.mxu0 0
      %2110 = vmatpush2.bf16.msra.mxu0 0
      %2111 = vmatprep.subr.bf16.mxu0 0
      %2112 = vmatpush2.bf16.msra.mxu0 0
      %2113 = vmatprep.subr.bf16.mxu0 0
      %2114 = vmatpush2.bf16.msra.mxu0 0
      %2115 = vmatprep.subr.bf16.mxu0 0
      %2116 = vmatpush2.bf16.msra.mxu0 0
      %2117 = vmatprep.subr.bf16.mxu0 0
      %2118 = vmatpush2.bf16.msra.mxu0 0
      %2119 = vmatprep.subr.bf16.mxu0 0
      %2120 = vmatpush2.bf16.msra.mxu0 0
      %2121 = vmatprep.subr.bf16.mxu0 0
      %2122 = vmatpush2.bf16.msra.mxu0 0
      %2123 = vmatprep.subr.bf16.mxu0 0
      %2124 = vmatpush2.bf16.msra.mxu0 0
      %2125 = vmatprep.mubr.bf16.mxu0 0
      %2126 = vmatmul.mubr.bf16.gmra.mxu0 %v2091
      %v2127 = vpop.f32.mrf.mxu0
      %v2128 = vadd.f32 0.0, %v2127
      %v2129 = vpop.f32.mrf.mxu0
      %v2130 = vpop.f32.mrf.mxu0
      %v2131 = vpop.f32.mrf.mxu0
      %2132 = vdwg.mxu0
      %v2133 = vpack.c.bf16 %v2128, %v2128
      %v2135 = vunpack.c.l.b16 %v2133
      %v2136 = vpack.c.b16 %v2135, %v2135
      %2137 = vrot.lane.b32.xlu0 %v2136, 72
      %v2138 = vpop.permute.xlu0 %2137
      %vm2140 = vcmask 650816
      %2141 = vst.msk [vmem:[#allocation2] sm:$0xf] %vm2140, %v2138
      %v2142 = vld [vmem:[%s3 + $0xa] sm:$0x1]
      %v2143 = vlaneseq
      %v2144 = vshrl.u32 %v2143, 7
      %v2145 = vsub.s32 0, %v2144
      %v2146 = vrot.slane %v2142, %v2145
      %v2147 = vmul.f32 %v1161, %v2146
      %v2148 = vld [vmem:[%s3 + $0x1a] sm:$0x1]
      %v2149 = vlaneseq
      %v2150 = vshrl.u32 %v2149, 7
      %v2151 = vsub.s32 0, %v2150
      %v2152 = vrot.slane %v2148, %v2151
      %v2153 = vmul.f32 %v1192, %v2152
      %v2154 = vadd.f32 %v2147, %v2153
      %v2155 = vld [vmem:[%s3 + $0x2a] sm:$0x1]
      %v2156 = vlaneseq
      %v2157 = vshrl.u32 %v2156, 7
      %v2158 = vsub.s32 0, %v2157
      %v2159 = vrot.slane %v2155, %v2158
      %v2160 = vmul.f32 %v1223, %v2159
      %v2161 = vadd.f32 %v2154, %v2160
      %v2162 = vld [vmem:[%s3 + $0x3a] sm:$0x1]
      %v2163 = vlaneseq
      %v2164 = vshrl.u32 %v2163, 7
      %v2165 = vsub.s32 0, %v2164
      %v2166 = vrot.slane %v2162, %v2165
      %v2167 = vmul.f32 %v1254, %v2166
      %v2168 = vadd.f32 %v2161, %v2167
      %v2169 = vld [vmem:[%s3 + $0x4a] sm:$0x1]
      %v2170 = vlaneseq
      %v2171 = vshrl.u32 %v2170, 7
      %v2172 = vsub.s32 0, %v2171
      %v2173 = vrot.slane %v2169, %v2172
      %v2174 = vadd.f32 %v2168, %v2173
      %v2175 = vpack.c.bf16 %v2174, %v2174
      %v2177 = vsel %vm1321, %v2175, 0
      %2179 = vmatprep.subr.bf16.mxu0 0
      %2180 = vmatpush1.bf16.msra.mxu0 0
      %2181 = vmatprep.subr.bf16.mxu0 0
      %2182 = vmatpush1.bf16.msra.mxu0 0
      %2183 = vmatprep.subr.bf16.mxu0 0
      %2184 = vmatpush1.bf16.msra.mxu0 0
      %2185 = vmatprep.subr.bf16.mxu0 0
      %2186 = vmatpush1.bf16.msra.mxu0 0
      %2187 = vmatprep.subr.bf16.mxu0 0
      %2188 = vmatpush1.bf16.msra.mxu0 %v1316
      %2189 = vmatprep.subr.bf16.mxu0 0
      %2190 = vmatpush1.bf16.msra.mxu0 %v1315
      %2191 = vmatprep.subr.bf16.mxu0 0
      %2192 = vmatpush1.bf16.msra.mxu0 %v1314
      %2193 = vmatprep.subr.bf16.mxu0 0
      %2194 = vmatpush1.bf16.msra.mxu0 %v1313
      %2195 = vmatprep.subr.bf16.mxu0 0
      %2196 = vmatpush2.bf16.msra.mxu0 0
      %2197 = vmatprep.subr.bf16.mxu0 0
      %2198 = vmatpush2.bf16.msra.mxu0 0
      %2199 = vmatprep.subr.bf16.mxu0 0
      %2200 = vmatpush2.bf16.msra.mxu0 0
      %2201 = vmatprep.subr.bf16.mxu0 0
      %2202 = vmatpush2.bf16.msra.mxu0 0
      %2203 = vmatprep.subr.bf16.mxu0 0
      %2204 = vmatpush2.bf16.msra.mxu0 0
      %2205 = vmatprep.subr.bf16.mxu0 0
      %2206 = vmatpush2.bf16.msra.mxu0 0
      %2207 = vmatprep.subr.bf16.mxu0 0
      %2208 = vmatpush2.bf16.msra.mxu0 0
      %2209 = vmatprep.subr.bf16.mxu0 0
      %2210 = vmatpush2.bf16.msra.mxu0 0
      %2211 = vmatprep.mubr.bf16.mxu0 0
      %2212 = vmatmul.mubr.bf16.gmra.mxu0 %v2177
      %v2213 = vpop.f32.mrf.mxu0
      %v2214 = vadd.f32 0.0, %v2213
      %v2215 = vpop.f32.mrf.mxu0
      %v2216 = vpop.f32.mrf.mxu0
      %v2217 = vpop.f32.mrf.mxu0
      %2218 = vdwg.mxu0
      %v2219 = vpack.c.bf16 %v2214, %v2214
      %v2221 = vunpack.c.l.b16 %v2219
      %v2222 = vpack.c.b16 %v2221, %v2221
      %2223 = vrot.lane.b32.xlu0 %v2222, 80
      %v2224 = vpop.permute.xlu0 %2223
      %vm2226 = vcmask 716416
      %2227 = vst.msk [vmem:[#allocation2] sm:$0xf] %vm2226, %v2224
      %v2228 = vld [vmem:[%s3 + $0xb] sm:$0x1]
      %v2229 = vlaneseq
      %v2230 = vshrl.u32 %v2229, 7
      %v2231 = vsub.s32 0, %v2230
      %v2232 = vrot.slane %v2228, %v2231
      %v2233 = vmul.f32 %v1161, %v2232
      %v2234 = vld [vmem:[%s3 + $0x1b] sm:$0x1]
      %v2235 = vlaneseq
      %v2236 = vshrl.u32 %v2235, 7
      %v2237 = vsub.s32 0, %v2236
      %v2238 = vrot.slane %v2234, %v2237
      %v2239 = vmul.f32 %v1192, %v2238
      %v2240 = vadd.f32 %v2233, %v2239
      %v2241 = vld [vmem:[%s3 + $0x2b] sm:$0x1]
      %v2242 = vlaneseq
      %v2243 = vshrl.u32 %v2242, 7
      %v2244 = vsub.s32 0, %v2243
      %v2245 = vrot.slane %v2241, %v2244
      %v2246 = vmul.f32 %v1223, %v2245
      %v2247 = vadd.f32 %v2240, %v2246
      %v2248 = vld [vmem:[%s3 + $0x3b] sm:$0x1]
      %v2249 = vlaneseq
      %v2250 = vshrl.u32 %v2249, 7
      %v2251 = vsub.s32 0, %v2250
      %v2252 = vrot.slane %v2248, %v2251
      %v2253 = vmul.f32 %v1254, %v2252
      %v2254 = vadd.f32 %v2247, %v2253
      %v2255 = vld [vmem:[%s3 + $0x4b] sm:$0x1]
      %v2256 = vlaneseq
      %v2257 = vshrl.u32 %v2256, 7
      %v2258 = vsub.s32 0, %v2257
      %v2259 = vrot.slane %v2255, %v2258
      %v2260 = vadd.f32 %v2254, %v2259
      %v2261 = vpack.c.bf16 %v2260, %v2260
      %v2263 = vsel %vm1321, %v2261, 0
      %2265 = vmatprep.subr.bf16.mxu0 0
      %2266 = vmatpush1.bf16.msra.mxu0 0
      %2267 = vmatprep.subr.bf16.mxu0 0
      %2268 = vmatpush1.bf16.msra.mxu0 0
      %2269 = vmatprep.subr.bf16.mxu0 0
      %2270 = vmatpush1.bf16.msra.mxu0 0
      %2271 = vmatprep.subr.bf16.mxu0 0
      %2272 = vmatpush1.bf16.msra.mxu0 0
      %2273 = vmatprep.subr.bf16.mxu0 0
      %2274 = vmatpush1.bf16.msra.mxu0 %v1316
      %2275 = vmatprep.subr.bf16.mxu0 0
      %2276 = vmatpush1.bf16.msra.mxu0 %v1315
      %2277 = vmatprep.subr.bf16.mxu0 0
      %2278 = vmatpush1.bf16.msra.mxu0 %v1314
      %2279 = vmatprep.subr.bf16.mxu0 0
      %2280 = vmatpush1.bf16.msra.mxu0 %v1313
      %2281 = vmatprep.subr.bf16.mxu0 0
      %2282 = vmatpush2.bf16.msra.mxu0 0
      %2283 = vmatprep.subr.bf16.mxu0 0
      %2284 = vmatpush2.bf16.msra.mxu0 0
      %2285 = vmatprep.subr.bf16.mxu0 0
      %2286 = vmatpush2.bf16.msra.mxu0 0
      %2287 = vmatprep.subr.bf16.mxu0 0
      %2288 = vmatpush2.bf16.msra.mxu0 0
      %2289 = vmatprep.subr.bf16.mxu0 0
      %2290 = vmatpush2.bf16.msra.mxu0 0
      %2291 = vmatprep.subr.bf16.mxu0 0
      %2292 = vmatpush2.bf16.msra.mxu0 0
      %2293 = vmatprep.subr.bf16.mxu0 0
      %2294 = vmatpush2.bf16.msra.mxu0 0
      %2295 = vmatprep.subr.bf16.mxu0 0
      %2296 = vmatpush2.bf16.msra.mxu0 0
      %2297 = vmatprep.mubr.bf16.mxu0 0
      %2298 = vmatmul.mubr.bf16.gmra.mxu0 %v2263
      %v2299 = vpop.f32.mrf.mxu0
      %v2300 = vadd.f32 0.0, %v2299
      %v2301 = vpop.f32.mrf.mxu0
      %v2302 = vpop.f32.mrf.mxu0
      %v2303 = vpop.f32.mrf.mxu0
      %2304 = vdwg.mxu0
      %v2305 = vpack.c.bf16 %v2300, %v2300
      %v2307 = vunpack.c.l.b16 %v2305
      %v2308 = vpack.c.b16 %v2307, %v2307
      %2309 = vrot.lane.b32.xlu0 %v2308, 88
      %v2310 = vpop.permute.xlu0 %2309
      %vm2312 = vcmask 782016
      %2313 = vst.msk [vmem:[#allocation2] sm:$0xf] %vm2312, %v2310
      %v2314 = vld [vmem:[%s3 + $0xc] sm:$0x1]
      %v2315 = vlaneseq
      %v2316 = vshrl.u32 %v2315, 7
      %v2317 = vsub.s32 0, %v2316
      %v2318 = vrot.slane %v2314, %v2317
      %v2319 = vmul.f32 %v1161, %v2318
      %v2320 = vld [vmem:[%s3 + $0x1c] sm:$0x1]
      %v2321 = vlaneseq
      %v2322 = vshrl.u32 %v2321, 7
      %v2323 = vsub.s32 0, %v2322
      %v2324 = vrot.slane %v2320, %v2323
      %v2325 = vmul.f32 %v1192, %v2324
      %v2326 = vadd.f32 %v2319, %v2325
      %v2327 = vld [vmem:[%s3 + $0x2c] sm:$0x1]
      %v2328 = vlaneseq
      %v2329 = vshrl.u32 %v2328, 7
      %v2330 = vsub.s32 0, %v2329
      %v2331 = vrot.slane %v2327, %v2330
      %v2332 = vmul.f32 %v1223, %v2331
      %v2333 = vadd.f32 %v2326, %v2332
      %v2334 = vld [vmem:[%s3 + $0x3c] sm:$0x1]
      %v2335 = vlaneseq
      %v2336 = vshrl.u32 %v2335, 7
      %v2337 = vsub.s32 0, %v2336
      %v2338 = vrot.slane %v2334, %v2337
      %v2339 = vmul.f32 %v1254, %v2338
      %v2340 = vadd.f32 %v2333, %v2339
      %v2341 = vld [vmem:[%s3 + $0x4c] sm:$0x1]
      %v2342 = vlaneseq
      %v2343 = vshrl.u32 %v2342, 7
      %v2344 = vsub.s32 0, %v2343
      %v2345 = vrot.slane %v2341, %v2344
      %v2346 = vadd.f32 %v2340, %v2345
      %v2347 = vpack.c.bf16 %v2346, %v2346
      %v2349 = vsel %vm1321, %v2347, 0
      %2351 = vmatprep.subr.bf16.mxu0 0
      %2352 = vmatpush1.bf16.msra.mxu0 0
      %2353 = vmatprep.subr.bf16.mxu0 0
      %2354 = vmatpush1.bf16.msra.mxu0 0
      %2355 = vmatprep.subr.bf16.mxu0 0
      %2356 = vmatpush1.bf16.msra.mxu0 0
      %2357 = vmatprep.subr.bf16.mxu0 0
      %2358 = vmatpush1.bf16.msra.mxu0 0
      %2359 = vmatprep.subr.bf16.mxu0 0
      %2360 = vmatpush1.bf16.msra.mxu0 %v1316
      %2361 = vmatprep.subr.bf16.mxu0 0
      %2362 = vmatpush1.bf16.msra.mxu0 %v1315
      %2363 = vmatprep.subr.bf16.mxu0 0
      %2364 = vmatpush1.bf16.msra.mxu0 %v1314
      %2365 = vmatprep.subr.bf16.mxu0 0
      %2366 = vmatpush1.bf16.msra.mxu0 %v1313
      %2367 = vmatprep.subr.bf16.mxu0 0
      %2368 = vmatpush2.bf16.msra.mxu0 0
      %2369 = vmatprep.subr.bf16.mxu0 0
      %2370 = vmatpush2.bf16.msra.mxu0 0
      %2371 = vmatprep.subr.bf16.mxu0 0
      %2372 = vmatpush2.bf16.msra.mxu0 0
      %2373 = vmatprep.subr.bf16.mxu0 0
      %2374 = vmatpush2.bf16.msra.mxu0 0
      %2375 = vmatprep.subr.bf16.mxu0 0
      %2376 = vmatpush2.bf16.msra.mxu0 0
      %2377 = vmatprep.subr.bf16.mxu0 0
      %2378 = vmatpush2.bf16.msra.mxu0 0
      %2379 = vmatprep.subr.bf16.mxu0 0
      %2380 = vmatpush2.bf16.msra.mxu0 0
      %2381 = vmatprep.subr.bf16.mxu0 0
      %2382 = vmatpush2.bf16.msra.mxu0 0
      %2383 = vmatprep.mubr.bf16.mxu0 0
      %2384 = vmatmul.mubr.bf16.gmra.mxu0 %v2349
      %v2385 = vpop.f32.mrf.mxu0
      %v2386 = vadd.f32 0.0, %v2385
      %v2387 = vpop.f32.mrf.mxu0
      %v2388 = vpop.f32.mrf.mxu0
      %v2389 = vpop.f32.mrf.mxu0
      %2390 = vdwg.mxu0
      %v2391 = vpack.c.bf16 %v2386, %v2386
      %v2393 = vunpack.c.l.b16 %v2391
      %v2394 = vpack.c.b16 %v2393, %v2393
      %2395 = vrot.lane.b32.xlu0 %v2394, 96
      %v2396 = vpop.permute.xlu0 %2395
      %vm2398 = vcmask 847616
      %2399 = vst.msk [vmem:[#allocation2] sm:$0xf] %vm2398, %v2396
      %v2400 = vld [vmem:[%s3 + $0xd] sm:$0x1]
      %v2401 = vlaneseq
      %v2402 = vshrl.u32 %v2401, 7
      %v2403 = vsub.s32 0, %v2402
      %v2404 = vrot.slane %v2400, %v2403
      %v2405 = vmul.f32 %v1161, %v2404
      %v2406 = vld [vmem:[%s3 + $0x1d] sm:$0x1]
      %v2407 = vlaneseq
      %v2408 = vshrl.u32 %v2407, 7
      %v2409 = vsub.s32 0, %v2408
      %v2410 = vrot.slane %v2406, %v2409
      %v2411 = vmul.f32 %v1192, %v2410
      %v2412 = vadd.f32 %v2405, %v2411
      %v2413 = vld [vmem:[%s3 + $0x2d] sm:$0x1]
      %v2414 = vlaneseq
      %v2415 = vshrl.u32 %v2414, 7
      %v2416 = vsub.s32 0, %v2415
      %v2417 = vrot.slane %v2413, %v2416
      %v2418 = vmul.f32 %v1223, %v2417
      %v2419 = vadd.f32 %v2412, %v2418
      %v2420 = vld [vmem:[%s3 + $0x3d] sm:$0x1]
      %v2421 = vlaneseq
      %v2422 = vshrl.u32 %v2421, 7
      %v2423 = vsub.s32 0, %v2422
      %v2424 = vrot.slane %v2420, %v2423
      %v2425 = vmul.f32 %v1254, %v2424
      %v2426 = vadd.f32 %v2419, %v2425
      %v2427 = vld [vmem:[%s3 + $0x4d] sm:$0x1]
      %v2428 = vlaneseq
      %v2429 = vshrl.u32 %v2428, 7
      %v2430 = vsub.s32 0, %v2429
      %v2431 = vrot.slane %v2427, %v2430
      %v2432 = vadd.f32 %v2426, %v2431
      %v2433 = vpack.c.bf16 %v2432, %v2432
      %v2435 = vsel %vm1321, %v2433, 0
      %2437 = vmatprep.subr.bf16.mxu0 0
      %2438 = vmatpush1.bf16.msra.mxu0 0
      %2439 = vmatprep.subr.bf16.mxu0 0
      %2440 = vmatpush1.bf16.msra.mxu0 0
      %2441 = vmatprep.subr.bf16.mxu0 0
      %2442 = vmatpush1.bf16.msra.mxu0 0
      %2443 = vmatprep.subr.bf16.mxu0 0
      %2444 = vmatpush1.bf16.msra.mxu0 0
      %2445 = vmatprep.subr.bf16.mxu0 0
      %2446 = vmatpush1.bf16.msra.mxu0 %v1316
      %2447 = vmatprep.subr.bf16.mxu0 0
      %2448 = vmatpush1.bf16.msra.mxu0 %v1315
      %2449 = vmatprep.subr.bf16.mxu0 0
      %2450 = vmatpush1.bf16.msra.mxu0 %v1314
      %2451 = vmatprep.subr.bf16.mxu0 0
      %2452 = vmatpush1.bf16.msra.mxu0 %v1313
      %2453 = vmatprep.subr.bf16.mxu0 0
      %2454 = vmatpush2.bf16.msra.mxu0 0
      %2455 = vmatprep.subr.bf16.mxu0 0
      %2456 = vmatpush2.bf16.msra.mxu0 0
      %2457 = vmatprep.subr.bf16.mxu0 0
      %2458 = vmatpush2.bf16.msra.mxu0 0
      %2459 = vmatprep.subr.bf16.mxu0 0
      %2460 = vmatpush2.bf16.msra.mxu0 0
      %2461 = vmatprep.subr.bf16.mxu0 0
      %2462 = vmatpush2.bf16.msra.mxu0 0
      %2463 = vmatprep.subr.bf16.mxu0 0
      %2464 = vmatpush2.bf16.msra.mxu0 0
      %2465 = vmatprep.subr.bf16.mxu0 0
      %2466 = vmatpush2.bf16.msra.mxu0 0
      %2467 = vmatprep.subr.bf16.mxu0 0
      %2468 = vmatpush2.bf16.msra.mxu0 0
      %2469 = vmatprep.mubr.bf16.mxu0 0
      %2470 = vmatmul.mubr.bf16.gmra.mxu0 %v2435
      %v2471 = vpop.f32.mrf.mxu0
      %v2472 = vadd.f32 0.0, %v2471
      %v2473 = vpop.f32.mrf.mxu0
      %v2474 = vpop.f32.mrf.mxu0
      %v2475 = vpop.f32.mrf.mxu0
      %2476 = vdwg.mxu0
      %v2477 = vpack.c.bf16 %v2472, %v2472
      %v2479 = vunpack.c.l.b16 %v2477
      %v2480 = vpack.c.b16 %v2479, %v2479
      %2481 = vrot.lane.b32.xlu0 %v2480, 104
      %v2482 = vpop.permute.xlu0 %2481
      %vm2484 = vcmask 913216
      %2485 = vst.msk [vmem:[#allocation2] sm:$0xf] %vm2484, %v2482
      %v2486 = vld [vmem:[%s3 + $0xe] sm:$0x1]
      %v2487 = vlaneseq
      %v2488 = vshrl.u32 %v2487, 7
      %v2489 = vsub.s32 0, %v2488
      %v2490 = vrot.slane %v2486, %v2489
      %v2491 = vmul.f32 %v1161, %v2490
      %v2492 = vld [vmem:[%s3 + $0x1e] sm:$0x1]
      %v2493 = vlaneseq
      %v2494 = vshrl.u32 %v2493, 7
      %v2495 = vsub.s32 0, %v2494
      %v2496 = vrot.slane %v2492, %v2495
      %v2497 = vmul.f32 %v1192, %v2496
      %v2498 = vadd.f32 %v2491, %v2497
      %v2499 = vld [vmem:[%s3 + $0x2e] sm:$0x1]
      %v2500 = vlaneseq
      %v2501 = vshrl.u32 %v2500, 7
      %v2502 = vsub.s32 0, %v2501
      %v2503 = vrot.slane %v2499, %v2502
      %v2504 = vmul.f32 %v1223, %v2503
      %v2505 = vadd.f32 %v2498, %v2504
      %v2506 = vld [vmem:[%s3 + $0x3e] sm:$0x1]
      %v2507 = vlaneseq
      %v2508 = vshrl.u32 %v2507, 7
      %v2509 = vsub.s32 0, %v2508
      %v2510 = vrot.slane %v2506, %v2509
      %v2511 = vmul.f32 %v1254, %v2510
      %v2512 = vadd.f32 %v2505, %v2511
      %v2513 = vld [vmem:[%s3 + $0x4e] sm:$0x1]
      %v2514 = vlaneseq
      %v2515 = vshrl.u32 %v2514, 7
      %v2516 = vsub.s32 0, %v2515
      %v2517 = vrot.slane %v2513, %v2516
      %v2518 = vadd.f32 %v2512, %v2517
      %v2519 = vpack.c.bf16 %v2518, %v2518
      %v2521 = vsel %vm1321, %v2519, 0
      %2523 = vmatprep.subr.bf16.mxu0 0
      %2524 = vmatpush1.bf16.msra.mxu0 0
      %2525 = vmatprep.subr.bf16.mxu0 0
      %2526 = vmatpush1.bf16.msra.mxu0 0
      %2527 = vmatprep.subr.bf16.mxu0 0
      %2528 = vmatpush1.bf16.msra.mxu0 0
      %2529 = vmatprep.subr.bf16.mxu0 0
      %2530 = vmatpush1.bf16.msra.mxu0 0
      %2531 = vmatprep.subr.bf16.mxu0 0
      %2532 = vmatpush1.bf16.msra.mxu0 %v1316
      %2533 = vmatprep.subr.bf16.mxu0 0
      %2534 = vmatpush1.bf16.msra.mxu0 %v1315
      %2535 = vmatprep.subr.bf16.mxu0 0
      %2536 = vmatpush1.bf16.msra.mxu0 %v1314
      %2537 = vmatprep.subr.bf16.mxu0 0
      %2538 = vmatpush1.bf16.msra.mxu0 %v1313
      %2539 = vmatprep.subr.bf16.mxu0 0
      %2540 = vmatpush2.bf16.msra.mxu0 0
      %2541 = vmatprep.subr.bf16.mxu0 0
      %2542 = vmatpush2.bf16.msra.mxu0 0
      %2543 = vmatprep.subr.bf16.mxu0 0
      %2544 = vmatpush2.bf16.msra.mxu0 0
      %2545 = vmatprep.subr.bf16.mxu0 0
      %2546 = vmatpush2.bf16.msra.mxu0 0
      %2547 = vmatprep.subr.bf16.mxu0 0
      %2548 = vmatpush2.bf16.msra.mxu0 0
      %2549 = vmatprep.subr.bf16.mxu0 0
      %2550 = vmatpush2.bf16.msra.mxu0 0
      %2551 = vmatprep.subr.bf16.mxu0 0
      %2552 = vmatpush2.bf16.msra.mxu0 0
      %2553 = vmatprep.subr.bf16.mxu0 0
      %2554 = vmatpush2.bf16.msra.mxu0 0
      %2555 = vmatprep.mubr.bf16.mxu0 0
      %2556 = vmatmul.mubr.bf16.gmra.mxu0 %v2521
      %v2557 = vpop.f32.mrf.mxu0
      %v2558 = vadd.f32 0.0, %v2557
      %v2559 = vpop.f32.mrf.mxu0
      %v2560 = vpop.f32.mrf.mxu0
      %v2561 = vpop.f32.mrf.mxu0
      %2562 = vdwg.mxu0
      %v2563 = vpack.c.bf16 %v2558, %v2558
      %v2565 = vunpack.c.l.b16 %v2563
      %v2566 = vpack.c.b16 %v2565, %v2565
      %2567 = vrot.lane.b32.xlu0 %v2566, 112
      %v2568 = vpop.permute.xlu0 %2567
      %vm2570 = vcmask 978816
      %2571 = vst.msk [vmem:[#allocation2] sm:$0xf] %vm2570, %v2568
      %v2572 = vld [vmem:[%s3 + $0xf] sm:$0x1]
      %v2573 = vlaneseq
      %v2574 = vshrl.u32 %v2573, 7
      %v2575 = vsub.s32 0, %v2574
      %v2576 = vrot.slane %v2572, %v2575
      %v2577 = vmul.f32 %v1161, %v2576
      %v2578 = vld [vmem:[%s3 + $0x1f] sm:$0x1]
      %v2579 = vlaneseq
      %v2580 = vshrl.u32 %v2579, 7
      %v2581 = vsub.s32 0, %v2580
      %v2582 = vrot.slane %v2578, %v2581
      %v2583 = vmul.f32 %v1192, %v2582
      %v2584 = vadd.f32 %v2577, %v2583
      %v2585 = vld [vmem:[%s3 + $0x2f] sm:$0x1]
      %v2586 = vlaneseq
      %v2587 = vshrl.u32 %v2586, 7
      %v2588 = vsub.s32 0, %v2587
      %v2589 = vrot.slane %v2585, %v2588
      %v2590 = vmul.f32 %v1223, %v2589
      %v2591 = vadd.f32 %v2584, %v2590
      %v2592 = vld [vmem:[%s3 + $0x3f] sm:$0x1]
      %v2593 = vlaneseq
      %v2594 = vshrl.u32 %v2593, 7
      %v2595 = vsub.s32 0, %v2594
      %v2596 = vrot.slane %v2592, %v2595
      %v2597 = vmul.f32 %v1254, %v2596
      %v2598 = vadd.f32 %v2591, %v2597
      %v2599 = vld [vmem:[%s3 + $0x4f] sm:$0x1]
      %v2600 = vlaneseq
      %v2601 = vshrl.u32 %v2600, 7
      %v2602 = vsub.s32 0, %v2601
      %v2603 = vrot.slane %v2599, %v2602
      %v2604 = vadd.f32 %v2598, %v2603
      %v2605 = vpack.c.bf16 %v2604, %v2604
      %v2607 = vsel %vm1321, %v2605, 0
      %2609 = vmatprep.subr.bf16.mxu0 0
      %2610 = vmatpush1.bf16.msra.mxu0 0
      %2611 = vmatprep.subr.bf16.mxu0 0
      %2612 = vmatpush1.bf16.msra.mxu0 0
      %2613 = vmatprep.subr.bf16.mxu0 0
      %2614 = vmatpush1.bf16.msra.mxu0 0
      %2615 = vmatprep.subr.bf16.mxu0 0
      %2616 = vmatpush1.bf16.msra.mxu0 0
      %2617 = vmatprep.subr.bf16.mxu0 0
      %2618 = vmatpush1.bf16.msra.mxu0 %v1316
      %2619 = vmatprep.subr.bf16.mxu0 0
      %2620 = vmatpush1.bf16.msra.mxu0 %v1315
      %2621 = vmatprep.subr.bf16.mxu0 0
      %2622 = vmatpush1.bf16.msra.mxu0 %v1314
      %2623 = vmatprep.subr.bf16.mxu0 0
      %2624 = vmatpush1.bf16.msra.mxu0 %v1313
      %2625 = vmatprep.subr.bf16.mxu0 0
      %2626 = vmatpush2.bf16.msra.mxu0 0
      %2627 = vmatprep.subr.bf16.mxu0 0
      %2628 = vmatpush2.bf16.msra.mxu0 0
      %2629 = vmatprep.subr.bf16.mxu0 0
      %2630 = vmatpush2.bf16.msra.mxu0 0
      %2631 = vmatprep.subr.bf16.mxu0 0
      %2632 = vmatpush2.bf16.msra.mxu0 0
      %2633 = vmatprep.subr.bf16.mxu0 0
      %2634 = vmatpush2.bf16.msra.mxu0 0
      %2635 = vmatprep.subr.bf16.mxu0 0
      %2636 = vmatpush2.bf16.msra.mxu0 0
      %2637 = vmatprep.subr.bf16.mxu0 0
      %2638 = vmatpush2.bf16.msra.mxu0 0
      %2639 = vmatprep.subr.bf16.mxu0 0
      %2640 = vmatpush2.bf16.msra.mxu0 0
      %2641 = vmatprep.mubr.bf16.mxu0 0
      %2642 = vmatmul.mubr.bf16.gmra.mxu0 %v2607
      %v2643 = vpop.f32.mrf.mxu0
      %v2644 = vadd.f32 0.0, %v2643
      %v2645 = vpop.f32.mrf.mxu0
      %v2646 = vpop.f32.mrf.mxu0
      %v2647 = vpop.f32.mrf.mxu0
      %2648 = vdwg.mxu0
      %v2649 = vpack.c.bf16 %v2644, %v2644
      %v2651 = vunpack.c.l.b16 %v2649
      %v2652 = vpack.c.b16 %v2651, %v2651
      %2653 = vrot.lane.b32.xlu0 %v2652, 120
      %v2654 = vpop.permute.xlu0 %2653
      %vm2656 = vcmask 1044416
      %2657 = vst.msk [vmem:[#allocation2] sm:$0xf] %vm2656, %v2654
      %v2658 = vld [vmem:[#allocation2] sm:$0xf]
      %v2659 = vld [vmem:[#allocation3] sm:$0xf]
      %v2660 = vld [vmem:[#allocation3 + $0x4] sm:$0xf]
      %v2661 = vld [vmem:[#allocation3 + $0x8] sm:$0xf]
      %v2662 = vld [vmem:[#allocation3 + $0xc] sm:$0xf]
      %v2663 = vld [vmem:[#allocation3 + $0x10] sm:$0xf]
      %v2664 = vld [vmem:[#allocation3 + $0x14] sm:$0xf]
      %v2665 = vld [vmem:[#allocation3 + $0x18] sm:$0xf]
      %v2666 = vld [vmem:[#allocation3 + $0x1c] sm:$0xf]
      %v2667 = vld [vmem:[#allocation3 + $0x20] sm:$0xf]
      %v2668 = vld [vmem:[#allocation3 + $0x24] sm:$0xf]
      %v2669 = vld [vmem:[#allocation3 + $0x28] sm:$0xf]
      %v2670 = vld [vmem:[#allocation3 + $0x2c] sm:$0xf]
      %v2671 = vld [vmem:[#allocation3 + $0x30] sm:$0xf]
      %v2672 = vld [vmem:[#allocation3 + $0x34] sm:$0xf]
      %v2673 = vld [vmem:[#allocation3 + $0x38] sm:$0xf]
      %v2674 = vld [vmem:[#allocation3 + $0x3c] sm:$0xf]
      %v2691 = vunpack.c.l.b16 %v2659
      %v2692 = vunpack.c.l.b16 %v2660
      %v2693 = vunpack.c.l.b16 %v2661
      %v2694 = vunpack.c.l.b16 %v2662
      %v2695 = vunpack.c.l.b16 %v2663
      %v2696 = vunpack.c.l.b16 %v2664
      %v2697 = vunpack.c.l.b16 %v2665
      %v2698 = vunpack.c.l.b16 %v2666
      %v2699 = vunpack.c.l.b16 %v2667
      %v2700 = vunpack.c.l.b16 %v2668
      %v2701 = vunpack.c.l.b16 %v2669
      %v2702 = vunpack.c.l.b16 %v2670
      %v2703 = vunpack.c.l.b16 %v2671
      %v2704 = vunpack.c.l.b16 %v2672
      %v2705 = vunpack.c.l.b16 %v2673
      %v2706 = vunpack.c.l.b16 %v2674
      %v2707 = vpack.c.b16 %v2692, %v2691
      %v2708 = vpack.c.b16 %v2694, %v2693
      %v2709 = vpack.c.b16 %v2696, %v2695
      %v2710 = vpack.c.b16 %v2698, %v2697
      %v2711 = vpack.c.b16 %v2700, %v2699
      %v2712 = vpack.c.b16 %v2702, %v2701
      %v2713 = vpack.c.b16 %v2704, %v2703
      %v2714 = vpack.c.b16 %v2706, %v2705
      %2723 = vmatprep.subr.bf16.mxu0 0
      %2724 = vmatpush1.bf16.msra.mxu0 %v2714
      %2725 = vmatprep.subr.bf16.mxu0 0
      %2726 = vmatpush1.bf16.msra.mxu0 %v2713
      %2727 = vmatprep.subr.bf16.mxu0 0
      %2728 = vmatpush1.bf16.msra.mxu0 %v2712
      %2729 = vmatprep.subr.bf16.mxu0 0
      %2730 = vmatpush1.bf16.msra.mxu0 %v2711
      %2731 = vmatprep.subr.bf16.mxu0 0
      %2732 = vmatpush1.bf16.msra.mxu0 %v2710
      %2733 = vmatprep.subr.bf16.mxu0 0
      %2734 = vmatpush1.bf16.msra.mxu0 %v2709
      %2735 = vmatprep.subr.bf16.mxu0 0
      %2736 = vmatpush1.bf16.msra.mxu0 %v2708
      %2737 = vmatprep.subr.bf16.mxu0 0
      %2738 = vmatpush1.bf16.msra.mxu0 %v2707
      %2739 = vmatprep.subr.bf16.mxu0 0
      %2740 = vmatpush2.bf16.msra.mxu0 0
      %2741 = vmatprep.subr.bf16.mxu0 0
      %2742 = vmatpush2.bf16.msra.mxu0 0
      %2743 = vmatprep.subr.bf16.mxu0 0
      %2744 = vmatpush2.bf16.msra.mxu0 0
      %2745 = vmatprep.subr.bf16.mxu0 0
      %2746 = vmatpush2.bf16.msra.mxu0 0
      %2747 = vmatprep.subr.bf16.mxu0 0
      %2748 = vmatpush2.bf16.msra.mxu0 0
      %2749 = vmatprep.subr.bf16.mxu0 0
      %2750 = vmatpush2.bf16.msra.mxu0 0
      %2751 = vmatprep.subr.bf16.mxu0 0
      %2752 = vmatpush2.bf16.msra.mxu0 0
      %2753 = vmatprep.subr.bf16.mxu0 0
      %2754 = vmatpush2.bf16.msra.mxu0 0
      %2755 = vmatprep.mubr.bf16.mxu0 0
      %2756 = vmatmul.mubr.bf16.gmra.mxu0 %v2658
      %v2757 = vpop.f32.mrf.mxu0
      %v2758 = vadd.f32 0.0, %v2757
      %v2759 = vpop.f32.mrf.mxu0
      %v2760 = vpop.f32.mrf.mxu0
      %v2761 = vpop.f32.mrf.mxu0
      %2762 = vdwg.mxu0
      %v2763 = vpack.c.bf16 %v2758, %v2758
      %2764 = vst [vmem:[%s293] sm:$0xf] %v2763
      %p2765 = scmp.lt.s32.totalorder %s20, 1
      %s2766 = scalar_select %p2765, %s20, 1
      %p2767 = scmp.lt.s32.totalorder %s21, 0
      %s2768 = scalar_select %p2767, %s21, 0
      %s2769 = sadd.s32 %s2768, %s2766
      %s2770 = smul.addr %s2769, 4
      %s2771 = scalar_lea.vmem %s5, %s2770
      // Predicated region
      $region45: #{pair_convolution2.1} parent=39 // pred_check
        %p2772 = pneg %p170
      $region46: #{pair_convolution2.1} parent=39 // pred_check_branch
        %2774 = sbr.rel (%p2772) target = $region48
      $region47: #{pair_convolution2.1} parent=39 // pred_region
        _
      $region48: #{pair_convolution2.1} parent=39 // pred_fallthru
        _
    $region40: #{pair_convolution2.1} parent=5 // pred_fallthru
      _
    %p2775 = scmp.le.s32.totalorder 2, %s11
    // Predicated region
    $region49: #{pair_convolution2.1} parent=5 // pred_check
      %p2776 = pneg %p2775
    $region50: #{pair_convolution2.1} parent=5 // pred_check_branch
      %2778 = sbr.rel (%p2776) target = $region52
    $region51: #{pair_convolution2.1} parent=5 // pred_region
      %s2779 = ssub.s32 %s11, 2
      // Predicated region
      $region53: #{pair_convolution2.1} parent=51 // pred_check
        %p2780 = pneg %p176
      $region54: #{pair_convolution2.1} parent=51 // pred_check_branch
        %2782 = sbr.rel (%p2780) target = $region56
      $region55: #{pair_convolution2.1} parent=51 // pred_region
        %p2783 = scmp.lt.s32.totalorder %s22, 1
        %s2784 = scalar_select %p2783, %s22, 1
        %p2785 = scmp.lt.s32.totalorder %s23, 0
        %s2786 = scalar_select %p2785, %s23, 0
        %s2787 = sadd.s32 %s2786, %s2784
        %s2788 = smul.addr %s2787, 4
        %s2789 = scalar_lea.vmem %s5, %s2788
      $region56: #{pair_convolution2.1} parent=51 // pred_fallthru
        _
    $region52: #{pair_convolution2.1} parent=5 // pred_fallthru
      _
  $region6: #{pair_convolution2.1} parent=0 // loop_footer
    %s15 = sadd.s32 1, %s11
  $region7: #{pair_convolution2.1} parent=0 // loop_footer_branch
    %10 = sbr.rel target = $region3
  $region8: #{pair_convolution2.1} parent=0 // loop_exit
    _

</llo_original>
